<compile_context>
chip_gen: v6e
topology: v6e:2x2x1
jax: 0.10.0
libtpu: 0.0.40
codegen_flags: <defaults>
</compile_context>

<pallas_src>
import numpy as np

import jax
import jax.numpy as jnp
from jax import lax
from jax.experimental import pallas as pl
from jax.experimental.pallas import tpu as pltpu

NEG_SLOPE = 0.01  # F.leaky_relu default negative slope
BN_EPS = 1e-5


def _leaky(y):
    return jnp.where(y >= 0, y, NEG_SLOPE * y)


# ----------------------------------------------------------------------------
# Synthetic parameter init (BN folded in eval mode, scale folded into weights)
# ----------------------------------------------------------------------------
def _bn_fold(gamma, beta, mean, var, conv_bias=None):
    scale = gamma / jnp.sqrt(var + BN_EPS)
    bias = beta - mean * scale
    if conv_bias is not None:
        bias = bias + conv_bias * scale
    return scale, bias


def _init_bn(key, cout):
    k = jax.random.split(key, 4)
    gamma = 1.0 + 0.1 * jax.random.normal(k[0], (cout,), jnp.float32)
    beta = 0.1 * jax.random.normal(k[1], (cout,), jnp.float32)
    mean = 0.1 * jax.random.normal(k[2], (cout,), jnp.float32)
    var = jax.nn.softplus(jax.random.normal(k[3], (cout,), jnp.float32)) + 0.5
    return gamma, beta, mean, var


def init_pointwise(key, cin, cout, conv_bias=False):
    kw, kb, kbn = jax.random.split(key, 3)
    w = 0.2 * jax.random.normal(kw, (cin, cout), jnp.float32)
    b = 0.1 * jax.random.normal(kb, (cout,), jnp.float32) if conv_bias else None
    scale, bias = _bn_fold(*_init_bn(kbn, cout), b)
    return dict(w=w * scale[None, :], bias=bias)  # BN scale folded into W


def init_grouped3x3(key, cin, cout, groups):
    kw, kbn = jax.random.split(key, 2)
    cin_g, cout_g = cin // groups, cout // groups
    wg = 0.2 * jax.random.normal(kw, (groups, 3, 3, cin_g, cout_g), jnp.float32)
    w = jnp.zeros((3, 3, cin, cout), jnp.float32)
    for g in range(groups):  # block-diagonal dense weight == grouped conv
        w = w.at[:, :, g * cin_g:(g + 1) * cin_g,
                 g * cout_g:(g + 1) * cout_g].set(wg[g])
    scale, bias = _bn_fold(*_init_bn(kbn, cout))
    return dict(w=w * scale[None, None, None, :], bias=bias)  # HWIO, folded


def init_residual_block(key, cin, cardinality, group_width, stride):
    cout = cardinality * group_width
    keys = jax.random.split(key, 4)
    p = dict(stride=stride,
             conv1=init_pointwise(keys[0], cin, cout),
             conv2=init_grouped3x3(keys[1], cout, cout, cardinality),
             conv3=init_pointwise(keys[2], cout, cout, conv_bias=True))
    if cin != cout:
        p["shortcut"] = init_pointwise(keys[3], cin, cout, conv_bias=True)
    return p


def init_stem(key, in_channels, num_blocks, cardinality, group_with, stride):
    hidden = cardinality * group_with
    c0 = in_channels // 2
    c1 = in_channels - c0
    out_ch = hidden * 2
    keys = jax.random.split(key, 4 + num_blocks)
    params = dict(
        c0=c0, stride=stride, hidden=hidden,
        transition=init_pointwise(keys[0], hidden, in_channels),
        trans_part0=init_pointwise(keys[1], c0, hidden),
        trans_part1=init_pointwise(keys[2], hidden, hidden),
        trans=init_pointwise(keys[3], out_ch, out_ch))
    strides = [stride] + [1] * (num_blocks - 1)
    channels = [c1] + [hidden] * (num_blocks - 1)
    params["blocks"] = [
        init_residual_block(keys[4 + i], c, cardinality, group_with, s)
        for i, (c, s) in enumerate(zip(channels, strides))]
    return params


# ----------------------------------------------------------------------------
# Packing helpers for the lane-dense (rows = B*H, lanes = W*C) layout.  All
# spatial structure (3x3 taps, stride, avg-pool) is encoded in small exact
# selection / block-diagonal matrices so the kernel body is only dots + bias
# + leaky.
# ----------------------------------------------------------------------------
def _pool_mats(H, W, C, s):
    # AvgPool2d(s): out = P_H @ X @ P_W  with 1/s entries (exact 1/s^2 mean).
    oh_n, ow_n = H // s, W // s
    ph = np.zeros((oh_n, H), np.float32)
    for oh in range(oh_n):
        ph[oh, s * oh:s * oh + s] = 1.0 / s
    sw = np.zeros((W, ow_n), np.float32)
    for ow in range(ow_n):
        sw[s * ow:s * ow + s, ow] = 1.0 / s
    pw = np.kron(sw, np.eye(C, dtype=np.float32))
    return jnp.asarray(ph), jnp.asarray(pw)


def _conv3x3_mats(w_hwio, H, W, s):
    # 3x3 conv (pad=1, stride s) in (H, W*C) layout:
    #   out = sum_{di in 0..2} A[di] @ X @ C[di]
    # A[di]: (OH, H) row-selection (zero rows for padding),
    # C[di]: (W*Cin, OW*Cout) = sum_dj kron(col-selection(dj), W[di, dj]).
    cin, cout = int(w_hwio.shape[2]), int(w_hwio.shape[3])
    oh_n = (H - 1) // s + 1
    ow_n = (W - 1) // s + 1
    A_list, C_list = [], []
    for di in range(3):
        a = np.zeros((oh_n, H), np.float32)
        for oh in range(oh_n):
            h = s * oh + di - 1
            if 0 <= h < H:
                a[oh, h] = 1.0
        A_list.append(jnp.asarray(a))
        c = jnp.zeros((W * cin, ow_n * cout), jnp.float32)
        for dj in range(3):
            sel = np.zeros((W, ow_n), np.float32)
            for ow in range(ow_n):
                w = s * ow + dj - 1
                if 0 <= w < W:
                    sel[w, ow] = 1.0
            c = c + jnp.kron(jnp.asarray(sel), w_hwio[di, dj])
        C_list.append(c)
    return A_list, C_list, oh_n, ow_n


def pack_stem(base, H, W, B, compute_dtype):
    """Pack folded params into kernel operands (B images stacked along rows)."""
    hidden, c0, s = base["hidden"], base["c0"], base["stride"]
    in_ch = int(base["transition"]["w"].shape[1])
    out_ch = int(base["trans"]["w"].shape[1])
    c1 = in_ch - c0
    flops = [0]

    def reg(m, k, n):  # 2*M*K*N per dot, for the CostEstimate
        flops[0] += 2 * m * k * n

    def cast(a):
        return a.astype(compute_dtype)

    def bd(w, w_sp):  # 1x1 conv -> block-diagonal weight for (., W*C) slabs
        return cast(jnp.kron(jnp.eye(w_sp, dtype=jnp.float32), w))

    def tb(bvec, w_sp):  # tiled bias row, stays f32
        return jnp.tile(bvec, w_sp).reshape(1, -1)

    def batch_rows(m):  # block-diagonal over the B images stacked along rows
        return cast(jnp.kron(jnp.eye(B, dtype=jnp.float32), m))

    M0 = B * H
    ops = {}

    # --- transition: ONE full-width 1x1 conv (no t0/t1 split) ---------------
    ops["t_w"] = bd(base["transition"]["w"], W)
    ops["t_b"] = tb(base["transition"]["bias"], W)
    reg(M0, W * hidden, W * in_ch)

    # --- fused consumers of the transition output (shared LHS, one dot) -----
    #   [trans_part0 pre-pool | block0.conv1 | block0.shortcut(conv or id)]
    # with the x0/x1 channel split folded into zero-padded K rows.
    b0p = base["blocks"][0]
    s0 = b0p["stride"]
    cout0 = int(b0p["conv1"]["w"].shape[1])

    def pad_rows(w_small, row0):
        full = jnp.zeros((in_ch, int(w_small.shape[1])), jnp.float32)
        return full.at[row0:row0 + int(w_small.shape[0]), :].set(w_small)

    if "shortcut" in b0p:
        w_sc, b_sc = b0p["shortcut"]["w"], b0p["shortcut"]["bias"]
    else:  # identity shortcut on x1 (c1 == cout0): exact 0/1 selection
        w_sc = jnp.eye(c1, dtype=jnp.float32)
        b_sc = jnp.zeros((c1,), jnp.float32)
    fused_ws = [pad_rows(base["trans_part0"]["w"], 0),
                pad_rows(b0p["conv1"]["w"], c0),
                pad_rows(w_sc, c0)]
    fused_bs = [base["trans_part0"]["bias"], b0p["conv1"]["bias"], b_sc]
    ops["fc_w"] = cast(jnp.concatenate(
        [jnp.kron(jnp.eye(W, dtype=jnp.float32), w) for w in fused_ws], axis=1))
    ops["fc_b"] = jnp.concatenate([tb(bv, W) for bv in fused_bs], axis=1)
    seg = tuple(W * int(w.shape[1]) for w in fused_ws)
    reg(M0, W * in_ch, sum(seg))

    # --- residual block 0 (grouped 3x3 + 1x1 + shortcut pool) ---------------
    A0, C0, OH0, OW0 = _conv3x3_mats(b0p["conv2"]["w"], H, W, s0)
    blk0 = dict(
        A=cast(jnp.stack([jnp.kron(jnp.eye(B, dtype=jnp.float32), a) for a in A0])),
        C=cast(jnp.stack(C0)),
        c2_b=tb(b0p["conv2"]["bias"], OW0),
        c3_w=bd(b0p["conv3"]["w"], OW0),
        c3_b=tb(b0p["conv3"]["bias"], OW0))
    M1 = B * OH0
    for _ in range(3):
        reg(M1, M0, W * cout0); reg(M1, W * cout0, OW0 * cout0)
    reg(M1, OW0 * cout0, OW0 * cout0)
    if s0 != 1:
        ph, pw = _pool_mats(H, W, cout0, s0)
        blk0["ph"] = batch_rows(ph)
        blk0["pw"] = cast(pw)
        reg(M1, M0, W * cout0); reg(M1, W * cout0, OW0 * cout0)
    ops["b0"] = blk0
    cur_h, cur_w = OH0, OW0

    # --- remaining residual blocks ------------------------------------------
    later, later_cfg = [], []
    for bp in base["blocks"][1:]:
        bs = bp["stride"]
        cinb = int(bp["conv1"]["w"].shape[0])
        coutb = int(bp["conv1"]["w"].shape[1])
        A, C, oh_n, ow_n = _conv3x3_mats(bp["conv2"]["w"], cur_h, cur_w, bs)
        d = dict(
            c1_w=bd(bp["conv1"]["w"], cur_w), c1_b=tb(bp["conv1"]["bias"], cur_w),
            A=cast(jnp.stack([jnp.kron(jnp.eye(B, dtype=jnp.float32), a) for a in A])),
            C=cast(jnp.stack(C)),
            c2_b=tb(bp["conv2"]["bias"], ow_n),
            c3_w=bd(bp["conv3"]["w"], ow_n), c3_b=tb(bp["conv3"]["bias"], ow_n))
        mc, mo = B * cur_h, B * oh_n
        reg(mc, cur_w * cinb, cur_w * coutb)
        for _ in range(3):
            reg(mo, mc, cur_w * coutb); reg(mo, cur_w * coutb, ow_n * coutb)
        reg(mo, ow_n * coutb, ow_n * coutb)
        if "shortcut" in bp:
            d["sc_w"] = bd(bp["shortcut"]["w"], cur_w)
            d["sc_b"] = tb(bp["shortcut"]["bias"], cur_w)
            reg(mc, cur_w * cinb, cur_w * coutb)
        if bs != 1:
            ph, pw = _pool_mats(cur_h, cur_w, coutb, bs)
            d["ph"] = batch_rows(ph)
            d["pw"] = cast(pw)
            reg(mo, mc, cur_w * coutb); reg(mo, cur_w * coutb, ow_n * coutb)
        later.append(d)
        later_cfg.append(dict(stride=bs, has_sc="shortcut" in bp))
        cur_h, cur_w = oh_n, ow_n
    ops["later"] = later

    # --- trans_part0 AvgPool with the final `trans` left half folded in -----
    assert H // s == cur_h and W // s == cur_w, "out0 / block-path spatial mismatch"
    ph0, pw0 = _pool_mats(H, W, hidden, s)
    tr_w, tr_b = base["trans"]["w"], base["trans"]["bias"]
    tr0 = jnp.kron(jnp.eye(cur_w, dtype=jnp.float32), tr_w[:hidden, :])
    ops["p0_ph"] = batch_rows(ph0)
    ops["p0_pwtr"] = cast(pw0 @ tr0)          # pool-cols x trans(left) folded
    Mf = B * cur_h
    reg(Mf, M0, W * hidden); reg(Mf, W * hidden, cur_w * out_ch)

    # --- trans_part1 + right half of the final trans ------------------------
    ops["tp1_w"] = bd(base["trans_part1"]["w"], cur_w)
    ops["tp1_b"] = tb(base["trans_part1"]["bias"], cur_w)
    ops["tr1_w"] = bd(tr_w[hidden:, :], cur_w)
    ops["tr_b"] = tb(tr_b, cur_w)
    reg(Mf, cur_w * hidden, cur_w * hidden)
    reg(Mf, cur_w * hidden, cur_w * out_ch)

    static = dict(OH=cur_h, OW=cur_w, fused_seg=seg,
                  block0=dict(stride=s0), later=later_cfg,
                  flops_per_step=int(flops[0]))
    return ops, static


# ----------------------------------------------------------------------------
# The fused Pallas kernel: one grid step == B images == the whole stem.
# ----------------------------------------------------------------------------
def _make_fused_kernel(treedef, cfg, compute_dtype):
    seg0, seg1 = cfg["fused_seg"][0], cfg["fused_seg"][1]
    stride0 = cfg["block0"]["stride"]
    later_cfg = cfg["later"]

    def kernel(x_ref, *refs):
        o_ref = refs[-1]
        p = jax.tree_util.tree_unflatten(treedef, refs[:-1])

        def mm(a, b):  # bf16 MXU operands, f32 accumulate
            return jnp.dot(a.astype(compute_dtype), b.astype(compute_dtype),
                           preferred_element_type=jnp.float32)

        def conv3x3(hin, A_ref, C_ref, b_ref):
            # accumulator seeded from the first tap (review item #10)
            acc = mm(mm(A_ref[0], hin), C_ref[0]) + b_ref[...]
            for di in (1, 2):
                acc = acc + mm(mm(A_ref[di], hin), C_ref[di])
            return _leaky(acc)

        def pool(hin, ph_ref, pw_ref):
            return mm(mm(ph_ref[...], hin), pw_ref[...])

        x = x_ref[...]                                   # (B*H, W*Cin) lane-dense
        # transition: one full-width matmul (channel split folded downstream)
        xf = _leaky(mm(x, p["t_w"][...]) + p["t_b"][...])

        # fused consumers sharing xf as LHS: one dot, then lane-split
        yf = mm(xf, p["fc_w"][...]) + p["fc_b"][...]
        y_tp0 = _leaky(yf[:, :seg0])                     # trans_part0 pre-pool
        y_c1 = _leaky(yf[:, seg0:seg0 + seg1])           # block0 conv1
        y_sc = yf[:, seg0 + seg1:]                       # block0 shortcut (no leaky)

        # out0 path: AvgPool; final `trans` left half is folded into p0_pwtr
        out0c = mm(mm(p["p0_ph"][...], y_tp0), p["p0_pwtr"][...])

        # residual block 0 (conv1 & shortcut conv already computed above)
        b0 = p["b0"]
        h = conv3x3(y_c1, b0["A"], b0["C"], b0["c2_b"])  # grouped 3x3 + BN + leaky
        h = mm(h, b0["c3_w"][...]) + b0["c3_b"][...]     # 1x1 conv + BN
        sc = y_sc
        if stride0 != 1:
            sc = pool(sc, b0["ph"], b0["pw"])            # AvgPool on the shortcut
        h = _leaky(h + sc)

        # remaining residual blocks
        for bd, bcfg in zip(p["later"], later_cfg):
            r = h
            h = _leaky(mm(h, bd["c1_w"][...]) + bd["c1_b"][...])
            h = conv3x3(h, bd["A"], bd["C"], bd["c2_b"])
            h = mm(h, bd["c3_w"][...]) + bd["c3_b"][...]
            sc = r
            if bcfg["has_sc"]:
                sc = mm(sc, bd["sc_w"][...]) + bd["sc_b"][...]
            if bcfg["stride"] != 1:
                sc = pool(sc, bd["ph"], bd["pw"])
            h = _leaky(h + sc)

        # trans_part1, then the final trans (concat folded into split weights;
        # the out0 contribution already lives in out0c)
        out1 = _leaky(mm(h, p["tp1_w"][...]) + p["tp1_b"][...])
        y = out0c + mm(out1, p["tr1_w"][...]) + p["tr_b"][...]
        o_ref[...] = _leaky(y).astype(o_ref.dtype)       # (B*OH, OW*Cout)

    return kernel


def _const_index_map(ndim):
    return lambda n: (0,) * ndim


def build_stem_fn(base, N, H, W, *, images_per_step=None,
                  compute_dtype=jnp.bfloat16, single_buffer_weights=True):
    cin = int(base["transition"]["w"].shape[0])
    cout = int(base["trans"]["w"].shape[1])
    if images_per_step is None:
        images_per_step = min(N, 8)   # whole (small) batch per grid step
    B = images_per_step
    assert N % B == 0 and (B * H) % 8 == 0, (N, B, H)
    G = N // B

    ops, static = pack_stem(base, H, W, B, compute_dtype)
    leaves, treedef = jax.tree_util.tree_flatten(ops)
    OH, OW = static["OH"], static["OW"]
    kernel = _make_fused_kernel(treedef, static, compute_dtype)

    # constant operands: block index never changes -> single buffer (review #1)
    wkw = dict(pipeline_mode=pl.Buffered(1)) if single_buffer_weights else {}
    in_specs = [pl.BlockSpec((B * H, W * cin), lambda n: (n, 0))]
    in_specs += [pl.BlockSpec(l.shape, _const_index_map(l.ndim), **wkw)
                 for l in leaves]

    x_bytes = N * H * W * cin * jnp.dtype(compute_dtype).itemsize
    out_bytes = N * OH * OW * cout * 4
    w_bytes = sum(int(np.prod(l.shape)) * l.dtype.itemsize for l in leaves)
    cost = pl.CostEstimate(flops=int(static["flops_per_step"]) * G,
                           transcendentals=0,
                           bytes_accessed=int(x_bytes + out_bytes + w_bytes))

    call = pl.pallas_call(
        kernel,
        out_shape=jax.ShapeDtypeStruct((N * OH, OW * cout), jnp.float32),
        grid=(G,),
        in_specs=in_specs,
        out_specs=pl.BlockSpec((B * OH, OW * cout), lambda n: (n, 0)),
        compiler_params=pltpu.CompilerParams(
            dimension_semantics=("parallel",)),
        cost_estimate=cost,
    )

    @jax.jit
    def fwd(x_nchw):
        # NCHW -> rows-stacked lane-dense slab (N*H, W*C); one transpose each way
        x = jnp.transpose(x_nchw, (0, 2, 3, 1)).reshape(N * H, W * cin)
        y = call(x.astype(compute_dtype), *leaves)
        y = y.reshape(N, OH, OW, cout)
        return jnp.transpose(y, (0, 3, 1, 2))            # NHWC -> NCHW

    return fwd, static


# ----------------------------------------------------------------------------
# Pure-JAX reference (independent of the packing), for correctness checking.
# ----------------------------------------------------------------------------
def ref_forward(x_nchw, base):
    P = lax.Precision.HIGHEST
    x = jnp.transpose(x_nchw, (0, 2, 3, 1))  # NHWC

    def conv1x1(h, layer, leaky):
        y = jnp.einsum("nhwc,cd->nhwd", h, layer["w"], precision=P) + layer["bias"]
        return _leaky(y) if leaky else y

    def conv3x3(h, layer, stride):
        y = lax.conv_general_dilated(
            h, layer["w"], window_strides=(stride, stride),
            padding=((1, 1), (1, 1)),
            dimension_numbers=("NHWC", "HWIO", "NHWC"), precision=P)
        return _leaky(y + layer["bias"])

    def avg_pool(h, s):
        n, hh, ww, c = h.shape
        return h.reshape(n, hh // s, s, ww // s, s, c).mean(axis=(2, 4))

    c0, s = base["c0"], base["stride"]
    x = conv1x1(x, base["transition"], True)
    x0, x1 = x[..., :c0], x[..., c0:]
    out0 = avg_pool(conv1x1(x0, base["trans_part0"], True), s)
    h = x1
    for bp in base["blocks"]:
        r = h
        h = conv1x1(h, bp["conv1"], True)
        h = conv3x3(h, bp["conv2"], bp["stride"])
        h = conv1x1(h, bp["conv3"], False)
        sc = r
        if "shortcut" in bp:
            sc = conv1x1(sc, bp["shortcut"], False)
        if bp["stride"] != 1:
            sc = avg_pool(sc, bp["stride"])
        h = _leaky(h + sc)
    out1 = conv1x1(h, base["trans_part1"], True)
    out = jnp.concatenate([out0, out1], axis=-1)
    out = conv1x1(out, base["trans"], True)
    return jnp.transpose(out, (0, 3, 1, 2))


if __name__ == "__main__":
    in_channels, num_blocks, cardinality, group_with, stride = 8, 2, 2, 4, 2
    hidden = cardinality * group_with  # Stem.forward expects hidden_channels input
    N, H, W = 2, 16, 16

    key = jax.random.PRNGKey(0)
    pkey, xkey = jax.random.split(key)
    base = init_stem(pkey, in_channels, num_blocks, cardinality, group_with, stride)
    x = jax.random.normal(xkey, (N, hidden, H, W), jnp.float32)  # NCHW

    def run(single_buffer):
        f, _ = build_stem_fn(base, N, H, W, single_buffer_weights=single_buffer)
        return jax.block_until_ready(f(x))

    try:
        out = run(True)
    except Exception:
        # Fallback if this JAX build rejects single-buffered weight BlockSpecs.
        out = run(False)

    assert out.shape == (N, 2 * hidden, H // stride, W // stride), out.shape
    assert bool(jnp.all(jnp.isfinite(out)))

    ref = jax.block_until_ready(jax.jit(lambda v: ref_forward(v, base))(x))
    max_err = float(jnp.max(jnp.abs(out - ref)))
    scale = float(jnp.max(jnp.abs(ref)))
    tol = 5e-2 * max(1.0, scale)  # bf16 MXU operands vs f32 HIGHEST reference
    assert max_err < tol, f"mismatch vs reference: {max_err} (tol {tol})"
    print("KERNEL_OK")
</pallas_src>

<mosaic_0001>
module attributes {stable_mosaic.version = 11 : i64} {
  func.func @kernel(%arg0: i32, %arg1: memref<32x128xbf16, #tpu.memory_space<vmem>>, %arg2: memref<3x16x32xbf16, #tpu.memory_space<vmem>>, %arg3: memref<3x128x64xbf16, #tpu.memory_space<vmem>>, %arg4: memref<1x64xf32, #tpu.memory_space<vmem>>, %arg5: memref<1x64xf32, #tpu.memory_space<vmem>>, %arg6: memref<64x64xbf16, #tpu.memory_space<vmem>>, %arg7: memref<16x32xbf16, #tpu.memory_space<vmem>>, %arg8: memref<128x64xbf16, #tpu.memory_space<vmem>>, %arg9: memref<1x384xf32, #tpu.memory_space<vmem>>, %arg10: memref<128x384xbf16, #tpu.memory_space<vmem>>, %arg11: memref<3x16x16xbf16, #tpu.memory_space<vmem>>, %arg12: memref<3x64x64xbf16, #tpu.memory_space<vmem>>, %arg13: memref<1x64xf32, #tpu.memory_space<vmem>>, %arg14: memref<64x64xbf16, #tpu.memory_space<vmem>>, %arg15: memref<1x64xf32, #tpu.memory_space<vmem>>, %arg16: memref<1x64xf32, #tpu.memory_space<vmem>>, %arg17: memref<64x64xbf16, #tpu.memory_space<vmem>>, %arg18: memref<16x32xbf16, #tpu.memory_space<vmem>>, %arg19: memref<128x128xbf16, #tpu.memory_space<vmem>>, %arg20: memref<1x128xf32, #tpu.memory_space<vmem>>, %arg21: memref<128x128xbf16, #tpu.memory_space<vmem>>, %arg22: memref<1x64xf32, #tpu.memory_space<vmem>>, %arg23: memref<64x64xbf16, #tpu.memory_space<vmem>>, %arg24: memref<64x128xbf16, #tpu.memory_space<vmem>>, %arg25: memref<1x128xf32, #tpu.memory_space<vmem>>, %arg26: memref<16x128xf32, #tpu.memory_space<vmem>>) attributes {dimension_semantics = [#tpu.dimension_semantics<parallel>], iteration_bounds = array<i64: 1>, scalar_prefetch = 0 : i64, scratch_operands = 0 : i64, tpu.core_type = #tpu.core_type<tc>, window_params = [{transform_indices = @transform_0, window_bounds = array<i64: 32, 128>}, {pipeline_mode = #tpu.pipeline_mode<synchronous>, transform_indices = @transform_1, window_bounds = array<i64: 3, 16, 32>}, {pipeline_mode = #tpu.pipeline_mode<synchronous>, transform_indices = @transform_2, window_bounds = array<i64: 3, 128, 64>}, {pipeline_mode = #tpu.pipeline_mode<synchronous>, transform_indices = @transform_3, window_bounds = array<i64: 1, 64>}, {pipeline_mode = #tpu.pipeline_mode<synchronous>, transform_indices = @transform_4, window_bounds = array<i64: 1, 64>}, {pipeline_mode = #tpu.pipeline_mode<synchronous>, transform_indices = @transform_5, window_bounds = array<i64: 64, 64>}, {pipeline_mode = #tpu.pipeline_mode<synchronous>, transform_indices = @transform_6, window_bounds = array<i64: 16, 32>}, {pipeline_mode = #tpu.pipeline_mode<synchronous>, transform_indices = @transform_7, window_bounds = array<i64: 128, 64>}, {pipeline_mode = #tpu.pipeline_mode<synchronous>, transform_indices = @transform_8, window_bounds = array<i64: 1, 384>}, {pipeline_mode = #tpu.pipeline_mode<synchronous>, transform_indices = @transform_9, window_bounds = array<i64: 128, 384>}, {pipeline_mode = #tpu.pipeline_mode<synchronous>, transform_indices = @transform_10, window_bounds = array<i64: 3, 16, 16>}, {pipeline_mode = #tpu.pipeline_mode<synchronous>, transform_indices = @transform_11, window_bounds = array<i64: 3, 64, 64>}, {pipeline_mode = #tpu.pipeline_mode<synchronous>, transform_indices = @transform_12, window_bounds = array<i64: 1, 64>}, {pipeline_mode = #tpu.pipeline_mode<synchronous>, transform_indices = @transform_13, window_bounds = array<i64: 64, 64>}, {pipeline_mode = #tpu.pipeline_mode<synchronous>, transform_indices = @transform_14, window_bounds = array<i64: 1, 64>}, {pipeline_mode = #tpu.pipeline_mode<synchronous>, transform_indices = @transform_15, window_bounds = array<i64: 1, 64>}, {pipeline_mode = #tpu.pipeline_mode<synchronous>, transform_indices = @transform_16, window_bounds = array<i64: 64, 64>}, {pipeline_mode = #tpu.pipeline_mode<synchronous>, transform_indices = @transform_17, window_bounds = array<i64: 16, 32>}, {pipeline_mode = #tpu.pipeline_mode<synchronous>, transform_indices = @transform_18, window_bounds = array<i64: 128, 128>}, {pipeline_mode = #tpu.pipeline_mode<synchronous>, transform_indices = @transform_19, window_bounds = array<i64: 1, 128>}, {pipeline_mode = #tpu.pipeline_mode<synchronous>, transform_indices = @transform_20, window_bounds = array<i64: 128, 128>}, {pipeline_mode = #tpu.pipeline_mode<synchronous>, transform_indices = @transform_21, window_bounds = array<i64: 1, 64>}, {pipeline_mode = #tpu.pipeline_mode<synchronous>, transform_indices = @transform_22, window_bounds = array<i64: 64, 64>}, {pipeline_mode = #tpu.pipeline_mode<synchronous>, transform_indices = @transform_23, window_bounds = array<i64: 64, 128>}, {pipeline_mode = #tpu.pipeline_mode<synchronous>, transform_indices = @transform_24, window_bounds = array<i64: 1, 128>}, {transform_indices = @transform_25, window_bounds = array<i64: 16, 128>}]} {
    %c0 = arith.constant 0 : index
    %c0_0 = arith.constant 0 : index
    %0 = vector.load %arg1[%c0, %c0_0] : memref<32x128xbf16, #tpu.memory_space<vmem>>, vector<32x128xbf16>
    %c0_1 = arith.constant 0 : index
    %c0_2 = arith.constant 0 : index
    %1 = vector.load %arg21[%c0_1, %c0_2] : memref<128x128xbf16, #tpu.memory_space<vmem>>, vector<128x128xbf16>
    %cst = arith.constant dense<0.000000e+00> : vector<32x128xf32>
    %2 = tpu.matmul %0, %1, %cst {dimension_numbers = #tpu.dot_dimension_numbers<[1], [0], [0], [1], [0, 0, 1, 1], [], []>} : vector<32x128xbf16>, vector<128x128xbf16>, vector<32x128xf32> -> vector<32x128xf32>
    %c0_3 = arith.constant 0 : index
    %c0_4 = arith.constant 0 : index
    %3 = vector.load %arg20[%c0_3, %c0_4] : memref<1x128xf32, #tpu.memory_space<vmem>>, vector<1x128xf32>
    %4 = vector.broadcast %3 : vector<1x128xf32> to vector<32x128xf32>
    %5 = arith.addf %2, %4 : vector<32x128xf32>
    %cst_5 = arith.constant 0.000000e+00 : f32
    %6 = vector.broadcast %cst_5 : f32 to vector<32x128xf32>
    %7 = arith.cmpf oge, %5, %6 : vector<32x128xf32>
    %cst_6 = arith.constant 0.00999999977 : f32
    %8 = vector.broadcast %cst_6 : f32 to vector<32x128xf32>
    %9 = arith.mulf %8, %5 : vector<32x128xf32>
    %10 = arith.select %7, %5, %9 : vector<32x128xi1>, vector<32x128xf32>
    %c0_7 = arith.constant 0 : index
    %c0_8 = arith.constant 0 : index
    %11 = vector.load %arg10[%c0_7, %c0_8] : memref<128x384xbf16, #tpu.memory_space<vmem>>, vector<128x384xbf16>
    %12 = arith.truncf %10 : vector<32x128xf32> to vector<32x128xbf16>
    %cst_9 = arith.constant dense<0.000000e+00> : vector<32x384xf32>
    %13 = tpu.matmul %12, %11, %cst_9 {dimension_numbers = #tpu.dot_dimension_numbers<[1], [0], [0], [1], [0, 0, 1, 1], [], []>} : vector<32x128xbf16>, vector<128x384xbf16>, vector<32x384xf32> -> vector<32x384xf32>
    %c0_10 = arith.constant 0 : index
    %c0_11 = arith.constant 0 : index
    %14 = vector.load %arg9[%c0_10, %c0_11] : memref<1x384xf32, #tpu.memory_space<vmem>>, vector<1x384xf32>
    %15 = vector.broadcast %14 : vector<1x384xf32> to vector<32x384xf32>
    %16 = arith.addf %13, %15 : vector<32x384xf32>
    %17 = vector.extract_strided_slice %16 {offsets = [0, 0], sizes = [32, 128], strides = [1, 1]} : vector<32x384xf32> to vector<32x128xf32>
    %cst_12 = arith.constant 0.000000e+00 : f32
    %18 = vector.broadcast %cst_12 : f32 to vector<32x128xf32>
    %19 = arith.cmpf oge, %17, %18 : vector<32x128xf32>
    %cst_13 = arith.constant 0.00999999977 : f32
    %20 = vector.broadcast %cst_13 : f32 to vector<32x128xf32>
    %21 = arith.mulf %20, %17 : vector<32x128xf32>
    %22 = arith.select %19, %17, %21 : vector<32x128xi1>, vector<32x128xf32>
    %23 = vector.extract_strided_slice %16 {offsets = [0, 128], sizes = [32, 128], strides = [1, 1]} : vector<32x384xf32> to vector<32x128xf32>
    %cst_14 = arith.constant 0.000000e+00 : f32
    %24 = vector.broadcast %cst_14 : f32 to vector<32x128xf32>
    %25 = arith.cmpf oge, %23, %24 : vector<32x128xf32>
    %cst_15 = arith.constant 0.00999999977 : f32
    %26 = vector.broadcast %cst_15 : f32 to vector<32x128xf32>
    %27 = arith.mulf %26, %23 : vector<32x128xf32>
    %28 = arith.select %25, %23, %27 : vector<32x128xi1>, vector<32x128xf32>
    %29 = vector.extract_strided_slice %16 {offsets = [0, 256], sizes = [32, 128], strides = [1, 1]} : vector<32x384xf32> to vector<32x128xf32>
    %c0_16 = arith.constant 0 : index
    %c0_17 = arith.constant 0 : index
    %30 = vector.load %arg18[%c0_16, %c0_17] : memref<16x32xbf16, #tpu.memory_space<vmem>>, vector<16x32xbf16>
    %31 = arith.truncf %22 : vector<32x128xf32> to vector<32x128xbf16>
    %cst_18 = arith.constant dense<0.000000e+00> : vector<16x128xf32>
    %32 = tpu.matmul %30, %31, %cst_18 {dimension_numbers = #tpu.dot_dimension_numbers<[1], [0], [0], [1], [0, 0, 1, 1], [], []>} : vector<16x32xbf16>, vector<32x128xbf16>, vector<16x128xf32> -> vector<16x128xf32>
    %c0_19 = arith.constant 0 : index
    %c0_20 = arith.constant 0 : index
    %33 = vector.load %arg19[%c0_19, %c0_20] : memref<128x128xbf16, #tpu.memory_space<vmem>>, vector<128x128xbf16>
    %34 = arith.truncf %32 : vector<16x128xf32> to vector<16x128xbf16>
    %cst_21 = arith.constant dense<0.000000e+00> : vector<16x128xf32>
    %35 = tpu.matmul %34, %33, %cst_21 {dimension_numbers = #tpu.dot_dimension_numbers<[1], [0], [0], [1], [0, 0, 1, 1], [], []>} : vector<16x128xbf16>, vector<128x128xbf16>, vector<16x128xf32> -> vector<16x128xf32>
    %c0_22 = arith.constant 0 : index
    %c0_23 = arith.constant 0 : index
    %c0_24 = arith.constant 0 : index
    %36 = vector.load %arg2[%c0_22, %c0_23, %c0_24] : memref<3x16x32xbf16, #tpu.memory_space<vmem>>, vector<1x16x32xbf16>
    %37 = vector.shape_cast %36 : vector<1x16x32xbf16> to vector<16x32xbf16>
    %38 = arith.truncf %28 : vector<32x128xf32> to vector<32x128xbf16>
    %cst_25 = arith.constant dense<0.000000e+00> : vector<16x128xf32>
    %39 = tpu.matmul %37, %38, %cst_25 {dimension_numbers = #tpu.dot_dimension_numbers<[1], [0], [0], [1], [0, 0, 1, 1], [], []>} : vector<16x32xbf16>, vector<32x128xbf16>, vector<16x128xf32> -> vector<16x128xf32>
    %c0_26 = arith.constant 0 : index
    %c0_27 = arith.constant 0 : index
    %c0_28 = arith.constant 0 : index
    %40 = vector.load %arg3[%c0_26, %c0_27, %c0_28] : memref<3x128x64xbf16, #tpu.memory_space<vmem>>, vector<1x128x64xbf16>
    %41 = vector.shape_cast %40 : vector<1x128x64xbf16> to vector<128x64xbf16>
    %42 = arith.truncf %39 : vector<16x128xf32> to vector<16x128xbf16>
    %cst_29 = arith.constant dense<0.000000e+00> : vector<16x64xf32>
    %43 = tpu.matmul %42, %41, %cst_29 {dimension_numbers = #tpu.dot_dimension_numbers<[1], [0], [0], [1], [0, 0, 1, 1], [], []>} : vector<16x128xbf16>, vector<128x64xbf16>, vector<16x64xf32> -> vector<16x64xf32>
    %c0_30 = arith.constant 0 : index
    %c0_31 = arith.constant 0 : index
    %44 = vector.load %arg4[%c0_30, %c0_31] : memref<1x64xf32, #tpu.memory_space<vmem>>, vector<1x64xf32>
    %45 = vector.broadcast %44 : vector<1x64xf32> to vector<16x64xf32>
    %46 = arith.addf %43, %45 : vector<16x64xf32>
    %c1 = arith.constant 1 : index
    %c0_32 = arith.constant 0 : index
    %c0_33 = arith.constant 0 : index
    %47 = vector.load %arg2[%c1, %c0_32, %c0_33] : memref<3x16x32xbf16, #tpu.memory_space<vmem>>, vector<1x16x32xbf16>
    %48 = vector.shape_cast %47 : vector<1x16x32xbf16> to vector<16x32xbf16>
    %49 = arith.truncf %28 : vector<32x128xf32> to vector<32x128xbf16>
    %cst_34 = arith.constant dense<0.000000e+00> : vector<16x128xf32>
    %50 = tpu.matmul %48, %49, %cst_34 {dimension_numbers = #tpu.dot_dimension_numbers<[1], [0], [0], [1], [0, 0, 1, 1], [], []>} : vector<16x32xbf16>, vector<32x128xbf16>, vector<16x128xf32> -> vector<16x128xf32>
    %c1_35 = arith.constant 1 : index
    %c0_36 = arith.constant 0 : index
    %c0_37 = arith.constant 0 : index
    %51 = vector.load %arg3[%c1_35, %c0_36, %c0_37] : memref<3x128x64xbf16, #tpu.memory_space<vmem>>, vector<1x128x64xbf16>
    %52 = vector.shape_cast %51 : vector<1x128x64xbf16> to vector<128x64xbf16>
    %53 = arith.truncf %50 : vector<16x128xf32> to vector<16x128xbf16>
    %cst_38 = arith.constant dense<0.000000e+00> : vector<16x64xf32>
    %54 = tpu.matmul %53, %52, %cst_38 {dimension_numbers = #tpu.dot_dimension_numbers<[1], [0], [0], [1], [0, 0, 1, 1], [], []>} : vector<16x128xbf16>, vector<128x64xbf16>, vector<16x64xf32> -> vector<16x64xf32>
    %55 = arith.addf %46, %54 : vector<16x64xf32>
    %c2 = arith.constant 2 : index
    %c0_39 = arith.constant 0 : index
    %c0_40 = arith.constant 0 : index
    %56 = vector.load %arg2[%c2, %c0_39, %c0_40] : memref<3x16x32xbf16, #tpu.memory_space<vmem>>, vector<1x16x32xbf16>
    %57 = vector.shape_cast %56 : vector<1x16x32xbf16> to vector<16x32xbf16>
    %58 = arith.truncf %28 : vector<32x128xf32> to vector<32x128xbf16>
    %cst_41 = arith.constant dense<0.000000e+00> : vector<16x128xf32>
    %59 = tpu.matmul %57, %58, %cst_41 {dimension_numbers = #tpu.dot_dimension_numbers<[1], [0], [0], [1], [0, 0, 1, 1], [], []>} : vector<16x32xbf16>, vector<32x128xbf16>, vector<16x128xf32> -> vector<16x128xf32>
    %c2_42 = arith.constant 2 : index
    %c0_43 = arith.constant 0 : index
    %c0_44 = arith.constant 0 : index
    %60 = vector.load %arg3[%c2_42, %c0_43, %c0_44] : memref<3x128x64xbf16, #tpu.memory_space<vmem>>, vector<1x128x64xbf16>
    %61 = vector.shape_cast %60 : vector<1x128x64xbf16> to vector<128x64xbf16>
    %62 = arith.truncf %59 : vector<16x128xf32> to vector<16x128xbf16>
    %cst_45 = arith.constant dense<0.000000e+00> : vector<16x64xf32>
    %63 = tpu.matmul %62, %61, %cst_45 {dimension_numbers = #tpu.dot_dimension_numbers<[1], [0], [0], [1], [0, 0, 1, 1], [], []>} : vector<16x128xbf16>, vector<128x64xbf16>, vector<16x64xf32> -> vector<16x64xf32>
    %64 = arith.addf %55, %63 : vector<16x64xf32>
    %cst_46 = arith.constant 0.000000e+00 : f32
    %65 = vector.broadcast %cst_46 : f32 to vector<16x64xf32>
    %66 = arith.cmpf oge, %64, %65 : vector<16x64xf32>
    %cst_47 = arith.constant 0.00999999977 : f32
    %67 = vector.broadcast %cst_47 : f32 to vector<16x64xf32>
    %68 = arith.mulf %67, %64 : vector<16x64xf32>
    %69 = arith.select %66, %64, %68 : vector<16x64xi1>, vector<16x64xf32>
    %c0_48 = arith.constant 0 : index
    %c0_49 = arith.constant 0 : index
    %70 = vector.load %arg6[%c0_48, %c0_49] : memref<64x64xbf16, #tpu.memory_space<vmem>>, vector<64x64xbf16>
    %71 = arith.truncf %69 : vector<16x64xf32> to vector<16x64xbf16>
    %cst_50 = arith.constant dense<0.000000e+00> : vector<16x64xf32>
    %72 = tpu.matmul %71, %70, %cst_50 {dimension_numbers = #tpu.dot_dimension_numbers<[1], [0], [0], [1], [0, 0, 1, 1], [], []>} : vector<16x64xbf16>, vector<64x64xbf16>, vector<16x64xf32> -> vector<16x64xf32>
    %c0_51 = arith.constant 0 : index
    %c0_52 = arith.constant 0 : index
    %73 = vector.load %arg5[%c0_51, %c0_52] : memref<1x64xf32, #tpu.memory_space<vmem>>, vector<1x64xf32>
    %74 = vector.broadcast %73 : vector<1x64xf32> to vector<16x64xf32>
    %75 = arith.addf %72, %74 : vector<16x64xf32>
    %c0_53 = arith.constant 0 : index
    %c0_54 = arith.constant 0 : index
    %76 = vector.load %arg7[%c0_53, %c0_54] : memref<16x32xbf16, #tpu.memory_space<vmem>>, vector<16x32xbf16>
    %77 = arith.truncf %29 : vector<32x128xf32> to vector<32x128xbf16>
    %cst_55 = arith.constant dense<0.000000e+00> : vector<16x128xf32>
    %78 = tpu.matmul %76, %77, %cst_55 {dimension_numbers = #tpu.dot_dimension_numbers<[1], [0], [0], [1], [0, 0, 1, 1], [], []>} : vector<16x32xbf16>, vector<32x128xbf16>, vector<16x128xf32> -> vector<16x128xf32>
    %c0_56 = arith.constant 0 : index
    %c0_57 = arith.constant 0 : index
    %79 = vector.load %arg8[%c0_56, %c0_57] : memref<128x64xbf16, #tpu.memory_space<vmem>>, vector<128x64xbf16>
    %80 = arith.truncf %78 : vector<16x128xf32> to vector<16x128xbf16>
    %cst_58 = arith.constant dense<0.000000e+00> : vector<16x64xf32>
    %81 = tpu.matmul %80, %79, %cst_58 {dimension_numbers = #tpu.dot_dimension_numbers<[1], [0], [0], [1], [0, 0, 1, 1], [], []>} : vector<16x128xbf16>, vector<128x64xbf16>, vector<16x64xf32> -> vector<16x64xf32>
    %82 = arith.addf %75, %81 : vector<16x64xf32>
    %cst_59 = arith.constant 0.000000e+00 : f32
    %83 = vector.broadcast %cst_59 : f32 to vector<16x64xf32>
    %84 = arith.cmpf oge, %82, %83 : vector<16x64xf32>
    %cst_60 = arith.constant 0.00999999977 : f32
    %85 = vector.broadcast %cst_60 : f32 to vector<16x64xf32>
    %86 = arith.mulf %85, %82 : vector<16x64xf32>
    %87 = arith.select %84, %82, %86 : vector<16x64xi1>, vector<16x64xf32>
    %c0_61 = arith.constant 0 : index
    %c0_62 = arith.constant 0 : index
    %88 = vector.load %arg14[%c0_61, %c0_62] : memref<64x64xbf16, #tpu.memory_space<vmem>>, vector<64x64xbf16>
    %89 = arith.truncf %87 : vector<16x64xf32> to vector<16x64xbf16>
    %cst_63 = arith.constant dense<0.000000e+00> : vector<16x64xf32>
    %90 = tpu.matmul %89, %88, %cst_63 {dimension_numbers = #tpu.dot_dimension_numbers<[1], [0], [0], [1], [0, 0, 1, 1], [], []>} : vector<16x64xbf16>, vector<64x64xbf16>, vector<16x64xf32> -> vector<16x64xf32>
    %c0_64 = arith.constant 0 : index
    %c0_65 = arith.constant 0 : index
    %91 = vector.load %arg13[%c0_64, %c0_65] : memref<1x64xf32, #tpu.memory_space<vmem>>, vector<1x64xf32>
    %92 = vector.broadcast %91 : vector<1x64xf32> to vector<16x64xf32>
    %93 = arith.addf %90, %92 : vector<16x64xf32>
    %cst_66 = arith.constant 0.000000e+00 : f32
    %94 = vector.broadcast %cst_66 : f32 to vector<16x64xf32>
    %95 = arith.cmpf oge, %93, %94 : vector<16x64xf32>
    %cst_67 = arith.constant 0.00999999977 : f32
    %96 = vector.broadcast %cst_67 : f32 to vector<16x64xf32>
    %97 = arith.mulf %96, %93 : vector<16x64xf32>
    %98 = arith.select %95, %93, %97 : vector<16x64xi1>, vector<16x64xf32>
    %c0_68 = arith.constant 0 : index
    %c0_69 = arith.constant 0 : index
    %c0_70 = arith.constant 0 : index
    %99 = vector.load %arg11[%c0_68, %c0_69, %c0_70] : memref<3x16x16xbf16, #tpu.memory_space<vmem>>, vector<1x16x16xbf16>
    %100 = vector.shape_cast %99 : vector<1x16x16xbf16> to vector<16x16xbf16>
    %101 = arith.truncf %98 : vector<16x64xf32> to vector<16x64xbf16>
    %cst_71 = arith.constant dense<0.000000e+00> : vector<16x64xf32>
    %102 = tpu.matmul %100, %101, %cst_71 {dimension_numbers = #tpu.dot_dimension_numbers<[1], [0], [0], [1], [0, 0, 1, 1], [], []>} : vector<16x16xbf16>, vector<16x64xbf16>, vector<16x64xf32> -> vector<16x64xf32>
    %c0_72 = arith.constant 0 : index
    %c0_73 = arith.constant 0 : index
    %c0_74 = arith.constant 0 : index
    %103 = vector.load %arg12[%c0_72, %c0_73, %c0_74] : memref<3x64x64xbf16, #tpu.memory_space<vmem>>, vector<1x64x64xbf16>
    %104 = vector.shape_cast %103 : vector<1x64x64xbf16> to vector<64x64xbf16>
    %105 = arith.truncf %102 : vector<16x64xf32> to vector<16x64xbf16>
    %cst_75 = arith.constant dense<0.000000e+00> : vector<16x64xf32>
    %106 = tpu.matmul %105, %104, %cst_75 {dimension_numbers = #tpu.dot_dimension_numbers<[1], [0], [0], [1], [0, 0, 1, 1], [], []>} : vector<16x64xbf16>, vector<64x64xbf16>, vector<16x64xf32> -> vector<16x64xf32>
    %c0_76 = arith.constant 0 : index
    %c0_77 = arith.constant 0 : index
    %107 = vector.load %arg15[%c0_76, %c0_77] : memref<1x64xf32, #tpu.memory_space<vmem>>, vector<1x64xf32>
    %108 = vector.broadcast %107 : vector<1x64xf32> to vector<16x64xf32>
    %109 = arith.addf %106, %108 : vector<16x64xf32>
    %c1_78 = arith.constant 1 : index
    %c0_79 = arith.constant 0 : index
    %c0_80 = arith.constant 0 : index
    %110 = vector.load %arg11[%c1_78, %c0_79, %c0_80] : memref<3x16x16xbf16, #tpu.memory_space<vmem>>, vector<1x16x16xbf16>
    %111 = vector.shape_cast %110 : vector<1x16x16xbf16> to vector<16x16xbf16>
    %112 = arith.truncf %98 : vector<16x64xf32> to vector<16x64xbf16>
    %cst_81 = arith.constant dense<0.000000e+00> : vector<16x64xf32>
    %113 = tpu.matmul %111, %112, %cst_81 {dimension_numbers = #tpu.dot_dimension_numbers<[1], [0], [0], [1], [0, 0, 1, 1], [], []>} : vector<16x16xbf16>, vector<16x64xbf16>, vector<16x64xf32> -> vector<16x64xf32>
    %c1_82 = arith.constant 1 : index
    %c0_83 = arith.constant 0 : index
    %c0_84 = arith.constant 0 : index
    %114 = vector.load %arg12[%c1_82, %c0_83, %c0_84] : memref<3x64x64xbf16, #tpu.memory_space<vmem>>, vector<1x64x64xbf16>
    %115 = vector.shape_cast %114 : vector<1x64x64xbf16> to vector<64x64xbf16>
    %116 = arith.truncf %113 : vector<16x64xf32> to vector<16x64xbf16>
    %cst_85 = arith.constant dense<0.000000e+00> : vector<16x64xf32>
    %117 = tpu.matmul %116, %115, %cst_85 {dimension_numbers = #tpu.dot_dimension_numbers<[1], [0], [0], [1], [0, 0, 1, 1], [], []>} : vector<16x64xbf16>, vector<64x64xbf16>, vector<16x64xf32> -> vector<16x64xf32>
    %118 = arith.addf %109, %117 : vector<16x64xf32>
    %c2_86 = arith.constant 2 : index
    %c0_87 = arith.constant 0 : index
    %c0_88 = arith.constant 0 : index
    %119 = vector.load %arg11[%c2_86, %c0_87, %c0_88] : memref<3x16x16xbf16, #tpu.memory_space<vmem>>, vector<1x16x16xbf16>
    %120 = vector.shape_cast %119 : vector<1x16x16xbf16> to vector<16x16xbf16>
    %121 = arith.truncf %98 : vector<16x64xf32> to vector<16x64xbf16>
    %cst_89 = arith.constant dense<0.000000e+00> : vector<16x64xf32>
    %122 = tpu.matmul %120, %121, %cst_89 {dimension_numbers = #tpu.dot_dimension_numbers<[1], [0], [0], [1], [0, 0, 1, 1], [], []>} : vector<16x16xbf16>, vector<16x64xbf16>, vector<16x64xf32> -> vector<16x64xf32>
    %c2_90 = arith.constant 2 : index
    %c0_91 = arith.constant 0 : index
    %c0_92 = arith.constant 0 : index
    %123 = vector.load %arg12[%c2_90, %c0_91, %c0_92] : memref<3x64x64xbf16, #tpu.memory_space<vmem>>, vector<1x64x64xbf16>
    %124 = vector.shape_cast %123 : vector<1x64x64xbf16> to vector<64x64xbf16>
    %125 = arith.truncf %122 : vector<16x64xf32> to vector<16x64xbf16>
    %cst_93 = arith.constant dense<0.000000e+00> : vector<16x64xf32>
    %126 = tpu.matmul %125, %124, %cst_93 {dimension_numbers = #tpu.dot_dimension_numbers<[1], [0], [0], [1], [0, 0, 1, 1], [], []>} : vector<16x64xbf16>, vector<64x64xbf16>, vector<16x64xf32> -> vector<16x64xf32>
    %127 = arith.addf %118, %126 : vector<16x64xf32>
    %cst_94 = arith.constant 0.000000e+00 : f32
    %128 = vector.broadcast %cst_94 : f32 to vector<16x64xf32>
    %129 = arith.cmpf oge, %127, %128 : vector<16x64xf32>
    %cst_95 = arith.constant 0.00999999977 : f32
    %130 = vector.broadcast %cst_95 : f32 to vector<16x64xf32>
    %131 = arith.mulf %130, %127 : vector<16x64xf32>
    %132 = arith.select %129, %127, %131 : vector<16x64xi1>, vector<16x64xf32>
    %c0_96 = arith.constant 0 : index
    %c0_97 = arith.constant 0 : index
    %133 = vector.load %arg17[%c0_96, %c0_97] : memref<64x64xbf16, #tpu.memory_space<vmem>>, vector<64x64xbf16>
    %134 = arith.truncf %132 : vector<16x64xf32> to vector<16x64xbf16>
    %cst_98 = arith.constant dense<0.000000e+00> : vector<16x64xf32>
    %135 = tpu.matmul %134, %133, %cst_98 {dimension_numbers = #tpu.dot_dimension_numbers<[1], [0], [0], [1], [0, 0, 1, 1], [], []>} : vector<16x64xbf16>, vector<64x64xbf16>, vector<16x64xf32> -> vector<16x64xf32>
    %c0_99 = arith.constant 0 : index
    %c0_100 = arith.constant 0 : index
    %136 = vector.load %arg16[%c0_99, %c0_100] : memref<1x64xf32, #tpu.memory_space<vmem>>, vector<1x64xf32>
    %137 = vector.broadcast %136 : vector<1x64xf32> to vector<16x64xf32>
    %138 = arith.addf %135, %137 : vector<16x64xf32>
    %139 = arith.addf %138, %87 : vector<16x64xf32>
    %cst_101 = arith.constant 0.000000e+00 : f32
    %140 = vector.broadcast %cst_101 : f32 to vector<16x64xf32>
    %141 = arith.cmpf oge, %139, %140 : vector<16x64xf32>
    %cst_102 = arith.constant 0.00999999977 : f32
    %142 = vector.broadcast %cst_102 : f32 to vector<16x64xf32>
    %143 = arith.mulf %142, %139 : vector<16x64xf32>
    %144 = arith.select %141, %139, %143 : vector<16x64xi1>, vector<16x64xf32>
    %c0_103 = arith.constant 0 : index
    %c0_104 = arith.constant 0 : index
    %145 = vector.load %arg23[%c0_103, %c0_104] : memref<64x64xbf16, #tpu.memory_space<vmem>>, vector<64x64xbf16>
    %146 = arith.truncf %144 : vector<16x64xf32> to vector<16x64xbf16>
    %cst_105 = arith.constant dense<0.000000e+00> : vector<16x64xf32>
    %147 = tpu.matmul %146, %145, %cst_105 {dimension_numbers = #tpu.dot_dimension_numbers<[1], [0], [0], [1], [0, 0, 1, 1], [], []>} : vector<16x64xbf16>, vector<64x64xbf16>, vector<16x64xf32> -> vector<16x64xf32>
    %c0_106 = arith.constant 0 : index
    %c0_107 = arith.constant 0 : index
    %148 = vector.load %arg22[%c0_106, %c0_107] : memref<1x64xf32, #tpu.memory_space<vmem>>, vector<1x64xf32>
    %149 = vector.broadcast %148 : vector<1x64xf32> to vector<16x64xf32>
    %150 = arith.addf %147, %149 : vector<16x64xf32>
    %cst_108 = arith.constant 0.000000e+00 : f32
    %151 = vector.broadcast %cst_108 : f32 to vector<16x64xf32>
    %152 = arith.cmpf oge, %150, %151 : vector<16x64xf32>
    %cst_109 = arith.constant 0.00999999977 : f32
    %153 = vector.broadcast %cst_109 : f32 to vector<16x64xf32>
    %154 = arith.mulf %153, %150 : vector<16x64xf32>
    %155 = arith.select %152, %150, %154 : vector<16x64xi1>, vector<16x64xf32>
    %c0_110 = arith.constant 0 : index
    %c0_111 = arith.constant 0 : index
    %156 = vector.load %arg24[%c0_110, %c0_111] : memref<64x128xbf16, #tpu.memory_space<vmem>>, vector<64x128xbf16>
    %157 = arith.truncf %155 : vector<16x64xf32> to vector<16x64xbf16>
    %cst_112 = arith.constant dense<0.000000e+00> : vector<16x128xf32>
    %158 = tpu.matmul %157, %156, %cst_112 {dimension_numbers = #tpu.dot_dimension_numbers<[1], [0], [0], [1], [0, 0, 1, 1], [], []>} : vector<16x64xbf16>, vector<64x128xbf16>, vector<16x128xf32> -> vector<16x128xf32>
    %159 = arith.addf %35, %158 : vector<16x128xf32>
    %c0_113 = arith.constant 0 : index
    %c0_114 = arith.constant 0 : index
    %160 = vector.load %arg25[%c0_113, %c0_114] : memref<1x128xf32, #tpu.memory_space<vmem>>, vector<1x128xf32>
    %161 = vector.broadcast %160 : vector<1x128xf32> to vector<16x128xf32>
    %162 = arith.addf %159, %161 : vector<16x128xf32>
    %cst_115 = arith.constant 0.000000e+00 : f32
    %163 = vector.broadcast %cst_115 : f32 to vector<16x128xf32>
    %164 = arith.cmpf oge, %162, %163 : vector<16x128xf32>
    %cst_116 = arith.constant 0.00999999977 : f32
    %165 = vector.broadcast %cst_116 : f32 to vector<16x128xf32>
    %166 = arith.mulf %165, %162 : vector<16x128xf32>
    %167 = arith.select %164, %162, %166 : vector<16x128xi1>, vector<16x128xf32>
    %c0_117 = arith.constant 0 : index
    %c0_118 = arith.constant 0 : index
    %168 = vector.load %arg26[%c0_117, %c0_118] : memref<16x128xf32, #tpu.memory_space<vmem>>, vector<16x128xf32>
    tpu.vector_store %arg26[%c0_117, %c0_118], %167 {strides = array<i32>} : memref<16x128xf32, #tpu.memory_space<vmem>>, vector<16x128xf32>,
    return
  }
  func.func @transform_0(%arg0: i32) -> (i32, i32) {
    %c0_i32 = arith.constant 0 : i32
    %c0_i32_0 = arith.constant 0 : i32
    return %arg0, %c0_i32 : i32, i32
  }
  func.func @transform_1(%arg0: i32) -> (i32, i32, i32) {
    %c0_i32 = arith.constant 0 : i32
    %c0_i32_0 = arith.constant 0 : i32
    %c0_i32_1 = arith.constant 0 : i32
    %c0_i32_2 = arith.constant 0 : i32
    return %c0_i32, %c0_i32_0, %c0_i32_1 : i32, i32, i32
  }
  func.func @transform_2(%arg0: i32) -> (i32, i32, i32) {
    %c0_i32 = arith.constant 0 : i32
    %c0_i32_0 = arith.constant 0 : i32
    %c0_i32_1 = arith.constant 0 : i32
    %c0_i32_2 = arith.constant 0 : i32
    return %c0_i32, %c0_i32_0, %c0_i32_1 : i32, i32, i32
  }
  func.func @transform_3(%arg0: i32) -> (i32, i32) {
    %c0_i32 = arith.constant 0 : i32
    %c0_i32_0 = arith.constant 0 : i32
    %c0_i32_1 = arith.constant 0 : i32
    return %c0_i32, %c0_i32_0 : i32, i32
  }
  func.func @transform_4(%arg0: i32) -> (i32, i32) {
    %c0_i32 = arith.constant 0 : i32
    %c0_i32_0 = arith.constant 0 : i32
    %c0_i32_1 = arith.constant 0 : i32
    return %c0_i32, %c0_i32_0 : i32, i32
  }
  func.func @transform_5(%arg0: i32) -> (i32, i32) {
    %c0_i32 = arith.constant 0 : i32
    %c0_i32_0 = arith.constant 0 : i32
    %c0_i32_1 = arith.constant 0 : i32
    return %c0_i32, %c0_i32_0 : i32, i32
  }
  func.func @transform_6(%arg0: i32) -> (i32, i32) {
    %c0_i32 = arith.constant 0 : i32
    %c0_i32_0 = arith.constant 0 : i32
    %c0_i32_1 = arith.constant 0 : i32
    return %c0_i32, %c0_i32_0 : i32, i32
  }
  func.func @transform_7(%arg0: i32) -> (i32, i32) {
    %c0_i32 = arith.constant 0 : i32
    %c0_i32_0 = arith.constant 0 : i32
    %c0_i32_1 = arith.constant 0 : i32
    return %c0_i32, %c0_i32_0 : i32, i32
  }
  func.func @transform_8(%arg0: i32) -> (i32, i32) {
    %c0_i32 = arith.constant 0 : i32
    %c0_i32_0 = arith.constant 0 : i32
    %c0_i32_1 = arith.constant 0 : i32
    return %c0_i32, %c0_i32_0 : i32, i32
  }
  func.func @transform_9(%arg0: i32) -> (i32, i32) {
    %c0_i32 = arith.constant 0 : i32
    %c0_i32_0 = arith.constant 0 : i32
    %c0_i32_1 = arith.constant 0 : i32
    return %c0_i32, %c0_i32_0 : i32, i32
  }
  func.func @transform_10(%arg0: i32) -> (i32, i32, i32) {
    %c0_i32 = arith.constant 0 : i32
    %c0_i32_0 = arith.constant 0 : i32
    %c0_i32_1 = arith.constant 0 : i32
    %c0_i32_2 = arith.constant 0 : i32
    return %c0_i32, %c0_i32_0, %c0_i32_1 : i32, i32, i32
  }
  func.func @transform_11(%arg0: i32) -> (i32, i32, i32) {
    %c0_i32 = arith.constant 0 : i32
    %c0_i32_0 = arith.constant 0 : i32
    %c0_i32_1 = arith.constant 0 : i32
    %c0_i32_2 = arith.constant 0 : i32
    return %c0_i32, %c0_i32_0, %c0_i32_1 : i32, i32, i32
  }
  func.func @transform_12(%arg0: i32) -> (i32, i32) {
    %c0_i32 = arith.constant 0 : i32
    %c0_i32_0 = arith.constant 0 : i32
    %c0_i32_1 = arith.constant 0 : i32
    return %c0_i32, %c0_i32_0 : i32, i32
  }
  func.func @transform_13(%arg0: i32) -> (i32, i32) {
    %c0_i32 = arith.constant 0 : i32
    %c0_i32_0 = arith.constant 0 : i32
    %c0_i32_1 = arith.constant 0 : i32
    return %c0_i32, %c0_i32_0 : i32, i32
  }
  func.func @transform_14(%arg0: i32) -> (i32, i32) {
    %c0_i32 = arith.constant 0 : i32
    %c0_i32_0 = arith.constant 0 : i32
    %c0_i32_1 = arith.constant 0 : i32
    return %c0_i32, %c0_i32_0 : i32, i32
  }
  func.func @transform_15(%arg0: i32) -> (i32, i32) {
    %c0_i32 = arith.constant 0 : i32
    %c0_i32_0 = arith.constant 0 : i32
    %c0_i32_1 = arith.constant 0 : i32
    return %c0_i32, %c0_i32_0 : i32, i32
  }
  func.func @transform_16(%arg0: i32) -> (i32, i32) {
    %c0_i32 = arith.constant 0 : i32
    %c0_i32_0 = arith.constant 0 : i32
    %c0_i32_1 = arith.constant 0 : i32
    return %c0_i32, %c0_i32_0 : i32, i32
  }
  func.func @transform_17(%arg0: i32) -> (i32, i32) {
    %c0_i32 = arith.constant 0 : i32
    %c0_i32_0 = arith.constant 0 : i32
    %c0_i32_1 = arith.constant 0 : i32
    return %c0_i32, %c0_i32_0 : i32, i32
  }
  func.func @transform_18(%arg0: i32) -> (i32, i32) {
    %c0_i32 = arith.constant 0 : i32
    %c0_i32_0 = arith.constant 0 : i32
    %c0_i32_1 = arith.constant 0 : i32
    return %c0_i32, %c0_i32_0 : i32, i32
  }
  func.func @transform_19(%arg0: i32) -> (i32, i32) {
    %c0_i32 = arith.constant 0 : i32
    %c0_i32_0 = arith.constant 0 : i32
    %c0_i32_1 = arith.constant 0 : i32
    return %c0_i32, %c0_i32_0 : i32, i32
  }
  func.func @transform_20(%arg0: i32) -> (i32, i32) {
    %c0_i32 = arith.constant 0 : i32
    %c0_i32_0 = arith.constant 0 : i32
    %c0_i32_1 = arith.constant 0 : i32
    return %c0_i32, %c0_i32_0 : i32, i32
  }
  func.func @transform_21(%arg0: i32) -> (i32, i32) {
    %c0_i32 = arith.constant 0 : i32
    %c0_i32_0 = arith.constant 0 : i32
    %c0_i32_1 = arith.constant 0 : i32
    return %c0_i32, %c0_i32_0 : i32, i32
  }
  func.func @transform_22(%arg0: i32) -> (i32, i32) {
    %c0_i32 = arith.constant 0 : i32
    %c0_i32_0 = arith.constant 0 : i32
    %c0_i32_1 = arith.constant 0 : i32
    return %c0_i32, %c0_i32_0 : i32, i32
  }
  func.func @transform_23(%arg0: i32) -> (i32, i32) {
    %c0_i32 = arith.constant 0 : i32
    %c0_i32_0 = arith.constant 0 : i32
    %c0_i32_1 = arith.constant 0 : i32
    return %c0_i32, %c0_i32_0 : i32, i32
  }
  func.func @transform_24(%arg0: i32) -> (i32, i32) {
    %c0_i32 = arith.constant 0 : i32
    %c0_i32_0 = arith.constant 0 : i32
    %c0_i32_1 = arith.constant 0 : i32
    return %c0_i32, %c0_i32_0 : i32, i32
  }
  func.func @transform_25(%arg0: i32) -> (i32, i32) {
    %c0_i32 = arith.constant 0 : i32
    %c0_i32_0 = arith.constant 0 : i32
    return %arg0, %c0_i32 : i32, i32
  }
}

module attributes {stable_mosaic.version = 11 : i64} {
  func.func @kernel(%arg0: i32, %arg1: memref<32x128xbf16, #tpu.memory_space<vmem>>, %arg2: memref<3x16x32xbf16, #tpu.memory_space<vmem>>, %arg3: memref<3x128x64xbf16, #tpu.memory_space<vmem>>, %arg4: memref<1x64xf32, #tpu.memory_space<vmem>>, %arg5: memref<1x64xf32, #tpu.memory_space<vmem>>, %arg6: memref<64x64xbf16, #tpu.memory_space<vmem>>, %arg7: memref<16x32xbf16, #tpu.memory_space<vmem>>, %arg8: memref<128x64xbf16, #tpu.memory_space<vmem>>, %arg9: memref<1x384xf32, #tpu.memory_space<vmem>>, %arg10: memref<128x384xbf16, #tpu.memory_space<vmem>>, %arg11: memref<3x16x16xbf16, #tpu.memory_space<vmem>>, %arg12: memref<3x64x64xbf16, #tpu.memory_space<vmem>>, %arg13: memref<1x64xf32, #tpu.memory_space<vmem>>, %arg14: memref<64x64xbf16, #tpu.memory_space<vmem>>, %arg15: memref<1x64xf32, #tpu.memory_space<vmem>>, %arg16: memref<1x64xf32, #tpu.memory_space<vmem>>, %arg17: memref<64x64xbf16, #tpu.memory_space<vmem>>, %arg18: memref<16x32xbf16, #tpu.memory_space<vmem>>, %arg19: memref<128x128xbf16, #tpu.memory_space<vmem>>, %arg20: memref<1x128xf32, #tpu.memory_space<vmem>>, %arg21: memref<128x128xbf16, #tpu.memory_space<vmem>>, %arg22: memref<1x64xf32, #tpu.memory_space<vmem>>, %arg23: memref<64x64xbf16, #tpu.memory_space<vmem>>, %arg24: memref<64x128xbf16, #tpu.memory_space<vmem>>, %arg25: memref<1x128xf32, #tpu.memory_space<vmem>>, %arg26: memref<16x128xf32, #tpu.memory_space<vmem>>) attributes {dimension_semantics = [#tpu.dimension_semantics<parallel>], iteration_bounds = array<i64: 1>, scalar_prefetch = 0 : i64, scratch_operands = 0 : i64, tpu.core_type = #tpu.core_type<tc>, window_params = [{transform_indices = @transform_0, window_bounds = array<i64: 32, 128>}, {pipeline_mode = #tpu.pipeline_mode<synchronous>, transform_indices = @transform_1, window_bounds = array<i64: 3, 16, 32>}, {pipeline_mode = #tpu.pipeline_mode<synchronous>, transform_indices = @transform_2, window_bounds = array<i64: 3, 128, 64>}, {pipeline_mode = #tpu.pipeline_mode<synchronous>, transform_indices = @transform_3, window_bounds = array<i64: 1, 64>}, {pipeline_mode = #tpu.pipeline_mode<synchronous>, transform_indices = @transform_4, window_bounds = array<i64: 1, 64>}, {pipeline_mode = #tpu.pipeline_mode<synchronous>, transform_indices = @transform_5, window_bounds = array<i64: 64, 64>}, {pipeline_mode = #tpu.pipeline_mode<synchronous>, transform_indices = @transform_6, window_bounds = array<i64: 16, 32>}, {pipeline_mode = #tpu.pipeline_mode<synchronous>, transform_indices = @transform_7, window_bounds = array<i64: 128, 64>}, {pipeline_mode = #tpu.pipeline_mode<synchronous>, transform_indices = @transform_8, window_bounds = array<i64: 1, 384>}, {pipeline_mode = #tpu.pipeline_mode<synchronous>, transform_indices = @transform_9, window_bounds = array<i64: 128, 384>}, {pipeline_mode = #tpu.pipeline_mode<synchronous>, transform_indices = @transform_10, window_bounds = array<i64: 3, 16, 16>}, {pipeline_mode = #tpu.pipeline_mode<synchronous>, transform_indices = @transform_11, window_bounds = array<i64: 3, 64, 64>}, {pipeline_mode = #tpu.pipeline_mode<synchronous>, transform_indices = @transform_12, window_bounds = array<i64: 1, 64>}, {pipeline_mode = #tpu.pipeline_mode<synchronous>, transform_indices = @transform_13, window_bounds = array<i64: 64, 64>}, {pipeline_mode = #tpu.pipeline_mode<synchronous>, transform_indices = @transform_14, window_bounds = array<i64: 1, 64>}, {pipeline_mode = #tpu.pipeline_mode<synchronous>, transform_indices = @transform_15, window_bounds = array<i64: 1, 64>}, {pipeline_mode = #tpu.pipeline_mode<synchronous>, transform_indices = @transform_16, window_bounds = array<i64: 64, 64>}, {pipeline_mode = #tpu.pipeline_mode<synchronous>, transform_indices = @transform_17, window_bounds = array<i64: 16, 32>}, {pipeline_mode = #tpu.pipeline_mode<synchronous>, transform_indices = @transform_18, window_bounds = array<i64: 128, 128>}, {pipeline_mode = #tpu.pipeline_mode<synchronous>, transform_indices = @transform_19, window_bounds = array<i64: 1, 128>}, {pipeline_mode = #tpu.pipeline_mode<synchronous>, transform_indices = @transform_20, window_bounds = array<i64: 128, 128>}, {pipeline_mode = #tpu.pipeline_mode<synchronous>, transform_indices = @transform_21, window_bounds = array<i64: 1, 64>}, {pipeline_mode = #tpu.pipeline_mode<synchronous>, transform_indices = @transform_22, window_bounds = array<i64: 64, 64>}, {pipeline_mode = #tpu.pipeline_mode<synchronous>, transform_indices = @transform_23, window_bounds = array<i64: 64, 128>}, {pipeline_mode = #tpu.pipeline_mode<synchronous>, transform_indices = @transform_24, window_bounds = array<i64: 1, 128>}, {transform_indices = @transform_25, window_bounds = array<i64: 16, 128>}]} {
    %c0 = arith.constant 0 : index
    %c0_0 = arith.constant 0 : index
    %0 = vector.load %arg1[%c0, %c0_0] : memref<32x128xbf16, #tpu.memory_space<vmem>>, vector<32x128xbf16>
    %c0_1 = arith.constant 0 : index
    %c0_2 = arith.constant 0 : index
    %1 = vector.load %arg21[%c0_1, %c0_2] : memref<128x128xbf16, #tpu.memory_space<vmem>>, vector<128x128xbf16>
    %cst = arith.constant dense<0.000000e+00> : vector<32x128xf32>
    %2 = tpu.matmul %0, %1, %cst {dimension_numbers = #tpu.dot_dimension_numbers<[1], [0], [0], [1], [0, 0, 1, 1], [], []>} : vector<32x128xbf16>, vector<128x128xbf16>, vector<32x128xf32> -> vector<32x128xf32>
    %c0_3 = arith.constant 0 : index
    %c0_4 = arith.constant 0 : index
    %3 = vector.load %arg20[%c0_3, %c0_4] : memref<1x128xf32, #tpu.memory_space<vmem>>, vector<1x128xf32>
    %4 = vector.broadcast %3 : vector<1x128xf32> to vector<32x128xf32>
    %5 = arith.addf %2, %4 : vector<32x128xf32>
    %cst_5 = arith.constant 0.000000e+00 : f32
    %6 = vector.broadcast %cst_5 : f32 to vector<32x128xf32>
    %7 = arith.cmpf oge, %5, %6 : vector<32x128xf32>
    %cst_6 = arith.constant 0.00999999977 : f32
    %8 = vector.broadcast %cst_6 : f32 to vector<32x128xf32>
    %9 = arith.mulf %8, %5 : vector<32x128xf32>
    %10 = arith.select %7, %5, %9 : vector<32x128xi1>, vector<32x128xf32>
    %c0_7 = arith.constant 0 : index
    %c0_8 = arith.constant 0 : index
    %11 = vector.load %arg10[%c0_7, %c0_8] : memref<128x384xbf16, #tpu.memory_space<vmem>>, vector<128x384xbf16>
    %12 = arith.truncf %10 : vector<32x128xf32> to vector<32x128xbf16>
    %cst_9 = arith.constant dense<0.000000e+00> : vector<32x384xf32>
    %13 = tpu.matmul %12, %11, %cst_9 {dimension_numbers = #tpu.dot_dimension_numbers<[1], [0], [0], [1], [0, 0, 1, 1], [], []>} : vector<32x128xbf16>, vector<128x384xbf16>, vector<32x384xf32> -> vector<32x384xf32>
    %c0_10 = arith.constant 0 : index
    %c0_11 = arith.constant 0 : index
    %14 = vector.load %arg9[%c0_10, %c0_11] : memref<1x384xf32, #tpu.memory_space<vmem>>, vector<1x384xf32>
    %15 = vector.broadcast %14 : vector<1x384xf32> to vector<32x384xf32>
    %16 = arith.addf %13, %15 : vector<32x384xf32>
    %17 = vector.extract_strided_slice %16 {offsets = [0, 0], sizes = [32, 128], strides = [1, 1]} : vector<32x384xf32> to vector<32x128xf32>
    %cst_12 = arith.constant 0.000000e+00 : f32
    %18 = vector.broadcast %cst_12 : f32 to vector<32x128xf32>
    %19 = arith.cmpf oge, %17, %18 : vector<32x128xf32>
    %cst_13 = arith.constant 0.00999999977 : f32
    %20 = vector.broadcast %cst_13 : f32 to vector<32x128xf32>
    %21 = arith.mulf %20, %17 : vector<32x128xf32>
    %22 = arith.select %19, %17, %21 : vector<32x128xi1>, vector<32x128xf32>
    %23 = vector.extract_strided_slice %16 {offsets = [0, 128], sizes = [32, 128], strides = [1, 1]} : vector<32x384xf32> to vector<32x128xf32>
    %cst_14 = arith.constant 0.000000e+00 : f32
    %24 = vector.broadcast %cst_14 : f32 to vector<32x128xf32>
    %25 = arith.cmpf oge, %23, %24 : vector<32x128xf32>
    %cst_15 = arith.constant 0.00999999977 : f32
    %26 = vector.broadcast %cst_15 : f32 to vector<32x128xf32>
    %27 = arith.mulf %26, %23 : vector<32x128xf32>
    %28 = arith.select %25, %23, %27 : vector<32x128xi1>, vector<32x128xf32>
    %29 = vector.extract_strided_slice %16 {offsets = [0, 256], sizes = [32, 128], strides = [1, 1]} : vector<32x384xf32> to vector<32x128xf32>
    %c0_16 = arith.constant 0 : index
    %c0_17 = arith.constant 0 : index
    %30 = vector.load %arg18[%c0_16, %c0_17] : memref<16x32xbf16, #tpu.memory_space<vmem>>, vector<16x32xbf16>
    %31 = arith.truncf %22 : vector<32x128xf32> to vector<32x128xbf16>
    %cst_18 = arith.constant dense<0.000000e+00> : vector<16x128xf32>
    %32 = tpu.matmul %30, %31, %cst_18 {dimension_numbers = #tpu.dot_dimension_numbers<[1], [0], [0], [1], [0, 0, 1, 1], [], []>} : vector<16x32xbf16>, vector<32x128xbf16>, vector<16x128xf32> -> vector<16x128xf32>
    %c0_19 = arith.constant 0 : index
    %c0_20 = arith.constant 0 : index
    %33 = vector.load %arg19[%c0_19, %c0_20] : memref<128x128xbf16, #tpu.memory_space<vmem>>, vector<128x128xbf16>
    %34 = arith.truncf %32 : vector<16x128xf32> to vector<16x128xbf16>
    %cst_21 = arith.constant dense<0.000000e+00> : vector<16x128xf32>
    %35 = tpu.matmul %34, %33, %cst_21 {dimension_numbers = #tpu.dot_dimension_numbers<[1], [0], [0], [1], [0, 0, 1, 1], [], []>} : vector<16x128xbf16>, vector<128x128xbf16>, vector<16x128xf32> -> vector<16x128xf32>
    %c0_22 = arith.constant 0 : index
    %c0_23 = arith.constant 0 : index
    %c0_24 = arith.constant 0 : index
    %36 = vector.load %arg2[%c0_22, %c0_23, %c0_24] : memref<3x16x32xbf16, #tpu.memory_space<vmem>>, vector<1x16x32xbf16>
    %37 = vector.shape_cast %36 : vector<1x16x32xbf16> to vector<16x32xbf16>
    %38 = arith.truncf %28 : vector<32x128xf32> to vector<32x128xbf16>
    %cst_25 = arith.constant dense<0.000000e+00> : vector<16x128xf32>
    %39 = tpu.matmul %37, %38, %cst_25 {dimension_numbers = #tpu.dot_dimension_numbers<[1], [0], [0], [1], [0, 0, 1, 1], [], []>} : vector<16x32xbf16>, vector<32x128xbf16>, vector<16x128xf32> -> vector<16x128xf32>
    %c0_26 = arith.constant 0 : index
    %c0_27 = arith.constant 0 : index
    %c0_28 = arith.constant 0 : index
    %40 = vector.load %arg3[%c0_26, %c0_27, %c0_28] : memref<3x128x64xbf16, #tpu.memory_space<vmem>>, vector<1x128x64xbf16>
    %41 = vector.shape_cast %40 : vector<1x128x64xbf16> to vector<128x64xbf16>
    %42 = arith.truncf %39 : vector<16x128xf32> to vector<16x128xbf16>
    %cst_29 = arith.constant dense<0.000000e+00> : vector<16x64xf32>
    %43 = tpu.matmul %42, %41, %cst_29 {dimension_numbers = #tpu.dot_dimension_numbers<[1], [0], [0], [1], [0, 0, 1, 1], [], []>} : vector<16x128xbf16>, vector<128x64xbf16>, vector<16x64xf32> -> vector<16x64xf32>
    %c0_30 = arith.constant 0 : index
    %c0_31 = arith.constant 0 : index
    %44 = vector.load %arg4[%c0_30, %c0_31] : memref<1x64xf32, #tpu.memory_space<vmem>>, vector<1x64xf32>
    %45 = vector.broadcast %44 : vector<1x64xf32> to vector<16x64xf32>
    %46 = arith.addf %43, %45 : vector<16x64xf32>
    %c1 = arith.constant 1 : index
    %c0_32 = arith.constant 0 : index
    %c0_33 = arith.constant 0 : index
    %47 = vector.load %arg2[%c1, %c0_32, %c0_33] : memref<3x16x32xbf16, #tpu.memory_space<vmem>>, vector<1x16x32xbf16>
    %48 = vector.shape_cast %47 : vector<1x16x32xbf16> to vector<16x32xbf16>
    %49 = arith.truncf %28 : vector<32x128xf32> to vector<32x128xbf16>
    %cst_34 = arith.constant dense<0.000000e+00> : vector<16x128xf32>
    %50 = tpu.matmul %48, %49, %cst_34 {dimension_numbers = #tpu.dot_dimension_numbers<[1], [0], [0], [1], [0, 0, 1, 1], [], []>} : vector<16x32xbf16>, vector<32x128xbf16>, vector<16x128xf32> -> vector<16x128xf32>
    %c1_35 = arith.constant 1 : index
    %c0_36 = arith.constant 0 : index
    %c0_37 = arith.constant 0 : index
    %51 = vector.load %arg3[%c1_35, %c0_36, %c0_37] : memref<3x128x64xbf16, #tpu.memory_space<vmem>>, vector<1x128x64xbf16>
    %52 = vector.shape_cast %51 : vector<1x128x64xbf16> to vector<128x64xbf16>
    %53 = arith.truncf %50 : vector<16x128xf32> to vector<16x128xbf16>
    %cst_38 = arith.constant dense<0.000000e+00> : vector<16x64xf32>
    %54 = tpu.matmul %53, %52, %cst_38 {dimension_numbers = #tpu.dot_dimension_numbers<[1], [0], [0], [1], [0, 0, 1, 1], [], []>} : vector<16x128xbf16>, vector<128x64xbf16>, vector<16x64xf32> -> vector<16x64xf32>
    %55 = arith.addf %46, %54 : vector<16x64xf32>
    %c2 = arith.constant 2 : index
    %c0_39 = arith.constant 0 : index
    %c0_40 = arith.constant 0 : index
    %56 = vector.load %arg2[%c2, %c0_39, %c0_40] : memref<3x16x32xbf16, #tpu.memory_space<vmem>>, vector<1x16x32xbf16>
    %57 = vector.shape_cast %56 : vector<1x16x32xbf16> to vector<16x32xbf16>
    %58 = arith.truncf %28 : vector<32x128xf32> to vector<32x128xbf16>
    %cst_41 = arith.constant dense<0.000000e+00> : vector<16x128xf32>
    %59 = tpu.matmul %57, %58, %cst_41 {dimension_numbers = #tpu.dot_dimension_numbers<[1], [0], [0], [1], [0, 0, 1, 1], [], []>} : vector<16x32xbf16>, vector<32x128xbf16>, vector<16x128xf32> -> vector<16x128xf32>
    %c2_42 = arith.constant 2 : index
    %c0_43 = arith.constant 0 : index
    %c0_44 = arith.constant 0 : index
    %60 = vector.load %arg3[%c2_42, %c0_43, %c0_44] : memref<3x128x64xbf16, #tpu.memory_space<vmem>>, vector<1x128x64xbf16>
    %61 = vector.shape_cast %60 : vector<1x128x64xbf16> to vector<128x64xbf16>
    %62 = arith.truncf %59 : vector<16x128xf32> to vector<16x128xbf16>
    %cst_45 = arith.constant dense<0.000000e+00> : vector<16x64xf32>
    %63 = tpu.matmul %62, %61, %cst_45 {dimension_numbers = #tpu.dot_dimension_numbers<[1], [0], [0], [1], [0, 0, 1, 1], [], []>} : vector<16x128xbf16>, vector<128x64xbf16>, vector<16x64xf32> -> vector<16x64xf32>
    %64 = arith.addf %55, %63 : vector<16x64xf32>
    %cst_46 = arith.constant 0.000000e+00 : f32
    %65 = vector.broadcast %cst_46 : f32 to vector<16x64xf32>
    %66 = arith.cmpf oge, %64, %65 : vector<16x64xf32>
    %cst_47 = arith.constant 0.00999999977 : f32
    %67 = vector.broadcast %cst_47 : f32 to vector<16x64xf32>
    %68 = arith.mulf %67, %64 : vector<16x64xf32>
    %69 = arith.select %66, %64, %68 : vector<16x64xi1>, vector<16x64xf32>
    %c0_48 = arith.constant 0 : index
    %c0_49 = arith.constant 0 : index
    %70 = vector.load %arg6[%c0_48, %c0_49] : memref<64x64xbf16, #tpu.memory_space<vmem>>, vector<64x64xbf16>
    %71 = arith.truncf %69 : vector<16x64xf32> to vector<16x64xbf16>
    %cst_50 = arith.constant dense<0.000000e+00> : vector<16x64xf32>
    %72 = tpu.matmul %71, %70, %cst_50 {dimension_numbers = #tpu.dot_dimension_numbers<[1], [0], [0], [1], [0, 0, 1, 1], [], []>} : vector<16x64xbf16>, vector<64x64xbf16>, vector<16x64xf32> -> vector<16x64xf32>
    %c0_51 = arith.constant 0 : index
    %c0_52 = arith.constant 0 : index
    %73 = vector.load %arg5[%c0_51, %c0_52] : memref<1x64xf32, #tpu.memory_space<vmem>>, vector<1x64xf32>
    %74 = vector.broadcast %73 : vector<1x64xf32> to vector<16x64xf32>
    %75 = arith.addf %72, %74 : vector<16x64xf32>
    %c0_53 = arith.constant 0 : index
    %c0_54 = arith.constant 0 : index
    %76 = vector.load %arg7[%c0_53, %c0_54] : memref<16x32xbf16, #tpu.memory_space<vmem>>, vector<16x32xbf16>
    %77 = arith.truncf %29 : vector<32x128xf32> to vector<32x128xbf16>
    %cst_55 = arith.constant dense<0.000000e+00> : vector<16x128xf32>
    %78 = tpu.matmul %76, %77, %cst_55 {dimension_numbers = #tpu.dot_dimension_numbers<[1], [0], [0], [1], [0, 0, 1, 1], [], []>} : vector<16x32xbf16>, vector<32x128xbf16>, vector<16x128xf32> -> vector<16x128xf32>
    %c0_56 = arith.constant 0 : index
    %c0_57 = arith.constant 0 : index
    %79 = vector.load %arg8[%c0_56, %c0_57] : memref<128x64xbf16, #tpu.memory_space<vmem>>, vector<128x64xbf16>
    %80 = arith.truncf %78 : vector<16x128xf32> to vector<16x128xbf16>
    %cst_58 = arith.constant dense<0.000000e+00> : vector<16x64xf32>
    %81 = tpu.matmul %80, %79, %cst_58 {dimension_numbers = #tpu.dot_dimension_numbers<[1], [0], [0], [1], [0, 0, 1, 1], [], []>} : vector<16x128xbf16>, vector<128x64xbf16>, vector<16x64xf32> -> vector<16x64xf32>
    %82 = arith.addf %75, %81 : vector<16x64xf32>
    %cst_59 = arith.constant 0.000000e+00 : f32
    %83 = vector.broadcast %cst_59 : f32 to vector<16x64xf32>
    %84 = arith.cmpf oge, %82, %83 : vector<16x64xf32>
    %cst_60 = arith.constant 0.00999999977 : f32
    %85 = vector.broadcast %cst_60 : f32 to vector<16x64xf32>
    %86 = arith.mulf %85, %82 : vector<16x64xf32>
    %87 = arith.select %84, %82, %86 : vector<16x64xi1>, vector<16x64xf32>
    %c0_61 = arith.constant 0 : index
    %c0_62 = arith.constant 0 : index
    %88 = vector.load %arg14[%c0_61, %c0_62] : memref<64x64xbf16, #tpu.memory_space<vmem>>, vector<64x64xbf16>
    %89 = arith.truncf %87 : vector<16x64xf32> to vector<16x64xbf16>
    %cst_63 = arith.constant dense<0.000000e+00> : vector<16x64xf32>
    %90 = tpu.matmul %89, %88, %cst_63 {dimension_numbers = #tpu.dot_dimension_numbers<[1], [0], [0], [1], [0, 0, 1, 1], [], []>} : vector<16x64xbf16>, vector<64x64xbf16>, vector<16x64xf32> -> vector<16x64xf32>
    %c0_64 = arith.constant 0 : index
    %c0_65 = arith.constant 0 : index
    %91 = vector.load %arg13[%c0_64, %c0_65] : memref<1x64xf32, #tpu.memory_space<vmem>>, vector<1x64xf32>
    %92 = vector.broadcast %91 : vector<1x64xf32> to vector<16x64xf32>
    %93 = arith.addf %90, %92 : vector<16x64xf32>
    %cst_66 = arith.constant 0.000000e+00 : f32
    %94 = vector.broadcast %cst_66 : f32 to vector<16x64xf32>
    %95 = arith.cmpf oge, %93, %94 : vector<16x64xf32>
    %cst_67 = arith.constant 0.00999999977 : f32
    %96 = vector.broadcast %cst_67 : f32 to vector<16x64xf32>
    %97 = arith.mulf %96, %93 : vector<16x64xf32>
    %98 = arith.select %95, %93, %97 : vector<16x64xi1>, vector<16x64xf32>
    %c0_68 = arith.constant 0 : index
    %c0_69 = arith.constant 0 : index
    %c0_70 = arith.constant 0 : index
    %99 = vector.load %arg11[%c0_68, %c0_69, %c0_70] : memref<3x16x16xbf16, #tpu.memory_space<vmem>>, vector<1x16x16xbf16>
    %100 = vector.shape_cast %99 : vector<1x16x16xbf16> to vector<16x16xbf16>
    %101 = arith.truncf %98 : vector<16x64xf32> to vector<16x64xbf16>
    %cst_71 = arith.constant dense<0.000000e+00> : vector<16x64xf32>
    %102 = tpu.matmul %100, %101, %cst_71 {dimension_numbers = #tpu.dot_dimension_numbers<[1], [0], [0], [1], [0, 0, 1, 1], [], []>} : vector<16x16xbf16>, vector<16x64xbf16>, vector<16x64xf32> -> vector<16x64xf32>
    %c0_72 = arith.constant 0 : index
    %c0_73 = arith.constant 0 : index
    %c0_74 = arith.constant 0 : index
    %103 = vector.load %arg12[%c0_72, %c0_73, %c0_74] : memref<3x64x64xbf16, #tpu.memory_space<vmem>>, vector<1x64x64xbf16>
    %104 = vector.shape_cast %103 : vector<1x64x64xbf16> to vector<64x64xbf16>
    %105 = arith.truncf %102 : vector<16x64xf32> to vector<16x64xbf16>
    %cst_75 = arith.constant dense<0.000000e+00> : vector<16x64xf32>
    %106 = tpu.matmul %105, %104, %cst_75 {dimension_numbers = #tpu.dot_dimension_numbers<[1], [0], [0], [1], [0, 0, 1, 1], [], []>} : vector<16x64xbf16>, vector<64x64xbf16>, vector<16x64xf32> -> vector<16x64xf32>
    %c0_76 = arith.constant 0 : index
    %c0_77 = arith.constant 0 : index
    %107 = vector.load %arg15[%c0_76, %c0_77] : memref<1x64xf32, #tpu.memory_space<vmem>>, vector<1x64xf32>
    %108 = vector.broadcast %107 : vector<1x64xf32> to vector<16x64xf32>
    %109 = arith.addf %106, %108 : vector<16x64xf32>
    %c1_78 = arith.constant 1 : index
    %c0_79 = arith.constant 0 : index
    %c0_80 = arith.constant 0 : index
    %110 = vector.load %arg11[%c1_78, %c0_79, %c0_80] : memref<3x16x16xbf16, #tpu.memory_space<vmem>>, vector<1x16x16xbf16>
    %111 = vector.shape_cast %110 : vector<1x16x16xbf16> to vector<16x16xbf16>
    %112 = arith.truncf %98 : vector<16x64xf32> to vector<16x64xbf16>
    %cst_81 = arith.constant dense<0.000000e+00> : vector<16x64xf32>
    %113 = tpu.matmul %111, %112, %cst_81 {dimension_numbers = #tpu.dot_dimension_numbers<[1], [0], [0], [1], [0, 0, 1, 1], [], []>} : vector<16x16xbf16>, vector<16x64xbf16>, vector<16x64xf32> -> vector<16x64xf32>
    %c1_82 = arith.constant 1 : index
    %c0_83 = arith.constant 0 : index
    %c0_84 = arith.constant 0 : index
    %114 = vector.load %arg12[%c1_82, %c0_83, %c0_84] : memref<3x64x64xbf16, #tpu.memory_space<vmem>>, vector<1x64x64xbf16>
    %115 = vector.shape_cast %114 : vector<1x64x64xbf16> to vector<64x64xbf16>
    %116 = arith.truncf %113 : vector<16x64xf32> to vector<16x64xbf16>
    %cst_85 = arith.constant dense<0.000000e+00> : vector<16x64xf32>
    %117 = tpu.matmul %116, %115, %cst_85 {dimension_numbers = #tpu.dot_dimension_numbers<[1], [0], [0], [1], [0, 0, 1, 1], [], []>} : vector<16x64xbf16>, vector<64x64xbf16>, vector<16x64xf32> -> vector<16x64xf32>
    %118 = arith.addf %109, %117 : vector<16x64xf32>
    %c2_86 = arith.constant 2 : index
    %c0_87 = arith.constant 0 : index
    %c0_88 = arith.constant 0 : index
    %119 = vector.load %arg11[%c2_86, %c0_87, %c0_88] : memref<3x16x16xbf16, #tpu.memory_space<vmem>>, vector<1x16x16xbf16>
    %120 = vector.shape_cast %119 : vector<1x16x16xbf16> to vector<16x16xbf16>
    %121 = arith.truncf %98 : vector<16x64xf32> to vector<16x64xbf16>
    %cst_89 = arith.constant dense<0.000000e+00> : vector<16x64xf32>
    %122 = tpu.matmul %120, %121, %cst_89 {dimension_numbers = #tpu.dot_dimension_numbers<[1], [0], [0], [1], [0, 0, 1, 1], [], []>} : vector<16x16xbf16>, vector<16x64xbf16>, vector<16x64xf32> -> vector<16x64xf32>
    %c2_90 = arith.constant 2 : index
    %c0_91 = arith.constant 0 : index
    %c0_92 = arith.constant 0 : index
    %123 = vector.load %arg12[%c2_90, %c0_91, %c0_92] : memref<3x64x64xbf16, #tpu.memory_space<vmem>>, vector<1x64x64xbf16>
    %124 = vector.shape_cast %123 : vector<1x64x64xbf16> to vector<64x64xbf16>
    %125 = arith.truncf %122 : vector<16x64xf32> to vector<16x64xbf16>
    %cst_93 = arith.constant dense<0.000000e+00> : vector<16x64xf32>
    %126 = tpu.matmul %125, %124, %cst_93 {dimension_numbers = #tpu.dot_dimension_numbers<[1], [0], [0], [1], [0, 0, 1, 1], [], []>} : vector<16x64xbf16>, vector<64x64xbf16>, vector<16x64xf32> -> vector<16x64xf32>
    %127 = arith.addf %118, %126 : vector<16x64xf32>
    %cst_94 = arith.constant 0.000000e+00 : f32
    %128 = vector.broadcast %cst_94 : f32 to vector<16x64xf32>
    %129 = arith.cmpf oge, %127, %128 : vector<16x64xf32>
    %cst_95 = arith.constant 0.00999999977 : f32
    %130 = vector.broadcast %cst_95 : f32 to vector<16x64xf32>
    %131 = arith.mulf %130, %127 : vector<16x64xf32>
    %132 = arith.select %129, %127, %131 : vector<16x64xi1>, vector<16x64xf32>
    %c0_96 = arith.constant 0 : index
    %c0_97 = arith.constant 0 : index
    %133 = vector.load %arg17[%c0_96, %c0_97] : memref<64x64xbf16, #tpu.memory_space<vmem>>, vector<64x64xbf16>
    %134 = arith.truncf %132 : vector<16x64xf32> to vector<16x64xbf16>
    %cst_98 = arith.constant dense<0.000000e+00> : vector<16x64xf32>
    %135 = tpu.matmul %134, %133, %cst_98 {dimension_numbers = #tpu.dot_dimension_numbers<[1], [0], [0], [1], [0, 0, 1, 1], [], []>} : vector<16x64xbf16>, vector<64x64xbf16>, vector<16x64xf32> -> vector<16x64xf32>
    %c0_99 = arith.constant 0 : index
    %c0_100 = arith.constant 0 : index
    %136 = vector.load %arg16[%c0_99, %c0_100] : memref<1x64xf32, #tpu.memory_space<vmem>>, vector<1x64xf32>
    %137 = vector.broadcast %136 : vector<1x64xf32> to vector<16x64xf32>
    %138 = arith.addf %135, %137 : vector<16x64xf32>
    %139 = arith.addf %138, %87 : vector<16x64xf32>
    %cst_101 = arith.constant 0.000000e+00 : f32
    %140 = vector.broadcast %cst_101 : f32 to vector<16x64xf32>
    %141 = arith.cmpf oge, %139, %140 : vector<16x64xf32>
    %cst_102 = arith.constant 0.00999999977 : f32
    %142 = vector.broadcast %cst_102 : f32 to vector<16x64xf32>
    %143 = arith.mulf %142, %139 : vector<16x64xf32>
    %144 = arith.select %141, %139, %143 : vector<16x64xi1>, vector<16x64xf32>
    %c0_103 = arith.constant 0 : index
    %c0_104 = arith.constant 0 : index
    %145 = vector.load %arg23[%c0_103, %c0_104] : memref<64x64xbf16, #tpu.memory_space<vmem>>, vector<64x64xbf16>
    %146 = arith.truncf %144 : vector<16x64xf32> to vector<16x64xbf16>
    %cst_105 = arith.constant dense<0.000000e+00> : vector<16x64xf32>
    %147 = tpu.matmul %146, %145, %cst_105 {dimension_numbers = #tpu.dot_dimension_numbers<[1], [0], [0], [1], [0, 0, 1, 1], [], []>} : vector<16x64xbf16>, vector<64x64xbf16>, vector<16x64xf32> -> vector<16x64xf32>
    %c0_106 = arith.constant 0 : index
    %c0_107 = arith.constant 0 : index
    %148 = vector.load %arg22[%c0_106, %c0_107] : memref<1x64xf32, #tpu.memory_space<vmem>>, vector<1x64xf32>
    %149 = vector.broadcast %148 : vector<1x64xf32> to vector<16x64xf32>
    %150 = arith.addf %147, %149 : vector<16x64xf32>
    %cst_108 = arith.constant 0.000000e+00 : f32
    %151 = vector.broadcast %cst_108 : f32 to vector<16x64xf32>
    %152 = arith.cmpf oge, %150, %151 : vector<16x64xf32>
    %cst_109 = arith.constant 0.00999999977 : f32
    %153 = vector.broadcast %cst_109 : f32 to vector<16x64xf32>
    %154 = arith.mulf %153, %150 : vector<16x64xf32>
    %155 = arith.select %152, %150, %154 : vector<16x64xi1>, vector<16x64xf32>
    %c0_110 = arith.constant 0 : index
    %c0_111 = arith.constant 0 : index
    %156 = vector.load %arg24[%c0_110, %c0_111] : memref<64x128xbf16, #tpu.memory_space<vmem>>, vector<64x128xbf16>
    %157 = arith.truncf %155 : vector<16x64xf32> to vector<16x64xbf16>
    %cst_112 = arith.constant dense<0.000000e+00> : vector<16x128xf32>
    %158 = tpu.matmul %157, %156, %cst_112 {dimension_numbers = #tpu.dot_dimension_numbers<[1], [0], [0], [1], [0, 0, 1, 1], [], []>} : vector<16x64xbf16>, vector<64x128xbf16>, vector<16x128xf32> -> vector<16x128xf32>
    %159 = arith.addf %35, %158 : vector<16x128xf32>
    %c0_113 = arith.constant 0 : index
    %c0_114 = arith.constant 0 : index
    %160 = vector.load %arg25[%c0_113, %c0_114] : memref<1x128xf32, #tpu.memory_space<vmem>>, vector<1x128xf32>
    %161 = vector.broadcast %160 : vector<1x128xf32> to vector<16x128xf32>
    %162 = arith.addf %159, %161 : vector<16x128xf32>
    %cst_115 = arith.constant 0.000000e+00 : f32
    %163 = vector.broadcast %cst_115 : f32 to vector<16x128xf32>
    %164 = arith.cmpf oge, %162, %163 : vector<16x128xf32>
    %cst_116 = arith.constant 0.00999999977 : f32
    %165 = vector.broadcast %cst_116 : f32 to vector<16x128xf32>
    %166 = arith.mulf %165, %162 : vector<16x128xf32>
    %167 = arith.select %164, %162, %166 : vector<16x128xi1>, vector<16x128xf32>
    %c0_117 = arith.constant 0 : index
    %c0_118 = arith.constant 0 : index
    %168 = vector.load %arg26[%c0_117, %c0_118] : memref<16x128xf32, #tpu.memory_space<vmem>>, vector<16x128xf32>
    tpu.vector_store %arg26[%c0_117, %c0_118], %167 {strides = array<i32>} : memref<16x128xf32, #tpu.memory_space<vmem>>, vector<16x128xf32>,
    return
  }
  func.func @transform_0(%arg0: i32) -> (i32, i32) {
    %c0_i32 = arith.constant 0 : i32
    %c0_i32_0 = arith.constant 0 : i32
    return %arg0, %c0_i32 : i32, i32
  }
  func.func @transform_1(%arg0: i32) -> (i32, i32, i32) {
    %c0_i32 = arith.constant 0 : i32
    %c0_i32_0 = arith.constant 0 : i32
    %c0_i32_1 = arith.constant 0 : i32
    %c0_i32_2 = arith.constant 0 : i32
    return %c0_i32, %c0_i32_0, %c0_i32_1 : i32, i32, i32
  }
  func.func @transform_2(%arg0: i32) -> (i32, i32, i32) {
    %c0_i32 = arith.constant 0 : i32
    %c0_i32_0 = arith.constant 0 : i32
    %c0_i32_1 = arith.constant 0 : i32
    %c0_i32_2 = arith.constant 0 : i32
    return %c0_i32, %c0_i32_0, %c0_i32_1 : i32, i32, i32
  }
  func.func @transform_3(%arg0: i32) -> (i32, i32) {
    %c0_i32 = arith.constant 0 : i32
    %c0_i32_0 = arith.constant 0 : i32
    %c0_i32_1 = arith.constant 0 : i32
    return %c0_i32, %c0_i32_0 : i32, i32
  }
  func.func @transform_4(%arg0: i32) -> (i32, i32) {
    %c0_i32 = arith.constant 0 : i32
    %c0_i32_0 = arith.constant 0 : i32
    %c0_i32_1 = arith.constant 0 : i32
    return %c0_i32, %c0_i32_0 : i32, i32
  }
  func.func @transform_5(%arg0: i32) -> (i32, i32) {
    %c0_i32 = arith.constant 0 : i32
    %c0_i32_0 = arith.constant 0 : i32
    %c0_i32_1 = arith.constant 0 : i32
    return %c0_i32, %c0_i32_0 : i32, i32
  }
  func.func @transform_6(%arg0: i32) -> (i32, i32) {
    %c0_i32 = arith.constant 0 : i32
    %c0_i32_0 = arith.constant 0 : i32
    %c0_i32_1 = arith.constant 0 : i32
    return %c0_i32, %c0_i32_0 : i32, i32
  }
  func.func @transform_7(%arg0: i32) -> (i32, i32) {
    %c0_i32 = arith.constant 0 : i32
    %c0_i32_0 = arith.constant 0 : i32
    %c0_i32_1 = arith.constant 0 : i32
    return %c0_i32, %c0_i32_0 : i32, i32
  }
  func.func @transform_8(%arg0: i32) -> (i32, i32) {
    %c0_i32 = arith.constant 0 : i32
    %c0_i32_0 = arith.constant 0 : i32
    %c0_i32_1 = arith.constant 0 : i32
    return %c0_i32, %c0_i32_0 : i32, i32
  }
  func.func @transform_9(%arg0: i32) -> (i32, i32) {
    %c0_i32 = arith.constant 0 : i32
    %c0_i32_0 = arith.constant 0 : i32
    %c0_i32_1 = arith.constant 0 : i32
    return %c0_i32, %c0_i32_0 : i32, i32
  }
  func.func @transform_10(%arg0: i32) -> (i32, i32, i32) {
    %c0_i32 = arith.constant 0 : i32
    %c0_i32_0 = arith.constant 0 : i32
    %c0_i32_1 = arith.constant 0 : i32
    %c0_i32_2 = arith.constant 0 : i32
    return %c0_i32, %c0_i32_0, %c0_i32_1 : i32, i32, i32
  }
  func.func @transform_11(%arg0: i32) -> (i32, i32, i32) {
    %c0_i32 = arith.constant 0 : i32
    %c0_i32_0 = arith.constant 0 : i32
    %c0_i32_1 = arith.constant 0 : i32
    %c0_i32_2 = arith.constant 0 : i32
    return %c0_i32, %c0_i32_0, %c0_i32_1 : i32, i32, i32
  }
  func.func @transform_12(%arg0: i32) -> (i32, i32) {
    %c0_i32 = arith.constant 0 : i32
    %c0_i32_0 = arith.constant 0 : i32
    %c0_i32_1 = arith.constant 0 : i32
    return %c0_i32, %c0_i32_0 : i32, i32
  }
  func.func @transform_13(%arg0: i32) -> (i32, i32) {
    %c0_i32 = arith.constant 0 : i32
    %c0_i32_0 = arith.constant 0 : i32
    %c0_i32_1 = arith.constant 0 : i32
    return %c0_i32, %c0_i32_0 : i32, i32
  }
  func.func @transform_14(%arg0: i32) -> (i32, i32) {
    %c0_i32 = arith.constant 0 : i32
    %c0_i32_0 = arith.constant 0 : i32
    %c0_i32_1 = arith.constant 0 : i32
    return %c0_i32, %c0_i32_0 : i32, i32
  }
  func.func @transform_15(%arg0: i32) -> (i32, i32) {
    %c0_i32 = arith.constant 0 : i32
    %c0_i32_0 = arith.constant 0 : i32
    %c0_i32_1 = arith.constant 0 : i32
    return %c0_i32, %c0_i32_0 : i32, i32
  }
  func.func @transform_16(%arg0: i32) -> (i32, i32) {
    %c0_i32 = arith.constant 0 : i32
    %c0_i32_0 = arith.constant 0 : i32
    %c0_i32_1 = arith.constant 0 : i32
    return %c0_i32, %c0_i32_0 : i32, i32
  }
  func.func @transform_17(%arg0: i32) -> (i32, i32) {
    %c0_i32 = arith.constant 0 : i32
    %c0_i32_0 = arith.constant 0 : i32
    %c0_i32_1 = arith.constant 0 : i32
    return %c0_i32, %c0_i32_0 : i32, i32
  }
  func.func @transform_18(%arg0: i32) -> (i32, i32) {
    %c0_i32 = arith.constant 0 : i32
    %c0_i32_0 = arith.constant 0 : i32
    %c0_i32_1 = arith.constant 0 : i32
    return %c0_i32, %c0_i32_0 : i32, i32
  }
  func.func @transform_19(%arg0: i32) -> (i32, i32) {
    %c0_i32 = arith.constant 0 : i32
    %c0_i32_0 = arith.constant 0 : i32
    %c0_i32_1 = arith.constant 0 : i32
    return %c0_i32, %c0_i32_0 : i32, i32
  }
  func.func @transform_20(%arg0: i32) -> (i32, i32) {
    %c0_i32 = arith.constant 0 : i32
    %c0_i32_0 = arith.constant 0 : i32
    %c0_i32_1 = arith.constant 0 : i32
    return %c0_i32, %c0_i32_0 : i32, i32
  }
  func.func @transform_21(%arg0: i32) -> (i32, i32) {
    %c0_i32 = arith.constant 0 : i32
    %c0_i32_0 = arith.constant 0 : i32
    %c0_i32_1 = arith.constant 0 : i32
    return %c0_i32, %c0_i32_0 : i32, i32
  }
  func.func @transform_22(%arg0: i32) -> (i32, i32) {
    %c0_i32 = arith.constant 0 : i32
    %c0_i32_0 = arith.constant 0 : i32
    %c0_i32_1 = arith.constant 0 : i32
    return %c0_i32, %c0_i32_0 : i32, i32
  }
  func.func @transform_23(%arg0: i32) -> (i32, i32) {
    %c0_i32 = arith.constant 0 : i32
    %c0_i32_0 = arith.constant 0 : i32
    %c0_i32_1 = arith.constant 0 : i32
    return %c0_i32, %c0_i32_0 : i32, i32
  }
  func.func @transform_24(%arg0: i32) -> (i32, i32) {
    %c0_i32 = arith.constant 0 : i32
    %c0_i32_0 = arith.constant 0 : i32
    %c0_i32_1 = arith.constant 0 : i32
    return %c0_i32, %c0_i32_0 : i32, i32
  }
  func.func @transform_25(%arg0: i32) -> (i32, i32) {
    %c0_i32 = arith.constant 0 : i32
    %c0_i32_0 = arith.constant 0 : i32
    return %arg0, %c0_i32 : i32, i32
  }
}

</mosaic_0001>

<llo_original>
// kernel: fwd.1
$region0: #{fwd.1}
  #allocation0 [shape = 'u32[]', space=smem, size = 0x4, offset = 0x4, fixed_abs, tag = 'smem constant byte address 0x4 - core index']
  #allocation1 [shape = 'u32[144,128]{1,0:T(1,128)}', space=vmem, size = 0x12000, scoped, tag = 'internal scratch']
  %s0 = inlined_call_operand.vmem [shape: bf16[32,128], index: 0, kind: input, shape index: {}]
  %s1 = inlined_call_operand.vmem [shape: bf16[3,16,32], index: 1, kind: input, shape index: {}]
  %s2 = inlined_call_operand.vmem [shape: bf16[3,128,64], index: 2, kind: input, shape index: {}]
  %s3 = inlined_call_operand.vmem [shape: f32[1,64], index: 3, kind: input, shape index: {}]
  %s4 = inlined_call_operand.vmem [shape: f32[1,64], index: 4, kind: input, shape index: {}]
  %s5 = inlined_call_operand.vmem [shape: bf16[64,64], index: 5, kind: input, shape index: {}]
  %s6 = inlined_call_operand.vmem [shape: bf16[16,32], index: 6, kind: input, shape index: {}, may-alias: {6,17}]
  %s7 = inlined_call_operand.vmem [shape: bf16[128,64], index: 7, kind: input, shape index: {}]
  %s8 = inlined_call_operand.vmem [shape: f32[1,384], index: 8, kind: input, shape index: {}]
  %s9 = inlined_call_operand.vmem [shape: bf16[128,384], index: 9, kind: input, shape index: {}]
  %s10 = inlined_call_operand.vmem [shape: bf16[3,16,16], index: 10, kind: input, shape index: {}]
  %s11 = inlined_call_operand.vmem [shape: bf16[3,64,64], index: 11, kind: input, shape index: {}]
  %s12 = inlined_call_operand.vmem [shape: f32[1,64], index: 12, kind: input, shape index: {}]
  %s13 = inlined_call_operand.vmem [shape: bf16[64,64], index: 13, kind: input, shape index: {}]
  %s14 = inlined_call_operand.vmem [shape: f32[1,64], index: 14, kind: input, shape index: {}]
  %s15 = inlined_call_operand.vmem [shape: f32[1,64], index: 15, kind: input, shape index: {}]
  %s16 = inlined_call_operand.vmem [shape: bf16[64,64], index: 16, kind: input, shape index: {}]
  %s17 = inlined_call_operand.vmem [shape: bf16[16,32], index: 17, kind: input, shape index: {}, may-alias: {6,17}]
  %s18 = inlined_call_operand.vmem [shape: bf16[128,128], index: 18, kind: input, shape index: {}]
  %s19 = inlined_call_operand.vmem [shape: f32[1,128], index: 19, kind: input, shape index: {}]
  %s20 = inlined_call_operand.vmem [shape: bf16[128,128], index: 20, kind: input, shape index: {}]
  %s21 = inlined_call_operand.vmem [shape: f32[1,64], index: 21, kind: input, shape index: {}]
  %s22 = inlined_call_operand.vmem [shape: bf16[64,64], index: 22, kind: input, shape index: {}]
  %s23 = inlined_call_operand.vmem [shape: bf16[64,128], index: 23, kind: input, shape index: {}]
  %s24 = inlined_call_operand.vmem [shape: f32[1,128], index: 24, kind: input, shape index: {}]
  %s25 = inlined_call_operand.vmem [shape: f32[16,128], index: 25, kind: output, shape index: {}]
  %s26 = sld [smem:[#allocation0]]
  $region110: #{fwd.1} parent=0
    _
  %s28 = ssub.s32 1, %s26
  %s29 = scalar_select 0, %s28, %s26
  // Predicated region
  $region2: #{fwd.1} parent=0 // pred_check
    _
  $region3: #{fwd.1} parent=0 // pred_check_branch
    %31 = sbr.rel (0) target = $region5
  $region4: #{fwd.1} parent=0 // pred_region
    _
  $region5: #{fwd.1} parent=0 // pred_fallthru
    _
  // Predicated region
  $region6: #{fwd.1} parent=0 // pred_check
    _
  $region7: #{fwd.1} parent=0 // pred_check_branch
    %33 = sbr.rel (0) target = $region9
  $region8: #{fwd.1} parent=0 // pred_region
    _
  $region9: #{fwd.1} parent=0 // pred_fallthru
    _
  // Predicated region
  $region10: #{fwd.1} parent=0 // pred_check
    _
  $region11: #{fwd.1} parent=0 // pred_check_branch
    %35 = sbr.rel (0) target = $region13
  $region12: #{fwd.1} parent=0 // pred_region
    _
  $region13: #{fwd.1} parent=0 // pred_fallthru
    _
  // Predicated region
  $region14: #{fwd.1} parent=0 // pred_check
    _
  $region15: #{fwd.1} parent=0 // pred_check_branch
    %37 = sbr.rel (0) target = $region17
  $region16: #{fwd.1} parent=0 // pred_region
    _
  $region17: #{fwd.1} parent=0 // pred_fallthru
    _
  // Predicated region
  $region18: #{fwd.1} parent=0 // pred_check
    _
  $region19: #{fwd.1} parent=0 // pred_check_branch
    %39 = sbr.rel (0) target = $region21
  $region20: #{fwd.1} parent=0 // pred_region
    _
  $region21: #{fwd.1} parent=0 // pred_fallthru
    _
  // Predicated region
  $region22: #{fwd.1} parent=0 // pred_check
    _
  $region23: #{fwd.1} parent=0 // pred_check_branch
    %41 = sbr.rel (0) target = $region25
  $region24: #{fwd.1} parent=0 // pred_region
    _
  $region25: #{fwd.1} parent=0 // pred_fallthru
    _
  // Predicated region
  $region26: #{fwd.1} parent=0 // pred_check
    _
  $region27: #{fwd.1} parent=0 // pred_check_branch
    %43 = sbr.rel (0) target = $region29
  $region28: #{fwd.1} parent=0 // pred_region
    _
  $region29: #{fwd.1} parent=0 // pred_fallthru
    _
  // Predicated region
  $region30: #{fwd.1} parent=0 // pred_check
    _
  $region31: #{fwd.1} parent=0 // pred_check_branch
    %45 = sbr.rel (0) target = $region33
  $region32: #{fwd.1} parent=0 // pred_region
    _
  $region33: #{fwd.1} parent=0 // pred_fallthru
    _
  // Predicated region
  $region34: #{fwd.1} parent=0 // pred_check
    _
  $region35: #{fwd.1} parent=0 // pred_check_branch
    %47 = sbr.rel (0) target = $region37
  $region36: #{fwd.1} parent=0 // pred_region
    _
  $region37: #{fwd.1} parent=0 // pred_fallthru
    _
  // Predicated region
  $region38: #{fwd.1} parent=0 // pred_check
    _
  $region39: #{fwd.1} parent=0 // pred_check_branch
    %49 = sbr.rel (0) target = $region41
  $region40: #{fwd.1} parent=0 // pred_region
    _
  $region41: #{fwd.1} parent=0 // pred_fallthru
    _
  // Predicated region
  $region42: #{fwd.1} parent=0 // pred_check
    _
  $region43: #{fwd.1} parent=0 // pred_check_branch
    %51 = sbr.rel (0) target = $region45
  $region44: #{fwd.1} parent=0 // pred_region
    _
  $region45: #{fwd.1} parent=0 // pred_fallthru
    _
  // Predicated region
  $region46: #{fwd.1} parent=0 // pred_check
    _
  $region47: #{fwd.1} parent=0 // pred_check_branch
    %53 = sbr.rel (0) target = $region49
  $region48: #{fwd.1} parent=0 // pred_region
    _
  $region49: #{fwd.1} parent=0 // pred_fallthru
    _
  // Predicated region
  $region50: #{fwd.1} parent=0 // pred_check
    _
  $region51: #{fwd.1} parent=0 // pred_check_branch
    %55 = sbr.rel (0) target = $region53
  $region52: #{fwd.1} parent=0 // pred_region
    _
  $region53: #{fwd.1} parent=0 // pred_fallthru
    _
  // Predicated region
  $region54: #{fwd.1} parent=0 // pred_check
    _
  $region55: #{fwd.1} parent=0 // pred_check_branch
    %57 = sbr.rel (0) target = $region57
  $region56: #{fwd.1} parent=0 // pred_region
    _
  $region57: #{fwd.1} parent=0 // pred_fallthru
    _
  // Predicated region
  $region58: #{fwd.1} parent=0 // pred_check
    _
  $region59: #{fwd.1} parent=0 // pred_check_branch
    %59 = sbr.rel (0) target = $region61
  $region60: #{fwd.1} parent=0 // pred_region
    _
  $region61: #{fwd.1} parent=0 // pred_fallthru
    _
  // Predicated region
  $region62: #{fwd.1} parent=0 // pred_check
    _
  $region63: #{fwd.1} parent=0 // pred_check_branch
    %61 = sbr.rel (0) target = $region65
  $region64: #{fwd.1} parent=0 // pred_region
    _
  $region65: #{fwd.1} parent=0 // pred_fallthru
    _
  // Predicated region
  $region66: #{fwd.1} parent=0 // pred_check
    _
  $region67: #{fwd.1} parent=0 // pred_check_branch
    %63 = sbr.rel (0) target = $region69
  $region68: #{fwd.1} parent=0 // pred_region
    _
  $region69: #{fwd.1} parent=0 // pred_fallthru
    _
  // Predicated region
  $region70: #{fwd.1} parent=0 // pred_check
    _
  $region71: #{fwd.1} parent=0 // pred_check_branch
    %65 = sbr.rel (0) target = $region73
  $region72: #{fwd.1} parent=0 // pred_region
    _
  $region73: #{fwd.1} parent=0 // pred_fallthru
    _
  // Predicated region
  $region74: #{fwd.1} parent=0 // pred_check
    _
  $region75: #{fwd.1} parent=0 // pred_check_branch
    %67 = sbr.rel (0) target = $region77
  $region76: #{fwd.1} parent=0 // pred_region
    _
  $region77: #{fwd.1} parent=0 // pred_fallthru
    _
  // Predicated region
  $region78: #{fwd.1} parent=0 // pred_check
    _
  $region79: #{fwd.1} parent=0 // pred_check_branch
    %69 = sbr.rel (0) target = $region81
  $region80: #{fwd.1} parent=0 // pred_region
    _
  $region81: #{fwd.1} parent=0 // pred_fallthru
    _
  // Predicated region
  $region82: #{fwd.1} parent=0 // pred_check
    _
  $region83: #{fwd.1} parent=0 // pred_check_branch
    %71 = sbr.rel (0) target = $region85
  $region84: #{fwd.1} parent=0 // pred_region
    _
  $region85: #{fwd.1} parent=0 // pred_fallthru
    _
  // Predicated region
  $region86: #{fwd.1} parent=0 // pred_check
    _
  $region87: #{fwd.1} parent=0 // pred_check_branch
    %73 = sbr.rel (0) target = $region89
  $region88: #{fwd.1} parent=0 // pred_region
    _
  $region89: #{fwd.1} parent=0 // pred_fallthru
    _
  // Predicated region
  $region90: #{fwd.1} parent=0 // pred_check
    _
  $region91: #{fwd.1} parent=0 // pred_check_branch
    %75 = sbr.rel (0) target = $region93
  $region92: #{fwd.1} parent=0 // pred_region
    _
  $region93: #{fwd.1} parent=0 // pred_fallthru
    _
  // Predicated region
  $region94: #{fwd.1} parent=0 // pred_check
    _
  $region95: #{fwd.1} parent=0 // pred_check_branch
    %77 = sbr.rel (0) target = $region97
  $region96: #{fwd.1} parent=0 // pred_region
    _
  $region97: #{fwd.1} parent=0 // pred_fallthru
    _
  // Predicated region
  $region98: #{fwd.1} parent=0 // pred_check
    _
  $region99: #{fwd.1} parent=0 // pred_check_branch
    %79 = sbr.rel (0) target = $region101
  $region100: #{fwd.1} parent=0 // pred_region
    _
  $region101: #{fwd.1} parent=0 // pred_fallthru
    _
  %v81 = vld [vmem:[%s0] sm:$0xf]
  %v82 = vld [vmem:[%s0 + $0x4] sm:$0xf]
  %v83 = vld [vmem:[%s0 + $0x8] sm:$0xf]
  %v84 = vld [vmem:[%s0 + $0xc] sm:$0xf]
  %v85 = vld [vmem:[%s20] sm:$0xf]
  %v86 = vld [vmem:[%s20 + $0x4] sm:$0xf]
  %v87 = vld [vmem:[%s20 + $0x8] sm:$0xf]
  %v88 = vld [vmem:[%s20 + $0xc] sm:$0xf]
  %v89 = vld [vmem:[%s20 + $0x10] sm:$0xf]
  %v90 = vld [vmem:[%s20 + $0x14] sm:$0xf]
  %v91 = vld [vmem:[%s20 + $0x18] sm:$0xf]
  %v92 = vld [vmem:[%s20 + $0x1c] sm:$0xf]
  %v93 = vld [vmem:[%s20 + $0x20] sm:$0xf]
  %v94 = vld [vmem:[%s20 + $0x24] sm:$0xf]
  %v95 = vld [vmem:[%s20 + $0x28] sm:$0xf]
  %v96 = vld [vmem:[%s20 + $0x2c] sm:$0xf]
  %v97 = vld [vmem:[%s20 + $0x30] sm:$0xf]
  %v98 = vld [vmem:[%s20 + $0x34] sm:$0xf]
  %v99 = vld [vmem:[%s20 + $0x38] sm:$0xf]
  %v100 = vld [vmem:[%s20 + $0x3c] sm:$0xf]
  %v101 = vld [vmem:[%s19] sm:$0x1]
  %v103 = vlaneseq
  %v104 = vshrl.u32 %v103, 7
  %v105 = vsub.s32 0, %v104
  %v106 = vrot.slane %v101, %v105
  %v112 = vunpack.c.l.b16 %v81
  %v113 = vunpack.c.l.b16 %v82
  %v114 = vunpack.c.l.b16 %v83
  %v115 = vunpack.c.l.b16 %v84
  %v116 = vpack.c.b16 %v113, %v112
  %v117 = vpack.c.b16 %v115, %v114
  %v136 = vunpack.c.l.b16 %v85
  %v137 = vunpack.c.l.b16 %v86
  %v138 = vunpack.c.l.b16 %v87
  %v139 = vunpack.c.l.b16 %v88
  %v140 = vunpack.c.l.b16 %v89
  %v141 = vunpack.c.l.b16 %v90
  %v142 = vunpack.c.l.b16 %v91
  %v143 = vunpack.c.l.b16 %v92
  %v144 = vunpack.c.l.b16 %v93
  %v145 = vunpack.c.l.b16 %v94
  %v146 = vunpack.c.l.b16 %v95
  %v147 = vunpack.c.l.b16 %v96
  %v148 = vunpack.c.l.b16 %v97
  %v149 = vunpack.c.l.b16 %v98
  %v150 = vunpack.c.l.b16 %v99
  %v151 = vunpack.c.l.b16 %v100
  %v152 = vpack.c.b16 %v137, %v136
  %v153 = vpack.c.b16 %v139, %v138
  %v154 = vpack.c.b16 %v141, %v140
  %v155 = vpack.c.b16 %v143, %v142
  %v156 = vpack.c.b16 %v145, %v144
  %v157 = vpack.c.b16 %v147, %v146
  %v158 = vpack.c.b16 %v149, %v148
  %v159 = vpack.c.b16 %v151, %v150
  %168 = vmatprep.subr.bf16.mxu0 0
  %169 = vmatpush1.bf16.msra.mxu0 %v159
  %170 = vmatprep.subr.bf16.mxu0 0
  %171 = vmatpush1.bf16.msra.mxu0 %v158
  %172 = vmatprep.subr.bf16.mxu0 0
  %173 = vmatpush1.bf16.msra.mxu0 %v157
  %174 = vmatprep.subr.bf16.mxu0 0
  %175 = vmatpush1.bf16.msra.mxu0 %v156
  %176 = vmatprep.subr.bf16.mxu0 0
  %177 = vmatpush1.bf16.msra.mxu0 %v155
  %178 = vmatprep.subr.bf16.mxu0 0
  %179 = vmatpush1.bf16.msra.mxu0 %v154
  %180 = vmatprep.subr.bf16.mxu0 0
  %181 = vmatpush1.bf16.msra.mxu0 %v153
  %182 = vmatprep.subr.bf16.mxu0 0
  %183 = vmatpush1.bf16.msra.mxu0 %v152
  %184 = vmatprep.subr.bf16.mxu0 0
  %185 = vmatpush2.bf16.msra.mxu0 0
  %186 = vmatprep.subr.bf16.mxu0 0
  %187 = vmatpush2.bf16.msra.mxu0 0
  %188 = vmatprep.subr.bf16.mxu0 0
  %189 = vmatpush2.bf16.msra.mxu0 0
  %190 = vmatprep.subr.bf16.mxu0 0
  %191 = vmatpush2.bf16.msra.mxu0 0
  %192 = vmatprep.subr.bf16.mxu0 0
  %193 = vmatpush2.bf16.msra.mxu0 0
  %194 = vmatprep.subr.bf16.mxu0 0
  %195 = vmatpush2.bf16.msra.mxu0 0
  %196 = vmatprep.subr.bf16.mxu0 0
  %197 = vmatpush2.bf16.msra.mxu0 0
  %198 = vmatprep.subr.bf16.mxu0 0
  %199 = vmatpush2.bf16.msra.mxu0 0
  %200 = vmatprep.mubr.bf16.mxu0 0
  %201 = vmatmul.mubr.bf16.gmra.mxu0 %v116
  %v202 = vpop.f32.mrf.mxu0
  %v203 = vadd.f32 %v106, %v202
  %v204 = vpop.f32.mrf.mxu0
  %v205 = vpop.f32.mrf.mxu0
  %v206 = vadd.f32 %v106, %v205
  %v207 = vpop.f32.mrf.mxu0
  %208 = vmatprep.mubr.bf16.mxu0 0
  %209 = vmatmul.mubr.bf16.gmra.mxu0 %v117
  %v210 = vpop.f32.mrf.mxu0
  %v211 = vadd.f32 %v106, %v210
  %v212 = vpop.f32.mrf.mxu0
  %v213 = vpop.f32.mrf.mxu0
  %v214 = vadd.f32 %v106, %v213
  %v215 = vpop.f32.mrf.mxu0
  %216 = vdwg.mxu0
  %vm217 = vcmp.ge.f32.partialorder %v203, 0.0
  %vm218 = vcmp.ge.f32.partialorder %v206, 0.0
  %vm219 = vcmp.ge.f32.partialorder %v211, 0.0
  %vm220 = vcmp.ge.f32.partialorder %v214, 0.0
  %v221 = vmul.f32 %v203, 0.01
  %v222 = vmul.f32 %v206, 0.01
  %v223 = vmul.f32 %v211, 0.01
  %v224 = vmul.f32 %v214, 0.01
  %v225 = vsel %vm217, %v203, %v221
  %v226 = vsel %vm218, %v206, %v222
  %v227 = vsel %vm219, %v211, %v223
  %v228 = vsel %vm220, %v214, %v224
  %v229 = vld [vmem:[%s9] sm:$0xff]
  %v230 = vld [vmem:[%s9 + $0x8] sm:$0xf]
  %v231 = vld [vmem:[%s9 + $0xc] sm:$0xff]
  %v232 = vld [vmem:[%s9 + $0x14] sm:$0xf]
  %v233 = vld [vmem:[%s9 + $0x18] sm:$0xff]
  %v234 = vld [vmem:[%s9 + $0x20] sm:$0xf]
  %v235 = vld [vmem:[%s9 + $0x24] sm:$0xff]
  %v236 = vld [vmem:[%s9 + $0x2c] sm:$0xf]
  %v237 = vld [vmem:[%s9 + $0x30] sm:$0xff]
  %v238 = vld [vmem:[%s9 + $0x38] sm:$0xf]
  %v239 = vld [vmem:[%s9 + $0x3c] sm:$0xff]
  %v240 = vld [vmem:[%s9 + $0x44] sm:$0xf]
  %v241 = vld [vmem:[%s9 + $0x48] sm:$0xff]
  %v242 = vld [vmem:[%s9 + $0x50] sm:$0xf]
  %v243 = vld [vmem:[%s9 + $0x54] sm:$0xff]
  %v244 = vld [vmem:[%s9 + $0x5c] sm:$0xf]
  %v245 = vld [vmem:[%s9 + $0x60] sm:$0xff]
  %v246 = vld [vmem:[%s9 + $0x68] sm:$0xf]
  %v247 = vld [vmem:[%s9 + $0x6c] sm:$0xff]
  %v248 = vld [vmem:[%s9 + $0x74] sm:$0xf]
  %v249 = vld [vmem:[%s9 + $0x78] sm:$0xff]
  %v250 = vld [vmem:[%s9 + $0x80] sm:$0xf]
  %v251 = vld [vmem:[%s9 + $0x84] sm:$0xff]
  %v252 = vld [vmem:[%s9 + $0x8c] sm:$0xf]
  %v253 = vld [vmem:[%s9 + $0x90] sm:$0xff]
  %v254 = vld [vmem:[%s9 + $0x98] sm:$0xf]
  %v255 = vld [vmem:[%s9 + $0x9c] sm:$0xff]
  %v256 = vld [vmem:[%s9 + $0xa4] sm:$0xf]
  %v257 = vld [vmem:[%s9 + $0xa8] sm:$0xff]
  %v258 = vld [vmem:[%s9 + $0xb0] sm:$0xf]
  %v259 = vld [vmem:[%s9 + $0xb4] sm:$0xff]
  %v260 = vld [vmem:[%s9 + $0xbc] sm:$0xf]
  %v261 = vpack.c.bf16 %v226, %v225
  %v262 = vpack.c.bf16 %v228, %v227
  %v263 = vld [vmem:[%s8] sm:$0x7]
  %v265 = vlaneseq
  %v266 = vshrl.u32 %v265, 7
  %v267 = vsub.s32 0, %v266
  %v268 = vrot.slane %v263, %v267
  %v269 = vlaneseq
  %v270 = vshrl.u32 %v269, 7
  %v271 = vsub.s32 1, %v270
  %v272 = vrot.slane %v263, %v271
  %v273 = vlaneseq
  %v274 = vshrl.u32 %v273, 7
  %v275 = vsub.s32 2, %v274
  %v276 = vrot.slane %v263, %v275
  %v312 = vunpack.c.l.b16 %v229
  %v313 = vunpack.c.h.b16 %v229
  %v314 = vunpack.c.l.b16 %v230
  %v315 = vunpack.c.l.b16 %v231
  %v316 = vunpack.c.h.b16 %v231
  %v317 = vunpack.c.l.b16 %v232
  %v318 = vunpack.c.l.b16 %v233
  %v319 = vunpack.c.h.b16 %v233
  %v320 = vunpack.c.l.b16 %v234
  %v321 = vunpack.c.l.b16 %v235
  %v322 = vunpack.c.h.b16 %v235
  %v323 = vunpack.c.l.b16 %v236
  %v324 = vunpack.c.l.b16 %v237
  %v325 = vunpack.c.h.b16 %v237
  %v326 = vunpack.c.l.b16 %v238
  %v327 = vunpack.c.l.b16 %v239
  %v328 = vunpack.c.h.b16 %v239
  %v329 = vunpack.c.l.b16 %v240
  %v330 = vunpack.c.l.b16 %v241
  %v331 = vunpack.c.h.b16 %v241
  %v332 = vunpack.c.l.b16 %v242
  %v333 = vunpack.c.l.b16 %v243
  %v334 = vunpack.c.h.b16 %v243
  %v335 = vunpack.c.l.b16 %v244
  %v336 = vunpack.c.l.b16 %v245
  %v337 = vunpack.c.h.b16 %v245
  %v338 = vunpack.c.l.b16 %v246
  %v339 = vunpack.c.l.b16 %v247
  %v340 = vunpack.c.h.b16 %v247
  %v341 = vunpack.c.l.b16 %v248
  %v342 = vunpack.c.l.b16 %v249
  %v343 = vunpack.c.h.b16 %v249
  %v344 = vunpack.c.l.b16 %v250
  %v345 = vunpack.c.l.b16 %v251
  %v346 = vunpack.c.h.b16 %v251
  %v347 = vunpack.c.l.b16 %v252
  %v348 = vunpack.c.l.b16 %v253
  %v349 = vunpack.c.h.b16 %v253
  %v350 = vunpack.c.l.b16 %v254
  %v351 = vunpack.c.l.b16 %v255
  %v352 = vunpack.c.h.b16 %v255
  %v353 = vunpack.c.l.b16 %v256
  %v354 = vunpack.c.l.b16 %v257
  %v355 = vunpack.c.h.b16 %v257
  %v356 = vunpack.c.l.b16 %v258
  %v357 = vunpack.c.l.b16 %v259
  %v358 = vunpack.c.h.b16 %v259
  %v359 = vunpack.c.l.b16 %v260
  %v360 = vpack.c.b16 %v315, %v312
  %v361 = vpack.c.b16 %v316, %v313
  %v362 = vpack.c.b16 %v317, %v314
  %v363 = vpack.c.b16 %v321, %v318
  %v364 = vpack.c.b16 %v322, %v319
  %v365 = vpack.c.b16 %v323, %v320
  %v366 = vpack.c.b16 %v327, %v324
  %v367 = vpack.c.b16 %v328, %v325
  %v368 = vpack.c.b16 %v329, %v326
  %v369 = vpack.c.b16 %v333, %v330
  %v370 = vpack.c.b16 %v334, %v331
  %v371 = vpack.c.b16 %v335, %v332
  %v372 = vpack.c.b16 %v339, %v336
  %v373 = vpack.c.b16 %v340, %v337
  %v374 = vpack.c.b16 %v341, %v338
  %v375 = vpack.c.b16 %v345, %v342
  %v376 = vpack.c.b16 %v346, %v343
  %v377 = vpack.c.b16 %v347, %v344
  %v378 = vpack.c.b16 %v351, %v348
  %v379 = vpack.c.b16 %v352, %v349
  %v380 = vpack.c.b16 %v353, %v350
  %v381 = vpack.c.b16 %v357, %v354
  %v382 = vpack.c.b16 %v358, %v355
  %v383 = vpack.c.b16 %v359, %v356
  %408 = vmatprep.subr.bf16.mxu0 %v382
  %409 = vmatpush1.bf16.msra.mxu0 %v381
  %410 = vmatprep.subr.bf16.mxu0 %v379
  %411 = vmatpush1.bf16.msra.mxu0 %v378
  %412 = vmatprep.subr.bf16.mxu0 %v376
  %413 = vmatpush1.bf16.msra.mxu0 %v375
  %414 = vmatprep.subr.bf16.mxu0 %v373
  %415 = vmatpush1.bf16.msra.mxu0 %v372
  %416 = vmatprep.subr.bf16.mxu0 %v370
  %417 = vmatpush1.bf16.msra.mxu0 %v369
  %418 = vmatprep.subr.bf16.mxu0 %v367
  %419 = vmatpush1.bf16.msra.mxu0 %v366
  %420 = vmatprep.subr.bf16.mxu0 %v364
  %421 = vmatpush1.bf16.msra.mxu0 %v363
  %422 = vmatprep.subr.bf16.mxu0 %v361
  %423 = vmatpush1.bf16.msra.mxu0 %v360
  %424 = vmatprep.subr.bf16.mxu0 0
  %425 = vmatpush2.bf16.msra.mxu0 0
  %426 = vmatprep.subr.bf16.mxu0 0
  %427 = vmatpush2.bf16.msra.mxu0 0
  %428 = vmatprep.subr.bf16.mxu0 0
  %429 = vmatpush2.bf16.msra.mxu0 0
  %430 = vmatprep.subr.bf16.mxu0 0
  %431 = vmatpush2.bf16.msra.mxu0 0
  %432 = vmatprep.subr.bf16.mxu0 0
  %433 = vmatpush2.bf16.msra.mxu0 0
  %434 = vmatprep.subr.bf16.mxu0 0
  %435 = vmatpush2.bf16.msra.mxu0 0
  %436 = vmatprep.subr.bf16.mxu0 0
  %437 = vmatpush2.bf16.msra.mxu0 0
  %438 = vmatprep.subr.bf16.mxu0 0
  %439 = vmatpush2.bf16.msra.mxu0 0
  %440 = vmatprep.mubr.bf16.mxu0 0
  %441 = vmatmul.mubr.bf16.gmra.mxu0 %v261
  %v442 = vpop.f32.mrf.mxu0
  %v443 = vadd.f32 %v268, %v442
  %v444 = vpop.f32.mrf.mxu0
  %v445 = vadd.f32 %v272, %v444
  %v446 = vpop.f32.mrf.mxu0
  %v447 = vadd.f32 %v268, %v446
  %v448 = vpop.f32.mrf.mxu0
  %v449 = vadd.f32 %v272, %v448
  %450 = vmatprep.mubr.bf16.mxu0 0
  %451 = vmatmul.mubr.bf16.gmra.mxu0 %v262
  %v452 = vpop.f32.mrf.mxu0
  %v453 = vadd.f32 %v268, %v452
  %v454 = vpop.f32.mrf.mxu0
  %v455 = vadd.f32 %v272, %v454
  %v456 = vpop.f32.mrf.mxu0
  %v457 = vadd.f32 %v268, %v456
  %v458 = vpop.f32.mrf.mxu0
  %v459 = vadd.f32 %v272, %v458
  %460 = vdwg.mxu0
  %461 = vmatprep.subr.bf16.mxu0 0
  %462 = vmatpush1.bf16.msra.mxu0 %v383
  %463 = vmatprep.subr.bf16.mxu0 0
  %464 = vmatpush1.bf16.msra.mxu0 %v380
  %465 = vmatprep.subr.bf16.mxu0 0
  %466 = vmatpush1.bf16.msra.mxu0 %v377
  %467 = vmatprep.subr.bf16.mxu0 0
  %468 = vmatpush1.bf16.msra.mxu0 %v374
  %469 = vmatprep.subr.bf16.mxu0 0
  %470 = vmatpush1.bf16.msra.mxu0 %v371
  %471 = vmatprep.subr.bf16.mxu0 0
  %472 = vmatpush1.bf16.msra.mxu0 %v368
  %473 = vmatprep.subr.bf16.mxu0 0
  %474 = vmatpush1.bf16.msra.mxu0 %v365
  %475 = vmatprep.subr.bf16.mxu0 0
  %476 = vmatpush1.bf16.msra.mxu0 %v362
  %477 = vmatprep.subr.bf16.mxu0 0
  %478 = vmatpush2.bf16.msra.mxu0 0
  %479 = vmatprep.subr.bf16.mxu0 0
  %480 = vmatpush2.bf16.msra.mxu0 0
  %481 = vmatprep.subr.bf16.mxu0 0
  %482 = vmatpush2.bf16.msra.mxu0 0
  %483 = vmatprep.subr.bf16.mxu0 0
  %484 = vmatpush2.bf16.msra.mxu0 0
  %485 = vmatprep.subr.bf16.mxu0 0
  %486 = vmatpush2.bf16.msra.mxu0 0
  %487 = vmatprep.subr.bf16.mxu0 0
  %488 = vmatpush2.bf16.msra.mxu0 0
  %489 = vmatprep.subr.bf16.mxu0 0
  %490 = vmatpush2.bf16.msra.mxu0 0
  %491 = vmatprep.subr.bf16.mxu0 0
  %492 = vmatpush2.bf16.msra.mxu0 0
  %493 = vmatprep.mubr.bf16.mxu0 0
  %494 = vmatmul.mubr.bf16.gmra.mxu0 %v261
  %v495 = vpop.f32.mrf.mxu0
  %v496 = vadd.f32 %v276, %v495
  %v497 = vpop.f32.mrf.mxu0
  %v498 = vpop.f32.mrf.mxu0
  %v499 = vadd.f32 %v276, %v498
  %v500 = vpop.f32.mrf.mxu0
  %501 = vmatprep.mubr.bf16.mxu0 0
  %502 = vmatmul.mubr.bf16.gmra.mxu0 %v262
  %v503 = vpop.f32.mrf.mxu0
  %v504 = vadd.f32 %v276, %v503
  %v505 = vpop.f32.mrf.mxu0
  %v506 = vpop.f32.mrf.mxu0
  %v507 = vadd.f32 %v276, %v506
  %v508 = vpop.f32.mrf.mxu0
  %509 = vdwg.mxu0
  %vm510 = vcmp.ge.f32.partialorder %v443, 0.0
  %vm511 = vcmp.ge.f32.partialorder %v447, 0.0
  %vm512 = vcmp.ge.f32.partialorder %v453, 0.0
  %vm513 = vcmp.ge.f32.partialorder %v457, 0.0
  %v514 = vmul.f32 %v443, 0.01
  %v515 = vmul.f32 %v447, 0.01
  %v516 = vmul.f32 %v453, 0.01
  %v517 = vmul.f32 %v457, 0.01
  %v518 = vsel %vm510, %v443, %v514
  %v519 = vsel %vm511, %v447, %v515
  %v520 = vsel %vm512, %v453, %v516
  %v521 = vsel %vm513, %v457, %v517
  %vm522 = vcmp.ge.f32.partialorder %v445, 0.0
  %vm523 = vcmp.ge.f32.partialorder %v449, 0.0
  %vm524 = vcmp.ge.f32.partialorder %v455, 0.0
  %vm525 = vcmp.ge.f32.partialorder %v459, 0.0
  %v526 = vmul.f32 %v445, 0.01
  %v527 = vmul.f32 %v449, 0.01
  %v528 = vmul.f32 %v455, 0.01
  %v529 = vmul.f32 %v459, 0.01
  %v530 = vsel %vm522, %v445, %v526
  %v531 = vsel %vm523, %v449, %v527
  %v532 = vsel %vm524, %v455, %v528
  %v533 = vsel %vm525, %v459, %v529
  %v534 = vld [vmem:[%s17] sm:$0xf]
  %v535 = vld [vmem:[%s17 + $0x4] sm:$0xf]
  %v536 = vpack.c.bf16 %v519, %v518
  %v537 = vpack.c.bf16 %v521, %v520
  %v540 = vunpack.c.l.b16 %v534
  %v541 = vunpack.c.l.b16 %v535
  %v542 = vpack.c.b16 %v541, %v540
  %vm543 = vcmask 261120
  %v545 = vsel %vm543, %v542, 0
  %547 = vmatprep.subr.bf16.mxu0 0
  %548 = vmatpush1.bf16.msra.mxu0 0
  %549 = vmatprep.subr.bf16.mxu0 0
  %550 = vmatpush1.bf16.msra.mxu0 0
  %551 = vmatprep.subr.bf16.mxu0 0
  %552 = vmatpush1.bf16.msra.mxu0 0
  %553 = vmatprep.subr.bf16.mxu0 0
  %554 = vmatpush1.bf16.msra.mxu0 0
  %555 = vmatprep.subr.bf16.mxu0 0
  %556 = vmatpush1.bf16.msra.mxu0 0
  %557 = vmatprep.subr.bf16.mxu0 0
  %558 = vmatpush1.bf16.msra.mxu0 0
  %559 = vmatprep.subr.bf16.mxu0 0
  %560 = vmatpush1.bf16.msra.mxu0 %v537
  %561 = vmatprep.subr.bf16.mxu0 0
  %562 = vmatpush1.bf16.msra.mxu0 %v536
  %563 = vmatprep.subr.bf16.mxu0 0
  %564 = vmatpush2.bf16.msra.mxu0 0
  %565 = vmatprep.subr.bf16.mxu0 0
  %566 = vmatpush2.bf16.msra.mxu0 0
  %567 = vmatprep.subr.bf16.mxu0 0
  %568 = vmatpush2.bf16.msra.mxu0 0
  %569 = vmatprep.subr.bf16.mxu0 0
  %570 = vmatpush2.bf16.msra.mxu0 0
  %571 = vmatprep.subr.bf16.mxu0 0
  %572 = vmatpush2.bf16.msra.mxu0 0
  %573 = vmatprep.subr.bf16.mxu0 0
  %574 = vmatpush2.bf16.msra.mxu0 0
  %575 = vmatprep.subr.bf16.mxu0 0
  %576 = vmatpush2.bf16.msra.mxu0 0
  %577 = vmatprep.subr.bf16.mxu0 0
  %578 = vmatpush2.bf16.msra.mxu0 0
  %579 = vmatprep.mubr.bf16.mxu0 0
  %580 = vmatmul.mubr.bf16.gmra.mxu0 %v545
  %v581 = vpop.f32.mrf.mxu0
  %v582 = vadd.f32 0.0, %v581
  %v583 = vpop.f32.mrf.mxu0
  %v584 = vpop.f32.mrf.mxu0
  %v585 = vadd.f32 0.0, %v584
  %v586 = vpop.f32.mrf.mxu0
  %587 = vdwg.mxu0
  %v588 = vld [vmem:[%s18] sm:$0xf]
  %v589 = vld [vmem:[%s18 + $0x4] sm:$0xf]
  %v590 = vld [vmem:[%s18 + $0x8] sm:$0xf]
  %v591 = vld [vmem:[%s18 + $0xc] sm:$0xf]
  %v592 = vld [vmem:[%s18 + $0x10] sm:$0xf]
  %v593 = vld [vmem:[%s18 + $0x14] sm:$0xf]
  %v594 = vld [vmem:[%s18 + $0x18] sm:$0xf]
  %v595 = vld [vmem:[%s18 + $0x1c] sm:$0xf]
  %v596 = vld [vmem:[%s18 + $0x20] sm:$0xf]
  %v597 = vld [vmem:[%s18 + $0x24] sm:$0xf]
  %v598 = vld [vmem:[%s18 + $0x28] sm:$0xf]
  %v599 = vld [vmem:[%s18 + $0x2c] sm:$0xf]
  %v600 = vld [vmem:[%s18 + $0x30] sm:$0xf]
  %v601 = vld [vmem:[%s18 + $0x34] sm:$0xf]
  %v602 = vld [vmem:[%s18 + $0x38] sm:$0xf]
  %v603 = vld [vmem:[%s18 + $0x3c] sm:$0xf]
  %v604 = vpack.c.bf16 %v585, %v582
  %v605 = vld [vmem:[%s1] sm:$0xf]
  %v606 = vld [vmem:[%s1 + $0x4] sm:$0xf]
  %v607 = vpack.c.bf16 %v531, %v530
  %v608 = vpack.c.bf16 %v533, %v532
  %v611 = vunpack.c.l.b16 %v605
  %v612 = vunpack.c.l.b16 %v606
  %v613 = vpack.c.b16 %v612, %v611
  %v615 = vsel %vm543, %v613, 0
  %617 = vmatprep.subr.bf16.mxu0 0
  %618 = vmatpush1.bf16.msra.mxu0 0
  %619 = vmatprep.subr.bf16.mxu0 0
  %620 = vmatpush1.bf16.msra.mxu0 0
  %621 = vmatprep.subr.bf16.mxu0 0
  %622 = vmatpush1.bf16.msra.mxu0 0
  %623 = vmatprep.subr.bf16.mxu0 0
  %624 = vmatpush1.bf16.msra.mxu0 0
  %625 = vmatprep.subr.bf16.mxu0 0
  %626 = vmatpush1.bf16.msra.mxu0 0
  %627 = vmatprep.subr.bf16.mxu0 0
  %628 = vmatpush1.bf16.msra.mxu0 0
  %629 = vmatprep.subr.bf16.mxu0 0
  %630 = vmatpush1.bf16.msra.mxu0 %v608
  %631 = vmatprep.subr.bf16.mxu0 0
  %632 = vmatpush1.bf16.msra.mxu0 %v607
  %633 = vmatprep.subr.bf16.mxu0 0
  %634 = vmatpush2.bf16.msra.mxu0 0
  %635 = vmatprep.subr.bf16.mxu0 0
  %636 = vmatpush2.bf16.msra.mxu0 0
  %637 = vmatprep.subr.bf16.mxu0 0
  %638 = vmatpush2.bf16.msra.mxu0 0
  %639 = vmatprep.subr.bf16.mxu0 0
  %640 = vmatpush2.bf16.msra.mxu0 0
  %641 = vmatprep.subr.bf16.mxu0 0
  %642 = vmatpush2.bf16.msra.mxu0 0
  %643 = vmatprep.subr.bf16.mxu0 0
  %644 = vmatpush2.bf16.msra.mxu0 0
  %645 = vmatprep.subr.bf16.mxu0 0
  %646 = vmatpush2.bf16.msra.mxu0 0
  %647 = vmatprep.subr.bf16.mxu0 0
  %648 = vmatpush2.bf16.msra.mxu0 0
  %649 = vmatprep.mubr.bf16.mxu0 0
  %650 = vmatmul.mubr.bf16.gmra.mxu0 %v615
  %v651 = vpop.f32.mrf.mxu0
  %v652 = vadd.f32 0.0, %v651
  %v653 = vpop.f32.mrf.mxu0
  %v654 = vpop.f32.mrf.mxu0
  %v655 = vadd.f32 0.0, %v654
  %v656 = vpop.f32.mrf.mxu0
  %657 = vdwg.mxu0
  %v658 = vld [vmem:[%s2] sm:$0xf]
  %v659 = vld [vmem:[%s2 + $0x4] sm:$0xf]
  %v660 = vld [vmem:[%s2 + $0x8] sm:$0xf]
  %v661 = vld [vmem:[%s2 + $0xc] sm:$0xf]
  %v662 = vld [vmem:[%s2 + $0x10] sm:$0xf]
  %v663 = vld [vmem:[%s2 + $0x14] sm:$0xf]
  %v664 = vld [vmem:[%s2 + $0x18] sm:$0xf]
  %v665 = vld [vmem:[%s2 + $0x1c] sm:$0xf]
  %v666 = vld [vmem:[%s2 + $0x20] sm:$0xf]
  %v667 = vld [vmem:[%s2 + $0x24] sm:$0xf]
  %v668 = vld [vmem:[%s2 + $0x28] sm:$0xf]
  %v669 = vld [vmem:[%s2 + $0x2c] sm:$0xf]
  %v670 = vld [vmem:[%s2 + $0x30] sm:$0xf]
  %v671 = vld [vmem:[%s2 + $0x34] sm:$0xf]
  %v672 = vld [vmem:[%s2 + $0x38] sm:$0xf]
  %v673 = vld [vmem:[%s2 + $0x3c] sm:$0xf]
  %v674 = vpack.c.bf16 %v655, %v652
  %v675 = vld [vmem:[%s3] sm:$0x1]
  %v677 = vlaneseq
  %v678 = vshrl.u32 %v677, 7
  %v679 = vsub.s32 0, %v678
  %v680 = vrot.slane %v675, %v679
  %v698 = vunpack.c.l.b16 %v658
  %v699 = vunpack.c.l.b16 %v659
  %v700 = vunpack.c.l.b16 %v660
  %v701 = vunpack.c.l.b16 %v661
  %v702 = vunpack.c.l.b16 %v662
  %v703 = vunpack.c.l.b16 %v663
  %v704 = vunpack.c.l.b16 %v664
  %v705 = vunpack.c.l.b16 %v665
  %v706 = vunpack.c.l.b16 %v666
  %v707 = vunpack.c.l.b16 %v667
  %v708 = vunpack.c.l.b16 %v668
  %v709 = vunpack.c.l.b16 %v669
  %v710 = vunpack.c.l.b16 %v670
  %v711 = vunpack.c.l.b16 %v671
  %v712 = vunpack.c.l.b16 %v672
  %v713 = vunpack.c.l.b16 %v673
  %v714 = vpack.c.b16 %v699, %v698
  %v715 = vpack.c.b16 %v701, %v700
  %v716 = vpack.c.b16 %v703, %v702
  %v717 = vpack.c.b16 %v705, %v704
  %v718 = vpack.c.b16 %v707, %v706
  %v719 = vpack.c.b16 %v709, %v708
  %v720 = vpack.c.b16 %v711, %v710
  %v721 = vpack.c.b16 %v713, %v712
  %730 = vmatprep.subr.bf16.mxu0 0
  %731 = vmatpush1.bf16.msra.mxu0 %v721
  %732 = vmatprep.subr.bf16.mxu0 0
  %733 = vmatpush1.bf16.msra.mxu0 %v720
  %734 = vmatprep.subr.bf16.mxu0 0
  %735 = vmatpush1.bf16.msra.mxu0 %v719
  %736 = vmatprep.subr.bf16.mxu0 0
  %737 = vmatpush1.bf16.msra.mxu0 %v718
  %738 = vmatprep.subr.bf16.mxu0 0
  %739 = vmatpush1.bf16.msra.mxu0 %v717
  %740 = vmatprep.subr.bf16.mxu0 0
  %741 = vmatpush1.bf16.msra.mxu0 %v716
  %742 = vmatprep.subr.bf16.mxu0 0
  %743 = vmatpush1.bf16.msra.mxu0 %v715
  %744 = vmatprep.subr.bf16.mxu0 0
  %745 = vmatpush1.bf16.msra.mxu0 %v714
  %746 = vmatprep.subr.bf16.mxu0 0
  %747 = vmatpush2.bf16.msra.mxu0 0
  %748 = vmatprep.subr.bf16.mxu0 0
  %749 = vmatpush2.bf16.msra.mxu0 0
  %750 = vmatprep.subr.bf16.mxu0 0
  %751 = vmatpush2.bf16.msra.mxu0 0
  %752 = vmatprep.subr.bf16.mxu0 0
  %753 = vmatpush2.bf16.msra.mxu0 0
  %754 = vmatprep.subr.bf16.mxu0 0
  %755 = vmatpush2.bf16.msra.mxu0 0
  %756 = vmatprep.subr.bf16.mxu0 0
  %757 = vmatpush2.bf16.msra.mxu0 0
  %758 = vmatprep.subr.bf16.mxu0 0
  %759 = vmatpush2.bf16.msra.mxu0 0
  %760 = vmatprep.subr.bf16.mxu0 0
  %761 = vmatpush2.bf16.msra.mxu0 0
  %762 = vmatprep.mubr.bf16.mxu0 0
  %763 = vmatmul.mubr.bf16.gmra.mxu0 %v674
  %v764 = vpop.f32.mrf.mxu0
  %v765 = vadd.f32 %v680, %v764
  %v766 = vpop.f32.mrf.mxu0
  %v767 = vpop.f32.mrf.mxu0
  %v768 = vadd.f32 %v680, %v767
  %v769 = vpop.f32.mrf.mxu0
  %770 = vdwg.mxu0
  %s771 = scalar_lea.vmem %s1, 8
  %v772 = vld [vmem:[%s771] sm:$0xf]
  %v773 = vld [vmem:[%s771 + $0x4] sm:$0xf]
  %v776 = vunpack.c.l.b16 %v772
  %v777 = vunpack.c.l.b16 %v773
  %v778 = vpack.c.b16 %v777, %v776
  %v780 = vsel %vm543, %v778, 0
  %782 = vmatprep.subr.bf16.mxu0 0
  %783 = vmatpush1.bf16.msra.mxu0 0
  %784 = vmatprep.subr.bf16.mxu0 0
  %785 = vmatpush1.bf16.msra.mxu0 0
  %786 = vmatprep.subr.bf16.mxu0 0
  %787 = vmatpush1.bf16.msra.mxu0 0
  %788 = vmatprep.subr.bf16.mxu0 0
  %789 = vmatpush1.bf16.msra.mxu0 0
  %790 = vmatprep.subr.bf16.mxu0 0
  %791 = vmatpush1.bf16.msra.mxu0 0
  %792 = vmatprep.subr.bf16.mxu0 0
  %793 = vmatpush1.bf16.msra.mxu0 0
  %794 = vmatprep.subr.bf16.mxu0 0
  %795 = vmatpush1.bf16.msra.mxu0 %v608
  %796 = vmatprep.subr.bf16.mxu0 0
  %797 = vmatpush1.bf16.msra.mxu0 %v607
  %798 = vmatprep.subr.bf16.mxu0 0
  %799 = vmatpush2.bf16.msra.mxu0 0
  %800 = vmatprep.subr.bf16.mxu0 0
  %801 = vmatpush2.bf16.msra.mxu0 0
  %802 = vmatprep.subr.bf16.mxu0 0
  %803 = vmatpush2.bf16.msra.mxu0 0
  %804 = vmatprep.subr.bf16.mxu0 0
  %805 = vmatpush2.bf16.msra.mxu0 0
  %806 = vmatprep.subr.bf16.mxu0 0
  %807 = vmatpush2.bf16.msra.mxu0 0
  %808 = vmatprep.subr.bf16.mxu0 0
  %809 = vmatpush2.bf16.msra.mxu0 0
  %810 = vmatprep.subr.bf16.mxu0 0
  %811 = vmatpush2.bf16.msra.mxu0 0
  %812 = vmatprep.subr.bf16.mxu0 0
  %813 = vmatpush2.bf16.msra.mxu0 0
  %814 = vmatprep.mubr.bf16.mxu0 0
  %815 = vmatmul.mubr.bf16.gmra.mxu0 %v780
  %v816 = vpop.f32.mrf.mxu0
  %v817 = vadd.f32 0.0, %v816
  %v818 = vpop.f32.mrf.mxu0
  %v819 = vpop.f32.mrf.mxu0
  %v820 = vadd.f32 0.0, %v819
  %v821 = vpop.f32.mrf.mxu0
  %822 = vdwg.mxu0
  %s823 = scalar_lea.vmem %s2, 64
  %v824 = vld [vmem:[%s823] sm:$0xf]
  %v825 = vld [vmem:[%s823 + $0x4] sm:$0xf]
  %v826 = vld [vmem:[%s823 + $0x8] sm:$0xf]
  %v827 = vld [vmem:[%s823 + $0xc] sm:$0xf]
  %v828 = vld [vmem:[%s823 + $0x10] sm:$0xf]
  %v829 = vld [vmem:[%s823 + $0x14] sm:$0xf]
  %v830 = vld [vmem:[%s823 + $0x18] sm:$0xf]
  %v831 = vld [vmem:[%s823 + $0x1c] sm:$0xf]
  %v832 = vld [vmem:[%s823 + $0x20] sm:$0xf]
  %v833 = vld [vmem:[%s823 + $0x24] sm:$0xf]
  %v834 = vld [vmem:[%s823 + $0x28] sm:$0xf]
  %v835 = vld [vmem:[%s823 + $0x2c] sm:$0xf]
  %v836 = vld [vmem:[%s823 + $0x30] sm:$0xf]
  %v837 = vld [vmem:[%s823 + $0x34] sm:$0xf]
  %v838 = vld [vmem:[%s823 + $0x38] sm:$0xf]
  %v839 = vld [vmem:[%s823 + $0x3c] sm:$0xf]
  %v840 = vpack.c.bf16 %v820, %v817
  %v857 = vunpack.c.l.b16 %v824
  %v858 = vunpack.c.l.b16 %v825
  %v859 = vunpack.c.l.b16 %v826
  %v860 = vunpack.c.l.b16 %v827
  %v861 = vunpack.c.l.b16 %v828
  %v862 = vunpack.c.l.b16 %v829
  %v863 = vunpack.c.l.b16 %v830
  %v864 = vunpack.c.l.b16 %v831
  %v865 = vunpack.c.l.b16 %v832
  %v866 = vunpack.c.l.b16 %v833
  %v867 = vunpack.c.l.b16 %v834
  %v868 = vunpack.c.l.b16 %v835
  %v869 = vunpack.c.l.b16 %v836
  %v870 = vunpack.c.l.b16 %v837
  %v871 = vunpack.c.l.b16 %v838
  %v872 = vunpack.c.l.b16 %v839
  %v873 = vpack.c.b16 %v858, %v857
  %v874 = vpack.c.b16 %v860, %v859
  %v875 = vpack.c.b16 %v862, %v861
  %v876 = vpack.c.b16 %v864, %v863
  %v877 = vpack.c.b16 %v866, %v865
  %v878 = vpack.c.b16 %v868, %v867
  %v879 = vpack.c.b16 %v870, %v869
  %v880 = vpack.c.b16 %v872, %v871
  %889 = vmatprep.subr.bf16.mxu0 0
  %890 = vmatpush1.bf16.msra.mxu0 %v880
  %891 = vmatprep.subr.bf16.mxu0 0
  %892 = vmatpush1.bf16.msra.mxu0 %v879
  %893 = vmatprep.subr.bf16.mxu0 0
  %894 = vmatpush1.bf16.msra.mxu0 %v878
  %895 = vmatprep.subr.bf16.mxu0 0
  %896 = vmatpush1.bf16.msra.mxu0 %v877
  %897 = vmatprep.subr.bf16.mxu0 0
  %898 = vmatpush1.bf16.msra.mxu0 %v876
  %899 = vmatprep.subr.bf16.mxu0 0
  %900 = vmatpush1.bf16.msra.mxu0 %v875
  %901 = vmatprep.subr.bf16.mxu0 0
  %902 = vmatpush1.bf16.msra.mxu0 %v874
  %903 = vmatprep.subr.bf16.mxu0 0
  %904 = vmatpush1.bf16.msra.mxu0 %v873
  %905 = vmatprep.subr.bf16.mxu0 0
  %906 = vmatpush2.bf16.msra.mxu0 0
  %907 = vmatprep.subr.bf16.mxu0 0
  %908 = vmatpush2.bf16.msra.mxu0 0
  %909 = vmatprep.subr.bf16.mxu0 0
  %910 = vmatpush2.bf16.msra.mxu0 0
  %911 = vmatprep.subr.bf16.mxu0 0
  %912 = vmatpush2.bf16.msra.mxu0 0
  %913 = vmatprep.subr.bf16.mxu0 0
  %914 = vmatpush2.bf16.msra.mxu0 0
  %915 = vmatprep.subr.bf16.mxu0 0
  %916 = vmatpush2.bf16.msra.mxu0 0
  %917 = vmatprep.subr.bf16.mxu0 0
  %918 = vmatpush2.bf16.msra.mxu0 0
  %919 = vmatprep.subr.bf16.mxu0 0
  %920 = vmatpush2.bf16.msra.mxu0 0
  %921 = vmatprep.mubr.bf16.mxu0 0
  %922 = vmatmul.mubr.bf16.gmra.mxu0 %v840
  %v923 = vpop.f32.mrf.mxu0
  %v924 = vadd.f32 0.0, %v923
  %v925 = vpop.f32.mrf.mxu0
  %v926 = vpop.f32.mrf.mxu0
  %v927 = vadd.f32 0.0, %v926
  %v928 = vpop.f32.mrf.mxu0
  %929 = vdwg.mxu0
  %v930 = vadd.f32 %v765, %v924
  %v931 = vadd.f32 %v768, %v927
  %s932 = scalar_lea.vmem %s1, 16
  %v933 = vld [vmem:[%s932] sm:$0xf]
  %v934 = vld [vmem:[%s932 + $0x4] sm:$0xf]
  %v937 = vunpack.c.l.b16 %v933
  %v938 = vunpack.c.l.b16 %v934
  %v939 = vpack.c.b16 %v938, %v937
  %v941 = vsel %vm543, %v939, 0
  %943 = vmatprep.subr.bf16.mxu0 0
  %944 = vmatpush1.bf16.msra.mxu0 0
  %945 = vmatprep.subr.bf16.mxu0 0
  %946 = vmatpush1.bf16.msra.mxu0 0
  %947 = vmatprep.subr.bf16.mxu0 0
  %948 = vmatpush1.bf16.msra.mxu0 0
  %949 = vmatprep.subr.bf16.mxu0 0
  %950 = vmatpush1.bf16.msra.mxu0 0
  %951 = vmatprep.subr.bf16.mxu0 0
  %952 = vmatpush1.bf16.msra.mxu0 0
  %953 = vmatprep.subr.bf16.mxu0 0
  %954 = vmatpush1.bf16.msra.mxu0 0
  %955 = vmatprep.subr.bf16.mxu0 0
  %956 = vmatpush1.bf16.msra.mxu0 %v608
  %957 = vmatprep.subr.bf16.mxu0 0
  %958 = vmatpush1.bf16.msra.mxu0 %v607
  %959 = vmatprep.subr.bf16.mxu0 0
  %960 = vmatpush2.bf16.msra.mxu0 0
  %961 = vmatprep.subr.bf16.mxu0 0
  %962 = vmatpush2.bf16.msra.mxu0 0
  %963 = vmatprep.subr.bf16.mxu0 0
  %964 = vmatpush2.bf16.msra.mxu0 0
  %965 = vmatprep.subr.bf16.mxu0 0
  %966 = vmatpush2.bf16.msra.mxu0 0
  %967 = vmatprep.subr.bf16.mxu0 0
  %968 = vmatpush2.bf16.msra.mxu0 0
  %969 = vmatprep.subr.bf16.mxu0 0
  %970 = vmatpush2.bf16.msra.mxu0 0
  %971 = vmatprep.subr.bf16.mxu0 0
  %972 = vmatpush2.bf16.msra.mxu0 0
  %973 = vmatprep.subr.bf16.mxu0 0
  %974 = vmatpush2.bf16.msra.mxu0 0
  %975 = vmatprep.mubr.bf16.mxu0 0
  %976 = vmatmul.mubr.bf16.gmra.mxu0 %v941
  %v977 = vpop.f32.mrf.mxu0
  %v978 = vadd.f32 0.0, %v977
  %v979 = vpop.f32.mrf.mxu0
  %v980 = vpop.f32.mrf.mxu0
  %v981 = vadd.f32 0.0, %v980
  %v982 = vpop.f32.mrf.mxu0
  %983 = vdwg.mxu0
  %s984 = scalar_lea.vmem %s2, 128
  %v985 = vld [vmem:[%s984] sm:$0xf]
  %v986 = vld [vmem:[%s984 + $0x4] sm:$0xf]
  %v987 = vld [vmem:[%s984 + $0x8] sm:$0xf]
  %v988 = vld [vmem:[%s984 + $0xc] sm:$0xf]
  %v989 = vld [vmem:[%s984 + $0x10] sm:$0xf]
  %v990 = vld [vmem:[%s984 + $0x14] sm:$0xf]
  %v991 = vld [vmem:[%s984 + $0x18] sm:$0xf]
  %v992 = vld [vmem:[%s984 + $0x1c] sm:$0xf]
  %v993 = vld [vmem:[%s984 + $0x20] sm:$0xf]
  %v994 = vld [vmem:[%s984 + $0x24] sm:$0xf]
  %v995 = vld [vmem:[%s984 + $0x28] sm:$0xf]
  %v996 = vld [vmem:[%s984 + $0x2c] sm:$0xf]
  %v997 = vld [vmem:[%s984 + $0x30] sm:$0xf]
  %v998 = vld [vmem:[%s984 + $0x34] sm:$0xf]
  %v999 = vld [vmem:[%s984 + $0x38] sm:$0xf]
  %v1000 = vld [vmem:[%s984 + $0x3c] sm:$0xf]
  %v1001 = vpack.c.bf16 %v981, %v978
  %v1018 = vunpack.c.l.b16 %v985
  %v1019 = vunpack.c.l.b16 %v986
  %v1020 = vunpack.c.l.b16 %v987
  %v1021 = vunpack.c.l.b16 %v988
  %v1022 = vunpack.c.l.b16 %v989
  %v1023 = vunpack.c.l.b16 %v990
  %v1024 = vunpack.c.l.b16 %v991
  %v1025 = vunpack.c.l.b16 %v992
  %v1026 = vunpack.c.l.b16 %v993
  %v1027 = vunpack.c.l.b16 %v994
  %v1028 = vunpack.c.l.b16 %v995
  %v1029 = vunpack.c.l.b16 %v996
  %v1030 = vunpack.c.l.b16 %v997
  %v1031 = vunpack.c.l.b16 %v998
  %v1032 = vunpack.c.l.b16 %v999
  %v1033 = vunpack.c.l.b16 %v1000
  %v1034 = vpack.c.b16 %v1019, %v1018
  %v1035 = vpack.c.b16 %v1021, %v1020
  %v1036 = vpack.c.b16 %v1023, %v1022
  %v1037 = vpack.c.b16 %v1025, %v1024
  %v1038 = vpack.c.b16 %v1027, %v1026
  %v1039 = vpack.c.b16 %v1029, %v1028
  %v1040 = vpack.c.b16 %v1031, %v1030
  %v1041 = vpack.c.b16 %v1033, %v1032
  %1050 = vmatprep.subr.bf16.mxu0 0
  %1051 = vmatpush1.bf16.msra.mxu0 %v1041
  %1052 = vmatprep.subr.bf16.mxu0 0
  %1053 = vmatpush1.bf16.msra.mxu0 %v1040
  %1054 = vmatprep.subr.bf16.mxu0 0
  %1055 = vmatpush1.bf16.msra.mxu0 %v1039
  %1056 = vmatprep.subr.bf16.mxu0 0
  %1057 = vmatpush1.bf16.msra.mxu0 %v1038
  %1058 = vmatprep.subr.bf16.mxu0 0
  %1059 = vmatpush1.bf16.msra.mxu0 %v1037
  %1060 = vmatprep.subr.bf16.mxu0 0
  %1061 = vmatpush1.bf16.msra.mxu0 %v1036
  %1062 = vmatprep.subr.bf16.mxu0 0
  %1063 = vmatpush1.bf16.msra.mxu0 %v1035
  %1064 = vmatprep.subr.bf16.mxu0 0
  %1065 = vmatpush1.bf16.msra.mxu0 %v1034
  %1066 = vmatprep.subr.bf16.mxu0 0
  %1067 = vmatpush2.bf16.msra.mxu0 0
  %1068 = vmatprep.subr.bf16.mxu0 0
  %1069 = vmatpush2.bf16.msra.mxu0 0
  %1070 = vmatprep.subr.bf16.mxu0 0
  %1071 = vmatpush2.bf16.msra.mxu0 0
  %1072 = vmatprep.subr.bf16.mxu0 0
  %1073 = vmatpush2.bf16.msra.mxu0 0
  %1074 = vmatprep.subr.bf16.mxu0 0
  %1075 = vmatpush2.bf16.msra.mxu0 0
  %1076 = vmatprep.subr.bf16.mxu0 0
  %1077 = vmatpush2.bf16.msra.mxu0 0
  %1078 = vmatprep.subr.bf16.mxu0 0
  %1079 = vmatpush2.bf16.msra.mxu0 0
  %1080 = vmatprep.subr.bf16.mxu0 0
  %1081 = vmatpush2.bf16.msra.mxu0 0
  %1082 = vmatprep.mubr.bf16.mxu0 0
  %1083 = vmatmul.mubr.bf16.gmra.mxu0 %v1001
  %v1084 = vpop.f32.mrf.mxu0
  %v1085 = vadd.f32 0.0, %v1084
  %v1086 = vpop.f32.mrf.mxu0
  %v1087 = vpop.f32.mrf.mxu0
  %v1088 = vadd.f32 0.0, %v1087
  %v1089 = vpop.f32.mrf.mxu0
  %1090 = vdwg.mxu0
  %v1091 = vadd.f32 %v930, %v1085
  %v1092 = vadd.f32 %v931, %v1088
  %vm1093 = vcmp.ge.f32.partialorder %v1091, 0.0
  %vm1094 = vcmp.ge.f32.partialorder %v1092, 0.0
  %v1095 = vmul.f32 %v1091, 0.01
  %v1096 = vmul.f32 %v1092, 0.01
  %v1097 = vsel %vm1093, %v1091, %v1095
  %v1098 = vsel %vm1094, %v1092, %v1096
  %v1099 = vld [vmem:[%s5] sm:$0xf]
  %v1100 = vld [vmem:[%s5 + $0x4] sm:$0xf]
  %v1101 = vld [vmem:[%s5 + $0x8] sm:$0xf]
  %v1102 = vld [vmem:[%s5 + $0xc] sm:$0xf]
  %v1103 = vld [vmem:[%s5 + $0x10] sm:$0xf]
  %v1104 = vld [vmem:[%s5 + $0x14] sm:$0xf]
  %v1105 = vld [vmem:[%s5 + $0x18] sm:$0xf]
  %v1106 = vld [vmem:[%s5 + $0x1c] sm:$0xf]
  %v1107 = vpack.c.bf16 %v1098, %v1097
  %v1108 = vld [vmem:[%s4] sm:$0x1]
  %v1110 = vlaneseq
  %v1111 = vshrl.u32 %v1110, 7
  %v1112 = vsub.s32 0, %v1111
  %v1113 = vrot.slane %v1108, %v1112
  %v1123 = vunpack.c.l.b16 %v1099
  %v1124 = vunpack.c.l.b16 %v1100
  %v1125 = vunpack.c.l.b16 %v1101
  %v1126 = vunpack.c.l.b16 %v1102
  %v1127 = vunpack.c.l.b16 %v1103
  %v1128 = vunpack.c.l.b16 %v1104
  %v1129 = vunpack.c.l.b16 %v1105
  %v1130 = vunpack.c.l.b16 %v1106
  %v1131 = vpack.c.b16 %v1124, %v1123
  %v1132 = vpack.c.b16 %v1126, %v1125
  %v1133 = vpack.c.b16 %v1128, %v1127
  %v1134 = vpack.c.b16 %v1130, %v1129
  %vm1139 = vcmask 523264
  %v1141 = vsel %vm1139, %v1107, 0
  %1143 = vmatprep.subr.bf16.mxu0 0
  %1144 = vmatpush1.bf16.msra.mxu0 0
  %1145 = vmatprep.subr.bf16.mxu0 0
  %1146 = vmatpush1.bf16.msra.mxu0 0
  %1147 = vmatprep.subr.bf16.mxu0 0
  %1148 = vmatpush1.bf16.msra.mxu0 0
  %1149 = vmatprep.subr.bf16.mxu0 0
  %1150 = vmatpush1.bf16.msra.mxu0 0
  %1151 = vmatprep.subr.bf16.mxu0 0
  %1152 = vmatpush1.bf16.msra.mxu0 %v1134
  %1153 = vmatprep.subr.bf16.mxu0 0
  %1154 = vmatpush1.bf16.msra.mxu0 %v1133
  %1155 = vmatprep.subr.bf16.mxu0 0
  %1156 = vmatpush1.bf16.msra.mxu0 %v1132
  %1157 = vmatprep.subr.bf16.mxu0 0
  %1158 = vmatpush1.bf16.msra.mxu0 %v1131
  %1159 = vmatprep.subr.bf16.mxu0 0
  %1160 = vmatpush2.bf16.msra.mxu0 0
  %1161 = vmatprep.subr.bf16.mxu0 0
  %1162 = vmatpush2.bf16.msra.mxu0 0
  %1163 = vmatprep.subr.bf16.mxu0 0
  %1164 = vmatpush2.bf16.msra.mxu0 0
  %1165 = vmatprep.subr.bf16.mxu0 0
  %1166 = vmatpush2.bf16.msra.mxu0 0
  %1167 = vmatprep.subr.bf16.mxu0 0
  %1168 = vmatpush2.bf16.msra.mxu0 0
  %1169 = vmatprep.subr.bf16.mxu0 0
  %1170 = vmatpush2.bf16.msra.mxu0 0
  %1171 = vmatprep.subr.bf16.mxu0 0
  %1172 = vmatpush2.bf16.msra.mxu0 0
  %1173 = vmatprep.subr.bf16.mxu0 0
  %1174 = vmatpush2.bf16.msra.mxu0 0
  %1175 = vmatprep.mubr.bf16.mxu0 0
  %1176 = vmatmul.mubr.bf16.gmra.mxu0 %v1141
  %v1177 = vpop.f32.mrf.mxu0
  %v1178 = vadd.f32 %v1113, %v1177
  %v1179 = vpop.f32.mrf.mxu0
  %v1180 = vpop.f32.mrf.mxu0
  %v1181 = vadd.f32 %v1113, %v1180
  %v1182 = vpop.f32.mrf.mxu0
  %1183 = vdwg.mxu0
  %v1184 = vld [vmem:[%s6] sm:$0xf]
  %v1185 = vld [vmem:[%s6 + $0x4] sm:$0xf]
  %v1186 = vpack.c.bf16 %v499, %v496
  %v1187 = vpack.c.bf16 %v507, %v504
  %v1190 = vunpack.c.l.b16 %v1184
  %v1191 = vunpack.c.l.b16 %v1185
  %v1192 = vpack.c.b16 %v1191, %v1190
  %v1194 = vsel %vm543, %v1192, 0
  %1196 = vmatprep.subr.bf16.mxu0 0
  %1197 = vmatpush1.bf16.msra.mxu0 0
  %1198 = vmatprep.subr.bf16.mxu0 0
  %1199 = vmatpush1.bf16.msra.mxu0 0
  %1200 = vmatprep.subr.bf16.mxu0 0
  %1201 = vmatpush1.bf16.msra.mxu0 0
  %1202 = vmatprep.subr.bf16.mxu0 0
  %1203 = vmatpush1.bf16.msra.mxu0 0
  %1204 = vmatprep.subr.bf16.mxu0 0
  %1205 = vmatpush1.bf16.msra.mxu0 0
  %1206 = vmatprep.subr.bf16.mxu0 0
  %1207 = vmatpush1.bf16.msra.mxu0 0
  %1208 = vmatprep.subr.bf16.mxu0 0
  %1209 = vmatpush1.bf16.msra.mxu0 %v1187
  %1210 = vmatprep.subr.bf16.mxu0 0
  %1211 = vmatpush1.bf16.msra.mxu0 %v1186
  %1212 = vmatprep.subr.bf16.mxu0 0
  %1213 = vmatpush2.bf16.msra.mxu0 0
  %1214 = vmatprep.subr.bf16.mxu0 0
  %1215 = vmatpush2.bf16.msra.mxu0 0
  %1216 = vmatprep.subr.bf16.mxu0 0
  %1217 = vmatpush2.bf16.msra.mxu0 0
  %1218 = vmatprep.subr.bf16.mxu0 0
  %1219 = vmatpush2.bf16.msra.mxu0 0
  %1220 = vmatprep.subr.bf16.mxu0 0
  %1221 = vmatpush2.bf16.msra.mxu0 0
  %1222 = vmatprep.subr.bf16.mxu0 0
  %1223 = vmatpush2.bf16.msra.mxu0 0
  %1224 = vmatprep.subr.bf16.mxu0 0
  %1225 = vmatpush2.bf16.msra.mxu0 0
  %1226 = vmatprep.subr.bf16.mxu0 0
  %1227 = vmatpush2.bf16.msra.mxu0 0
  %1228 = vmatprep.mubr.bf16.mxu0 0
  %1229 = vmatmul.mubr.bf16.gmra.mxu0 %v1194
  %v1230 = vpop.f32.mrf.mxu0
  %v1231 = vadd.f32 0.0, %v1230
  %v1232 = vpop.f32.mrf.mxu0
  %v1233 = vpop.f32.mrf.mxu0
  %v1234 = vadd.f32 0.0, %v1233
  %v1235 = vpop.f32.mrf.mxu0
  %1236 = vdwg.mxu0
  %v1237 = vld [vmem:[%s7] sm:$0xf]
  %v1238 = vld [vmem:[%s7 + $0x4] sm:$0xf]
  %v1239 = vld [vmem:[%s7 + $0x8] sm:$0xf]
  %v1240 = vld [vmem:[%s7 + $0xc] sm:$0xf]
  %v1241 = vld [vmem:[%s7 + $0x10] sm:$0xf]
  %v1242 = vld [vmem:[%s7 + $0x14] sm:$0xf]
  %v1243 = vld [vmem:[%s7 + $0x18] sm:$0xf]
  %v1244 = vld [vmem:[%s7 + $0x1c] sm:$0xf]
  %v1245 = vld [vmem:[%s7 + $0x20] sm:$0xf]
  %v1246 = vld [vmem:[%s7 + $0x24] sm:$0xf]
  %v1247 = vld [vmem:[%s7 + $0x28] sm:$0xf]
  %v1248 = vld [vmem:[%s7 + $0x2c] sm:$0xf]
  %v1249 = vld [vmem:[%s7 + $0x30] sm:$0xf]
  %v1250 = vld [vmem:[%s7 + $0x34] sm:$0xf]
  %v1251 = vld [vmem:[%s7 + $0x38] sm:$0xf]
  %v1252 = vld [vmem:[%s7 + $0x3c] sm:$0xf]
  %v1253 = vpack.c.bf16 %v1234, %v1231
  %v1270 = vunpack.c.l.b16 %v1237
  %v1271 = vunpack.c.l.b16 %v1238
  %v1272 = vunpack.c.l.b16 %v1239
  %v1273 = vunpack.c.l.b16 %v1240
  %v1274 = vunpack.c.l.b16 %v1241
  %v1275 = vunpack.c.l.b16 %v1242
  %v1276 = vunpack.c.l.b16 %v1243
  %v1277 = vunpack.c.l.b16 %v1244
  %v1278 = vunpack.c.l.b16 %v1245
  %v1279 = vunpack.c.l.b16 %v1246
  %v1280 = vunpack.c.l.b16 %v1247
  %v1281 = vunpack.c.l.b16 %v1248
  %v1282 = vunpack.c.l.b16 %v1249
  %v1283 = vunpack.c.l.b16 %v1250
  %v1284 = vunpack.c.l.b16 %v1251
  %v1285 = vunpack.c.l.b16 %v1252
  %v1286 = vpack.c.b16 %v1271, %v1270
  %v1287 = vpack.c.b16 %v1273, %v1272
  %v1288 = vpack.c.b16 %v1275, %v1274
  %v1289 = vpack.c.b16 %v1277, %v1276
  %v1290 = vpack.c.b16 %v1279, %v1278
  %v1291 = vpack.c.b16 %v1281, %v1280
  %v1292 = vpack.c.b16 %v1283, %v1282
  %v1293 = vpack.c.b16 %v1285, %v1284
  %1302 = vmatprep.subr.bf16.mxu0 0
  %1303 = vmatpush1.bf16.msra.mxu0 %v1293
  %1304 = vmatprep.subr.bf16.mxu0 0
  %1305 = vmatpush1.bf16.msra.mxu0 %v1292
  %1306 = vmatprep.subr.bf16.mxu0 0
  %1307 = vmatpush1.bf16.msra.mxu0 %v1291
  %1308 = vmatprep.subr.bf16.mxu0 0
  %1309 = vmatpush1.bf16.msra.mxu0 %v1290
  %1310 = vmatprep.subr.bf16.mxu0 0
  %1311 = vmatpush1.bf16.msra.mxu0 %v1289
  %1312 = vmatprep.subr.bf16.mxu0 0
  %1313 = vmatpush1.bf16.msra.mxu0 %v1288
  %1314 = vmatprep.subr.bf16.mxu0 0
  %1315 = vmatpush1.bf16.msra.mxu0 %v1287
  %1316 = vmatprep.subr.bf16.mxu0 0
  %1317 = vmatpush1.bf16.msra.mxu0 %v1286
  %1318 = vmatprep.subr.bf16.mxu0 0
  %1319 = vmatpush2.bf16.msra.mxu0 0
  %1320 = vmatprep.subr.bf16.mxu0 0
  %1321 = vmatpush2.bf16.msra.mxu0 0
  %1322 = vmatprep.subr.bf16.mxu0 0
  %1323 = vmatpush2.bf16.msra.mxu0 0
  %1324 = vmatprep.subr.bf16.mxu0 0
  %1325 = vmatpush2.bf16.msra.mxu0 0
  %1326 = vmatprep.subr.bf16.mxu0 0
  %1327 = vmatpush2.bf16.msra.mxu0 0
  %1328 = vmatprep.subr.bf16.mxu0 0
  %1329 = vmatpush2.bf16.msra.mxu0 0
  %1330 = vmatprep.subr.bf16.mxu0 0
  %1331 = vmatpush2.bf16.msra.mxu0 0
  %1332 = vmatprep.subr.bf16.mxu0 0
  %1333 = vmatpush2.bf16.msra.mxu0 0
  %1334 = vmatprep.mubr.bf16.mxu0 0
  %1335 = vmatmul.mubr.bf16.gmra.mxu0 %v1253
  %v1336 = vpop.f32.mrf.mxu0
  %v1337 = vadd.f32 0.0, %v1336
  %v1338 = vpop.f32.mrf.mxu0
  %v1339 = vpop.f32.mrf.mxu0
  %v1340 = vadd.f32 0.0, %v1339
  %v1341 = vpop.f32.mrf.mxu0
  %1342 = vdwg.mxu0
  %v1343 = vadd.f32 %v1178, %v1337
  %v1344 = vadd.f32 %v1181, %v1340
  %vm1345 = vcmp.ge.f32.partialorder %v1343, 0.0
  %vm1346 = vcmp.ge.f32.partialorder %v1344, 0.0
  %v1347 = vmul.f32 %v1343, 0.01
  %v1348 = vmul.f32 %v1344, 0.01
  %v1349 = vsel %vm1345, %v1343, %v1347
  %v1350 = vsel %vm1346, %v1344, %v1348
  %v1351 = vld [vmem:[%s13] sm:$0xf]
  %v1352 = vld [vmem:[%s13 + $0x4] sm:$0xf]
  %v1353 = vld [vmem:[%s13 + $0x8] sm:$0xf]
  %v1354 = vld [vmem:[%s13 + $0xc] sm:$0xf]
  %v1355 = vld [vmem:[%s13 + $0x10] sm:$0xf]
  %v1356 = vld [vmem:[%s13 + $0x14] sm:$0xf]
  %v1357 = vld [vmem:[%s13 + $0x18] sm:$0xf]
  %v1358 = vld [vmem:[%s13 + $0x1c] sm:$0xf]
  %v1359 = vpack.c.bf16 %v1350, %v1349
  %v1360 = vld [vmem:[%s12] sm:$0x1]
  %v1362 = vlaneseq
  %v1363 = vshrl.u32 %v1362, 7
  %v1364 = vsub.s32 0, %v1363
  %v1365 = vrot.slane %v1360, %v1364
  %v1375 = vunpack.c.l.b16 %v1351
  %v1376 = vunpack.c.l.b16 %v1352
  %v1377 = vunpack.c.l.b16 %v1353
  %v1378 = vunpack.c.l.b16 %v1354
  %v1379 = vunpack.c.l.b16 %v1355
  %v1380 = vunpack.c.l.b16 %v1356
  %v1381 = vunpack.c.l.b16 %v1357
  %v1382 = vunpack.c.l.b16 %v1358
  %v1383 = vpack.c.b16 %v1376, %v1375
  %v1384 = vpack.c.b16 %v1378, %v1377
  %v1385 = vpack.c.b16 %v1380, %v1379
  %v1386 = vpack.c.b16 %v1382, %v1381
  %v1392 = vsel %vm1139, %v1359, 0
  %1394 = vmatprep.subr.bf16.mxu0 0
  %1395 = vmatpush1.bf16.msra.mxu0 0
  %1396 = vmatprep.subr.bf16.mxu0 0
  %1397 = vmatpush1.bf16.msra.mxu0 0
  %1398 = vmatprep.subr.bf16.mxu0 0
  %1399 = vmatpush1.bf16.msra.mxu0 0
  %1400 = vmatprep.subr.bf16.mxu0 0
  %1401 = vmatpush1.bf16.msra.mxu0 0
  %1402 = vmatprep.subr.bf16.mxu0 0
  %1403 = vmatpush1.bf16.msra.mxu0 %v1386
  %1404 = vmatprep.subr.bf16.mxu0 0
  %1405 = vmatpush1.bf16.msra.mxu0 %v1385
  %1406 = vmatprep.subr.bf16.mxu0 0
  %1407 = vmatpush1.bf16.msra.mxu0 %v1384
  %1408 = vmatprep.subr.bf16.mxu0 0
  %1409 = vmatpush1.bf16.msra.mxu0 %v1383
  %1410 = vmatprep.subr.bf16.mxu0 0
  %1411 = vmatpush2.bf16.msra.mxu0 0
  %1412 = vmatprep.subr.bf16.mxu0 0
  %1413 = vmatpush2.bf16.msra.mxu0 0
  %1414 = vmatprep.subr.bf16.mxu0 0
  %1415 = vmatpush2.bf16.msra.mxu0 0
  %1416 = vmatprep.subr.bf16.mxu0 0
  %1417 = vmatpush2.bf16.msra.mxu0 0
  %1418 = vmatprep.subr.bf16.mxu0 0
  %1419 = vmatpush2.bf16.msra.mxu0 0
  %1420 = vmatprep.subr.bf16.mxu0 0
  %1421 = vmatpush2.bf16.msra.mxu0 0
  %1422 = vmatprep.subr.bf16.mxu0 0
  %1423 = vmatpush2.bf16.msra.mxu0 0
  %1424 = vmatprep.subr.bf16.mxu0 0
  %1425 = vmatpush2.bf16.msra.mxu0 0
  %1426 = vmatprep.mubr.bf16.mxu0 0
  %1427 = vmatmul.mubr.bf16.gmra.mxu0 %v1392
  %v1428 = vpop.f32.mrf.mxu0
  %v1429 = vadd.f32 %v1365, %v1428
  %v1430 = vpop.f32.mrf.mxu0
  %v1431 = vpop.f32.mrf.mxu0
  %v1432 = vadd.f32 %v1365, %v1431
  %v1433 = vpop.f32.mrf.mxu0
  %1434 = vdwg.mxu0
  %vm1435 = vcmp.ge.f32.partialorder %v1429, 0.0
  %vm1436 = vcmp.ge.f32.partialorder %v1432, 0.0
  %v1437 = vmul.f32 %v1429, 0.01
  %v1438 = vmul.f32 %v1432, 0.01
  %v1439 = vsel %vm1435, %v1429, %v1437
  %v1440 = vsel %vm1436, %v1432, %v1438
  %v1441 = vld [vmem:[%s10] sm:$0xf]
  %v1442 = vld [vmem:[%s10 + $0x4] sm:$0xf]
  %v1443 = vpack.c.bf16 %v1440, %v1439
  %v1446 = vunpack.c.l.b16 %v1441
  %v1447 = vunpack.c.l.b16 %v1442
  %v1448 = vpack.c.b16 %v1447, %v1446
  %vm1449 = vcmask 130048
  %v1451 = vsel %vm1449, %v1448, 0
  %1453 = vmatprep.subr.bf16.mxu0 0
  %1454 = vmatpush1.bf16.msra.mxu0 0
  %1455 = vmatprep.subr.bf16.mxu0 0
  %1456 = vmatpush1.bf16.msra.mxu0 0
  %1457 = vmatprep.subr.bf16.mxu0 0
  %1458 = vmatpush1.bf16.msra.mxu0 0
  %1459 = vmatprep.subr.bf16.mxu0 0
  %1460 = vmatpush1.bf16.msra.mxu0 0
  %1461 = vmatprep.subr.bf16.mxu0 0
  %1462 = vmatpush1.bf16.msra.mxu0 0
  %1463 = vmatprep.subr.bf16.mxu0 0
  %1464 = vmatpush1.bf16.msra.mxu0 0
  %1465 = vmatprep.subr.bf16.mxu0 0
  %1466 = vmatpush1.bf16.msra.mxu0 0
  %1467 = vmatprep.subr.bf16.mxu0 0
  %1468 = vmatpush1.bf16.msra.mxu0 %v1443
  %1469 = vmatprep.subr.bf16.mxu0 0
  %1470 = vmatpush2.bf16.msra.mxu0 0
  %1471 = vmatprep.subr.bf16.mxu0 0
  %1472 = vmatpush2.bf16.msra.mxu0 0
  %1473 = vmatprep.subr.bf16.mxu0 0
  %1474 = vmatpush2.bf16.msra.mxu0 0
  %1475 = vmatprep.subr.bf16.mxu0 0
  %1476 = vmatpush2.bf16.msra.mxu0 0
  %1477 = vmatprep.subr.bf16.mxu0 0
  %1478 = vmatpush2.bf16.msra.mxu0 0
  %1479 = vmatprep.subr.bf16.mxu0 0
  %1480 = vmatpush2.bf16.msra.mxu0 0
  %1481 = vmatprep.subr.bf16.mxu0 0
  %1482 = vmatpush2.bf16.msra.mxu0 0
  %1483 = vmatprep.subr.bf16.mxu0 0
  %1484 = vmatpush2.bf16.msra.mxu0 0
  %1485 = vmatprep.mubr.bf16.mxu0 0
  %1486 = vmatmul.mubr.bf16.gmra.mxu0 %v1451
  %v1487 = vpop.f32.mrf.mxu0
  %v1488 = vadd.f32 0.0, %v1487
  %v1489 = vpop.f32.mrf.mxu0
  %v1490 = vpop.f32.mrf.mxu0
  %v1491 = vadd.f32 0.0, %v1490
  %v1492 = vpop.f32.mrf.mxu0
  %1493 = vdwg.mxu0
  %v1494 = vld [vmem:[%s11] sm:$0xf]
  %v1495 = vld [vmem:[%s11 + $0x4] sm:$0xf]
  %v1496 = vld [vmem:[%s11 + $0x8] sm:$0xf]
  %v1497 = vld [vmem:[%s11 + $0xc] sm:$0xf]
  %v1498 = vld [vmem:[%s11 + $0x10] sm:$0xf]
  %v1499 = vld [vmem:[%s11 + $0x14] sm:$0xf]
  %v1500 = vld [vmem:[%s11 + $0x18] sm:$0xf]
  %v1501 = vld [vmem:[%s11 + $0x1c] sm:$0xf]
  %v1502 = vpack.c.bf16 %v1491, %v1488
  %v1503 = vld [vmem:[%s14] sm:$0x1]
  %v1505 = vlaneseq
  %v1506 = vshrl.u32 %v1505, 7
  %v1507 = vsub.s32 0, %v1506
  %v1508 = vrot.slane %v1503, %v1507
  %v1518 = vunpack.c.l.b16 %v1494
  %v1519 = vunpack.c.l.b16 %v1495
  %v1520 = vunpack.c.l.b16 %v1496
  %v1521 = vunpack.c.l.b16 %v1497
  %v1522 = vunpack.c.l.b16 %v1498
  %v1523 = vunpack.c.l.b16 %v1499
  %v1524 = vunpack.c.l.b16 %v1500
  %v1525 = vunpack.c.l.b16 %v1501
  %v1526 = vpack.c.b16 %v1519, %v1518
  %v1527 = vpack.c.b16 %v1521, %v1520
  %v1528 = vpack.c.b16 %v1523, %v1522
  %v1529 = vpack.c.b16 %v1525, %v1524
  %v1535 = vsel %vm1139, %v1502, 0
  %1537 = vmatprep.subr.bf16.mxu0 0
  %1538 = vmatpush1.bf16.msra.mxu0 0
  %1539 = vmatprep.subr.bf16.mxu0 0
  %1540 = vmatpush1.bf16.msra.mxu0 0
  %1541 = vmatprep.subr.bf16.mxu0 0
  %1542 = vmatpush1.bf16.msra.mxu0 0
  %1543 = vmatprep.subr.bf16.mxu0 0
  %1544 = vmatpush1.bf16.msra.mxu0 0
  %1545 = vmatprep.subr.bf16.mxu0 0
  %1546 = vmatpush1.bf16.msra.mxu0 %v1529
  %1547 = vmatprep.subr.bf16.mxu0 0
  %1548 = vmatpush1.bf16.msra.mxu0 %v1528
  %1549 = vmatprep.subr.bf16.mxu0 0
  %1550 = vmatpush1.bf16.msra.mxu0 %v1527
  %1551 = vmatprep.subr.bf16.mxu0 0
  %1552 = vmatpush1.bf16.msra.mxu0 %v1526
  %1553 = vmatprep.subr.bf16.mxu0 0
  %1554 = vmatpush2.bf16.msra.mxu0 0
  %1555 = vmatprep.subr.bf16.mxu0 0
  %1556 = vmatpush2.bf16.msra.mxu0 0
  %1557 = vmatprep.subr.bf16.mxu0 0
  %1558 = vmatpush2.bf16.msra.mxu0 0
  %1559 = vmatprep.subr.bf16.mxu0 0
  %1560 = vmatpush2.bf16.msra.mxu0 0
  %1561 = vmatprep.subr.bf16.mxu0 0
  %1562 = vmatpush2.bf16.msra.mxu0 0
  %1563 = vmatprep.subr.bf16.mxu0 0
  %1564 = vmatpush2.bf16.msra.mxu0 0
  %1565 = vmatprep.subr.bf16.mxu0 0
  %1566 = vmatpush2.bf16.msra.mxu0 0
  %1567 = vmatprep.subr.bf16.mxu0 0
  %1568 = vmatpush2.bf16.msra.mxu0 0
  %1569 = vmatprep.mubr.bf16.mxu0 0
  %1570 = vmatmul.mubr.bf16.gmra.mxu0 %v1535
  %v1571 = vpop.f32.mrf.mxu0
  %v1572 = vadd.f32 %v1508, %v1571
  %v1573 = vpop.f32.mrf.mxu0
  %v1574 = vpop.f32.mrf.mxu0
  %v1575 = vadd.f32 %v1508, %v1574
  %v1576 = vpop.f32.mrf.mxu0
  %1577 = vdwg.mxu0
  %s1578 = scalar_lea.vmem %s10, 8
  %v1579 = vld [vmem:[%s1578] sm:$0xf]
  %v1580 = vld [vmem:[%s1578 + $0x4] sm:$0xf]
  %v1583 = vunpack.c.l.b16 %v1579
  %v1584 = vunpack.c.l.b16 %v1580
  %v1585 = vpack.c.b16 %v1584, %v1583
  %v1587 = vsel %vm1449, %v1585, 0
  %1589 = vmatprep.subr.bf16.mxu0 0
  %1590 = vmatpush1.bf16.msra.mxu0 0
  %1591 = vmatprep.subr.bf16.mxu0 0
  %1592 = vmatpush1.bf16.msra.mxu0 0
  %1593 = vmatprep.subr.bf16.mxu0 0
  %1594 = vmatpush1.bf16.msra.mxu0 0
  %1595 = vmatprep.subr.bf16.mxu0 0
  %1596 = vmatpush1.bf16.msra.mxu0 0
  %1597 = vmatprep.subr.bf16.mxu0 0
  %1598 = vmatpush1.bf16.msra.mxu0 0
  %1599 = vmatprep.subr.bf16.mxu0 0
  %1600 = vmatpush1.bf16.msra.mxu0 0
  %1601 = vmatprep.subr.bf16.mxu0 0
  %1602 = vmatpush1.bf16.msra.mxu0 0
  %1603 = vmatprep.subr.bf16.mxu0 0
  %1604 = vmatpush1.bf16.msra.mxu0 %v1443
  %1605 = vmatprep.subr.bf16.mxu0 0
  %1606 = vmatpush2.bf16.msra.mxu0 0
  %1607 = vmatprep.subr.bf16.mxu0 0
  %1608 = vmatpush2.bf16.msra.mxu0 0
  %1609 = vmatprep.subr.bf16.mxu0 0
  %1610 = vmatpush2.bf16.msra.mxu0 0
  %1611 = vmatprep.subr.bf16.mxu0 0
  %1612 = vmatpush2.bf16.msra.mxu0 0
  %1613 = vmatprep.subr.bf16.mxu0 0
  %1614 = vmatpush2.bf16.msra.mxu0 0
  %1615 = vmatprep.subr.bf16.mxu0 0
  %1616 = vmatpush2.bf16.msra.mxu0 0
  %1617 = vmatprep.subr.bf16.mxu0 0
  %1618 = vmatpush2.bf16.msra.mxu0 0
  %1619 = vmatprep.subr.bf16.mxu0 0
  %1620 = vmatpush2.bf16.msra.mxu0 0
  %1621 = vmatprep.mubr.bf16.mxu0 0
  %1622 = vmatmul.mubr.bf16.gmra.mxu0 %v1587
  %v1623 = vpop.f32.mrf.mxu0
  %v1624 = vadd.f32 0.0, %v1623
  %v1625 = vpop.f32.mrf.mxu0
  %v1626 = vpop.f32.mrf.mxu0
  %v1627 = vadd.f32 0.0, %v1626
  %v1628 = vpop.f32.mrf.mxu0
  %1629 = vdwg.mxu0
  %s1630 = scalar_lea.vmem %s11, 32
  %v1631 = vld [vmem:[%s1630] sm:$0xf]
  %v1632 = vld [vmem:[%s1630 + $0x4] sm:$0xf]
  %v1633 = vld [vmem:[%s1630 + $0x8] sm:$0xf]
  %v1634 = vld [vmem:[%s1630 + $0xc] sm:$0xf]
  %v1635 = vld [vmem:[%s1630 + $0x10] sm:$0xf]
  %v1636 = vld [vmem:[%s1630 + $0x14] sm:$0xf]
  %v1637 = vld [vmem:[%s1630 + $0x18] sm:$0xf]
  %v1638 = vld [vmem:[%s1630 + $0x1c] sm:$0xf]
  %v1639 = vpack.c.bf16 %v1627, %v1624
  %v1648 = vunpack.c.l.b16 %v1631
  %v1649 = vunpack.c.l.b16 %v1632
  %v1650 = vunpack.c.l.b16 %v1633
  %v1651 = vunpack.c.l.b16 %v1634
  %v1652 = vunpack.c.l.b16 %v1635
  %v1653 = vunpack.c.l.b16 %v1636
  %v1654 = vunpack.c.l.b16 %v1637
  %v1655 = vunpack.c.l.b16 %v1638
  %v1656 = vpack.c.b16 %v1649, %v1648
  %v1657 = vpack.c.b16 %v1651, %v1650
  %v1658 = vpack.c.b16 %v1653, %v1652
  %v1659 = vpack.c.b16 %v1655, %v1654
  %v1665 = vsel %vm1139, %v1639, 0
  %1667 = vmatprep.subr.bf16.mxu0 0
  %1668 = vmatpush1.bf16.msra.mxu0 0
  %1669 = vmatprep.subr.bf16.mxu0 0
  %1670 = vmatpush1.bf16.msra.mxu0 0
  %1671 = vmatprep.subr.bf16.mxu0 0
  %1672 = vmatpush1.bf16.msra.mxu0 0
  %1673 = vmatprep.subr.bf16.mxu0 0
  %1674 = vmatpush1.bf16.msra.mxu0 0
  %1675 = vmatprep.subr.bf16.mxu0 0
  %1676 = vmatpush1.bf16.msra.mxu0 %v1659
  %1677 = vmatprep.subr.bf16.mxu0 0
  %1678 = vmatpush1.bf16.msra.mxu0 %v1658
  %1679 = vmatprep.subr.bf16.mxu0 0
  %1680 = vmatpush1.bf16.msra.mxu0 %v1657
  %1681 = vmatprep.subr.bf16.mxu0 0
  %1682 = vmatpush1.bf16.msra.mxu0 %v1656
  %1683 = vmatprep.subr.bf16.mxu0 0
  %1684 = vmatpush2.bf16.msra.mxu0 0
  %1685 = vmatprep.subr.bf16.mxu0 0
  %1686 = vmatpush2.bf16.msra.mxu0 0
  %1687 = vmatprep.subr.bf16.mxu0 0
  %1688 = vmatpush2.bf16.msra.mxu0 0
  %1689 = vmatprep.subr.bf16.mxu0 0
  %1690 = vmatpush2.bf16.msra.mxu0 0
  %1691 = vmatprep.subr.bf16.mxu0 0
  %1692 = vmatpush2.bf16.msra.mxu0 0
  %1693 = vmatprep.subr.bf16.mxu0 0
  %1694 = vmatpush2.bf16.msra.mxu0 0
  %1695 = vmatprep.subr.bf16.mxu0 0
  %1696 = vmatpush2.bf16.msra.mxu0 0
  %1697 = vmatprep.subr.bf16.mxu0 0
  %1698 = vmatpush2.bf16.msra.mxu0 0
  %1699 = vmatprep.mubr.bf16.mxu0 0
  %1700 = vmatmul.mubr.bf16.gmra.mxu0 %v1665
  %v1701 = vpop.f32.mrf.mxu0
  %v1702 = vadd.f32 0.0, %v1701
  %v1703 = vpop.f32.mrf.mxu0
  %v1704 = vpop.f32.mrf.mxu0
  %v1705 = vadd.f32 0.0, %v1704
  %v1706 = vpop.f32.mrf.mxu0
  %1707 = vdwg.mxu0
  %v1708 = vadd.f32 %v1572, %v1702
  %v1709 = vadd.f32 %v1575, %v1705
  %s1710 = scalar_lea.vmem %s10, 16
  %v1711 = vld [vmem:[%s1710] sm:$0xf]
  %v1712 = vld [vmem:[%s1710 + $0x4] sm:$0xf]
  %v1715 = vunpack.c.l.b16 %v1711
  %v1716 = vunpack.c.l.b16 %v1712
  %v1717 = vpack.c.b16 %v1716, %v1715
  %v1719 = vsel %vm1449, %v1717, 0
  %1721 = vmatprep.subr.bf16.mxu0 0
  %1722 = vmatpush1.bf16.msra.mxu0 0
  %1723 = vmatprep.subr.bf16.mxu0 0
  %1724 = vmatpush1.bf16.msra.mxu0 0
  %1725 = vmatprep.subr.bf16.mxu0 0
  %1726 = vmatpush1.bf16.msra.mxu0 0
  %1727 = vmatprep.subr.bf16.mxu0 0
  %1728 = vmatpush1.bf16.msra.mxu0 0
  %1729 = vmatprep.subr.bf16.mxu0 0
  %1730 = vmatpush1.bf16.msra.mxu0 0
  %1731 = vmatprep.subr.bf16.mxu0 0
  %1732 = vmatpush1.bf16.msra.mxu0 0
  %1733 = vmatprep.subr.bf16.mxu0 0
  %1734 = vmatpush1.bf16.msra.mxu0 0
  %1735 = vmatprep.subr.bf16.mxu0 0
  %1736 = vmatpush1.bf16.msra.mxu0 %v1443
  %1737 = vmatprep.subr.bf16.mxu0 0
  %1738 = vmatpush2.bf16.msra.mxu0 0
  %1739 = vmatprep.subr.bf16.mxu0 0
  %1740 = vmatpush2.bf16.msra.mxu0 0
  %1741 = vmatprep.subr.bf16.mxu0 0
  %1742 = vmatpush2.bf16.msra.mxu0 0
  %1743 = vmatprep.subr.bf16.mxu0 0
  %1744 = vmatpush2.bf16.msra.mxu0 0
  %1745 = vmatprep.subr.bf16.mxu0 0
  %1746 = vmatpush2.bf16.msra.mxu0 0
  %1747 = vmatprep.subr.bf16.mxu0 0
  %1748 = vmatpush2.bf16.msra.mxu0 0
  %1749 = vmatprep.subr.bf16.mxu0 0
  %1750 = vmatpush2.bf16.msra.mxu0 0
  %1751 = vmatprep.subr.bf16.mxu0 0
  %1752 = vmatpush2.bf16.msra.mxu0 0
  %1753 = vmatprep.mubr.bf16.mxu0 0
  %1754 = vmatmul.mubr.bf16.gmra.mxu0 %v1719
  %v1755 = vpop.f32.mrf.mxu0
  %v1756 = vadd.f32 0.0, %v1755
  %v1757 = vpop.f32.mrf.mxu0
  %v1758 = vpop.f32.mrf.mxu0
  %v1759 = vadd.f32 0.0, %v1758
  %v1760 = vpop.f32.mrf.mxu0
  %1761 = vdwg.mxu0
  %s1762 = scalar_lea.vmem %s11, 64
  %v1763 = vld [vmem:[%s1762] sm:$0xf]
  %v1764 = vld [vmem:[%s1762 + $0x4] sm:$0xf]
  %v1765 = vld [vmem:[%s1762 + $0x8] sm:$0xf]
  %v1766 = vld [vmem:[%s1762 + $0xc] sm:$0xf]
  %v1767 = vld [vmem:[%s1762 + $0x10] sm:$0xf]
  %v1768 = vld [vmem:[%s1762 + $0x14] sm:$0xf]
  %v1769 = vld [vmem:[%s1762 + $0x18] sm:$0xf]
  %v1770 = vld [vmem:[%s1762 + $0x1c] sm:$0xf]
  %v1771 = vpack.c.bf16 %v1759, %v1756
  %v1780 = vunpack.c.l.b16 %v1763
  %v1781 = vunpack.c.l.b16 %v1764
  %v1782 = vunpack.c.l.b16 %v1765
  %v1783 = vunpack.c.l.b16 %v1766
  %v1784 = vunpack.c.l.b16 %v1767
  %v1785 = vunpack.c.l.b16 %v1768
  %v1786 = vunpack.c.l.b16 %v1769
  %v1787 = vunpack.c.l.b16 %v1770
  %v1788 = vpack.c.b16 %v1781, %v1780
  %v1789 = vpack.c.b16 %v1783, %v1782
  %v1790 = vpack.c.b16 %v1785, %v1784
  %v1791 = vpack.c.b16 %v1787, %v1786
  %v1797 = vsel %vm1139, %v1771, 0
  %1799 = vmatprep.subr.bf16.mxu0 0
  %1800 = vmatpush1.bf16.msra.mxu0 0
  %1801 = vmatprep.subr.bf16.mxu0 0
  %1802 = vmatpush1.bf16.msra.mxu0 0
  %1803 = vmatprep.subr.bf16.mxu0 0
  %1804 = vmatpush1.bf16.msra.mxu0 0
  %1805 = vmatprep.subr.bf16.mxu0 0
  %1806 = vmatpush1.bf16.msra.mxu0 0
  %1807 = vmatprep.subr.bf16.mxu0 0
  %1808 = vmatpush1.bf16.msra.mxu0 %v1791
  %1809 = vmatprep.subr.bf16.mxu0 0
  %1810 = vmatpush1.bf16.msra.mxu0 %v1790
  %1811 = vmatprep.subr.bf16.mxu0 0
  %1812 = vmatpush1.bf16.msra.mxu0 %v1789
  %1813 = vmatprep.subr.bf16.mxu0 0
  %1814 = vmatpush1.bf16.msra.mxu0 %v1788
  %1815 = vmatprep.subr.bf16.mxu0 0
  %1816 = vmatpush2.bf16.msra.mxu0 0
  %1817 = vmatprep.subr.bf16.mxu0 0
  %1818 = vmatpush2.bf16.msra.mxu0 0
  %1819 = vmatprep.subr.bf16.mxu0 0
  %1820 = vmatpush2.bf16.msra.mxu0 0
  %1821 = vmatprep.subr.bf16.mxu0 0
  %1822 = vmatpush2.bf16.msra.mxu0 0
  %1823 = vmatprep.subr.bf16.mxu0 0
  %1824 = vmatpush2.bf16.msra.mxu0 0
  %1825 = vmatprep.subr.bf16.mxu0 0
  %1826 = vmatpush2.bf16.msra.mxu0 0
  %1827 = vmatprep.subr.bf16.mxu0 0
  %1828 = vmatpush2.bf16.msra.mxu0 0
  %1829 = vmatprep.subr.bf16.mxu0 0
  %1830 = vmatpush2.bf16.msra.mxu0 0
  %1831 = vmatprep.mubr.bf16.mxu0 0
  %1832 = vmatmul.mubr.bf16.gmra.mxu0 %v1797
  %v1833 = vpop.f32.mrf.mxu0
  %v1834 = vadd.f32 0.0, %v1833
  %v1835 = vpop.f32.mrf.mxu0
  %v1836 = vpop.f32.mrf.mxu0
  %v1837 = vadd.f32 0.0, %v1836
  %v1838 = vpop.f32.mrf.mxu0
  %1839 = vdwg.mxu0
  %v1840 = vadd.f32 %v1708, %v1834
  %v1841 = vadd.f32 %v1709, %v1837
  %vm1842 = vcmp.ge.f32.partialorder %v1840, 0.0
  %vm1843 = vcmp.ge.f32.partialorder %v1841, 0.0
  %v1844 = vmul.f32 %v1840, 0.01
  %v1845 = vmul.f32 %v1841, 0.01
  %v1846 = vsel %vm1842, %v1840, %v1844
  %v1847 = vsel %vm1843, %v1841, %v1845
  %v1848 = vld [vmem:[%s16] sm:$0xf]
  %v1849 = vld [vmem:[%s16 + $0x4] sm:$0xf]
  %v1850 = vld [vmem:[%s16 + $0x8] sm:$0xf]
  %v1851 = vld [vmem:[%s16 + $0xc] sm:$0xf]
  %v1852 = vld [vmem:[%s16 + $0x10] sm:$0xf]
  %v1853 = vld [vmem:[%s16 + $0x14] sm:$0xf]
  %v1854 = vld [vmem:[%s16 + $0x18] sm:$0xf]
  %v1855 = vld [vmem:[%s16 + $0x1c] sm:$0xf]
  %v1856 = vpack.c.bf16 %v1847, %v1846
  %v1857 = vld [vmem:[%s15] sm:$0x1]
  %v1859 = vlaneseq
  %v1860 = vshrl.u32 %v1859, 7
  %v1861 = vsub.s32 0, %v1860
  %v1862 = vrot.slane %v1857, %v1861
  %v1872 = vunpack.c.l.b16 %v1848
  %v1873 = vunpack.c.l.b16 %v1849
  %v1874 = vunpack.c.l.b16 %v1850
  %v1875 = vunpack.c.l.b16 %v1851
  %v1876 = vunpack.c.l.b16 %v1852
  %v1877 = vunpack.c.l.b16 %v1853
  %v1878 = vunpack.c.l.b16 %v1854
  %v1879 = vunpack.c.l.b16 %v1855
  %v1880 = vpack.c.b16 %v1873, %v1872
  %v1881 = vpack.c.b16 %v1875, %v1874
  %v1882 = vpack.c.b16 %v1877, %v1876
  %v1883 = vpack.c.b16 %v1879, %v1878
  %v1889 = vsel %vm1139, %v1856, 0
  %1891 = vmatprep.subr.bf16.mxu0 0
  %1892 = vmatpush1.bf16.msra.mxu0 0
  %1893 = vmatprep.subr.bf16.mxu0 0
  %1894 = vmatpush1.bf16.msra.mxu0 0
  %1895 = vmatprep.subr.bf16.mxu0 0
  %1896 = vmatpush1.bf16.msra.mxu0 0
  %1897 = vmatprep.subr.bf16.mxu0 0
  %1898 = vmatpush1.bf16.msra.mxu0 0
  %1899 = vmatprep.subr.bf16.mxu0 0
  %1900 = vmatpush1.bf16.msra.mxu0 %v1883
  %1901 = vmatprep.subr.bf16.mxu0 0
  %1902 = vmatpush1.bf16.msra.mxu0 %v1882
  %1903 = vmatprep.subr.bf16.mxu0 0
  %1904 = vmatpush1.bf16.msra.mxu0 %v1881
  %1905 = vmatprep.subr.bf16.mxu0 0
  %1906 = vmatpush1.bf16.msra.mxu0 %v1880
  %1907 = vmatprep.subr.bf16.mxu0 0
  %1908 = vmatpush2.bf16.msra.mxu0 0
  %1909 = vmatprep.subr.bf16.mxu0 0
  %1910 = vmatpush2.bf16.msra.mxu0 0
  %1911 = vmatprep.subr.bf16.mxu0 0
  %1912 = vmatpush2.bf16.msra.mxu0 0
  %1913 = vmatprep.subr.bf16.mxu0 0
  %1914 = vmatpush2.bf16.msra.mxu0 0
  %1915 = vmatprep.subr.bf16.mxu0 0
  %1916 = vmatpush2.bf16.msra.mxu0 0
  %1917 = vmatprep.subr.bf16.mxu0 0
  %1918 = vmatpush2.bf16.msra.mxu0 0
  %1919 = vmatprep.subr.bf16.mxu0 0
  %1920 = vmatpush2.bf16.msra.mxu0 0
  %1921 = vmatprep.subr.bf16.mxu0 0
  %1922 = vmatpush2.bf16.msra.mxu0 0
  %1923 = vmatprep.mubr.bf16.mxu0 0
  %1924 = vmatmul.mubr.bf16.gmra.mxu0 %v1889
  %v1925 = vpop.f32.mrf.mxu0
  %v1926 = vadd.f32 %v1862, %v1925
  %v1927 = vpop.f32.mrf.mxu0
  %v1928 = vpop.f32.mrf.mxu0
  %v1929 = vadd.f32 %v1862, %v1928
  %v1930 = vpop.f32.mrf.mxu0
  %1931 = vdwg.mxu0
  %v1932 = vadd.f32 %v1926, %v1349
  %v1933 = vadd.f32 %v1929, %v1350
  %vm1934 = vcmp.ge.f32.partialorder %v1932, 0.0
  %vm1935 = vcmp.ge.f32.partialorder %v1933, 0.0
  %v1936 = vmul.f32 %v1932, 0.01
  %v1937 = vmul.f32 %v1933, 0.01
  %v1938 = vsel %vm1934, %v1932, %v1936
  %v1939 = vsel %vm1935, %v1933, %v1937
  %v1940 = vld [vmem:[%s22] sm:$0xf]
  %v1941 = vld [vmem:[%s22 + $0x4] sm:$0xf]
  %v1942 = vld [vmem:[%s22 + $0x8] sm:$0xf]
  %v1943 = vld [vmem:[%s22 + $0xc] sm:$0xf]
  %v1944 = vld [vmem:[%s22 + $0x10] sm:$0xf]
  %v1945 = vld [vmem:[%s22 + $0x14] sm:$0xf]
  %v1946 = vld [vmem:[%s22 + $0x18] sm:$0xf]
  %v1947 = vld [vmem:[%s22 + $0x1c] sm:$0xf]
  %v1948 = vpack.c.bf16 %v1939, %v1938
  %v1949 = vld [vmem:[%s21] sm:$0x1]
  %v1951 = vlaneseq
  %v1952 = vshrl.u32 %v1951, 7
  %v1953 = vsub.s32 0, %v1952
  %v1954 = vrot.slane %v1949, %v1953
  %v1964 = vunpack.c.l.b16 %v1940
  %v1965 = vunpack.c.l.b16 %v1941
  %v1966 = vunpack.c.l.b16 %v1942
  %v1967 = vunpack.c.l.b16 %v1943
  %v1968 = vunpack.c.l.b16 %v1944
  %v1969 = vunpack.c.l.b16 %v1945
  %v1970 = vunpack.c.l.b16 %v1946
  %v1971 = vunpack.c.l.b16 %v1947
  %v1972 = vpack.c.b16 %v1965, %v1964
  %v1973 = vpack.c.b16 %v1967, %v1966
  %v1974 = vpack.c.b16 %v1969, %v1968
  %v1975 = vpack.c.b16 %v1971, %v1970
  %v1981 = vsel %vm1139, %v1948, 0
  %1983 = vmatprep.subr.bf16.mxu0 0
  %1984 = vmatpush1.bf16.msra.mxu0 0
  %1985 = vmatprep.subr.bf16.mxu0 0
  %1986 = vmatpush1.bf16.msra.mxu0 0
  %1987 = vmatprep.subr.bf16.mxu0 0
  %1988 = vmatpush1.bf16.msra.mxu0 0
  %1989 = vmatprep.subr.bf16.mxu0 0
  %1990 = vmatpush1.bf16.msra.mxu0 0
  %1991 = vmatprep.subr.bf16.mxu0 0
  %1992 = vmatpush1.bf16.msra.mxu0 %v1975
  %1993 = vmatprep.subr.bf16.mxu0 0
  %1994 = vmatpush1.bf16.msra.mxu0 %v1974
  %1995 = vmatprep.subr.bf16.mxu0 0
  %1996 = vmatpush1.bf16.msra.mxu0 %v1973
  %1997 = vmatprep.subr.bf16.mxu0 0
  %1998 = vmatpush1.bf16.msra.mxu0 %v1972
  %1999 = vmatprep.subr.bf16.mxu0 0
  %2000 = vmatpush2.bf16.msra.mxu0 0
  %2001 = vmatprep.subr.bf16.mxu0 0
  %2002 = vmatpush2.bf16.msra.mxu0 0
  %2003 = vmatprep.subr.bf16.mxu0 0
  %2004 = vmatpush2.bf16.msra.mxu0 0
  %2005 = vmatprep.subr.bf16.mxu0 0
  %2006 = vmatpush2.bf16.msra.mxu0 0
  %2007 = vmatprep.subr.bf16.mxu0 0
  %2008 = vmatpush2.bf16.msra.mxu0 0
  %2009 = vmatprep.subr.bf16.mxu0 0
  %2010 = vmatpush2.bf16.msra.mxu0 0
  %2011 = vmatprep.subr.bf16.mxu0 0
  %2012 = vmatpush2.bf16.msra.mxu0 0
  %2013 = vmatprep.subr.bf16.mxu0 0
  %2014 = vmatpush2.bf16.msra.mxu0 0
  %2015 = vmatprep.mubr.bf16.mxu0 0
  %2016 = vmatmul.mubr.bf16.gmra.mxu0 %v1981
  %v2017 = vpop.f32.mrf.mxu0
  %v2018 = vadd.f32 %v1954, %v2017
  %v2019 = vpop.f32.mrf.mxu0
  %v2020 = vpop.f32.mrf.mxu0
  %v2021 = vadd.f32 %v1954, %v2020
  %v2022 = vpop.f32.mrf.mxu0
  %2023 = vdwg.mxu0
  %vm2024 = vcmp.ge.f32.partialorder %v2018, 0.0
  %vm2025 = vcmp.ge.f32.partialorder %v2021, 0.0
  %v2026 = vmul.f32 %v2018, 0.01
  %v2027 = vmul.f32 %v2021, 0.01
  %v2028 = vsel %vm2024, %v2018, %v2026
  %v2029 = vsel %vm2025, %v2021, %v2027
  %v2030 = vld [vmem:[%s23] sm:$0xf]
  %v2031 = vld [vmem:[%s23 + $0x4] sm:$0xf]
  %v2032 = vld [vmem:[%s23 + $0x8] sm:$0xf]
  %v2033 = vld [vmem:[%s23 + $0xc] sm:$0xf]
  %v2034 = vld [vmem:[%s23 + $0x10] sm:$0xf]
  %v2035 = vld [vmem:[%s23 + $0x14] sm:$0xf]
  %v2036 = vld [vmem:[%s23 + $0x18] sm:$0xf]
  %v2037 = vld [vmem:[%s23 + $0x1c] sm:$0xf]
  %v2038 = vpack.c.bf16 %v2029, %v2028
  %v2047 = vunpack.c.l.b16 %v2030
  %v2048 = vunpack.c.l.b16 %v2031
  %v2049 = vunpack.c.l.b16 %v2032
  %v2050 = vunpack.c.l.b16 %v2033
  %v2051 = vunpack.c.l.b16 %v2034
  %v2052 = vunpack.c.l.b16 %v2035
  %v2053 = vunpack.c.l.b16 %v2036
  %v2054 = vunpack.c.l.b16 %v2037
  %v2055 = vpack.c.b16 %v2048, %v2047
  %v2056 = vpack.c.b16 %v2050, %v2049
  %v2057 = vpack.c.b16 %v2052, %v2051
  %v2058 = vpack.c.b16 %v2054, %v2053
  %v2064 = vsel %vm1139, %v2038, 0
  %2066 = vmatprep.subr.bf16.mxu0 0
  %2067 = vmatpush1.bf16.msra.mxu0 0
  %2068 = vmatprep.subr.bf16.mxu0 0
  %2069 = vmatpush1.bf16.msra.mxu0 0
  %2070 = vmatprep.subr.bf16.mxu0 0
  %2071 = vmatpush1.bf16.msra.mxu0 0
  %2072 = vmatprep.subr.bf16.mxu0 0
  %2073 = vmatpush1.bf16.msra.mxu0 0
  %2074 = vmatprep.subr.bf16.mxu0 0
  %2075 = vmatpush1.bf16.msra.mxu0 %v2058
  %2076 = vmatprep.subr.bf16.mxu0 0
  %2077 = vmatpush1.bf16.msra.mxu0 %v2057
  %2078 = vmatprep.subr.bf16.mxu0 0
  %2079 = vmatpush1.bf16.msra.mxu0 %v2056
  %2080 = vmatprep.subr.bf16.mxu0 0
  %2081 = vmatpush1.bf16.msra.mxu0 %v2055
  %2082 = vmatprep.subr.bf16.mxu0 0
  %2083 = vmatpush2.bf16.msra.mxu0 0
  %2084 = vmatprep.subr.bf16.mxu0 0
  %2085 = vmatpush2.bf16.msra.mxu0 0
  %2086 = vmatprep.subr.bf16.mxu0 0
  %2087 = vmatpush2.bf16.msra.mxu0 0
  %2088 = vmatprep.subr.bf16.mxu0 0
  %2089 = vmatpush2.bf16.msra.mxu0 0
  %2090 = vmatprep.subr.bf16.mxu0 0
  %2091 = vmatpush2.bf16.msra.mxu0 0
  %2092 = vmatprep.subr.bf16.mxu0 0
  %2093 = vmatpush2.bf16.msra.mxu0 0
  %2094 = vmatprep.subr.bf16.mxu0 0
  %2095 = vmatpush2.bf16.msra.mxu0 0
  %2096 = vmatprep.subr.bf16.mxu0 0
  %2097 = vmatpush2.bf16.msra.mxu0 0
  %2098 = vmatprep.mubr.bf16.mxu0 0
  %2099 = vmatmul.mubr.bf16.gmra.mxu0 %v2064
  %v2100 = vpop.f32.mrf.mxu0
  %v2101 = vadd.f32 0.0, %v2100
  %v2102 = vpop.f32.mrf.mxu0
  %v2103 = vpop.f32.mrf.mxu0
  %v2104 = vadd.f32 0.0, %v2103
  %v2105 = vpop.f32.mrf.mxu0
  %2106 = vdwg.mxu0
  %v2123 = vunpack.c.l.b16 %v588
  %v2124 = vunpack.c.l.b16 %v589
  %v2125 = vunpack.c.l.b16 %v590
  %v2126 = vunpack.c.l.b16 %v591
  %v2127 = vunpack.c.l.b16 %v592
  %v2128 = vunpack.c.l.b16 %v593
  %v2129 = vunpack.c.l.b16 %v594
  %v2130 = vunpack.c.l.b16 %v595
  %v2131 = vunpack.c.l.b16 %v596
  %v2132 = vunpack.c.l.b16 %v597
  %v2133 = vunpack.c.l.b16 %v598
  %v2134 = vunpack.c.l.b16 %v599
  %v2135 = vunpack.c.l.b16 %v600
  %v2136 = vunpack.c.l.b16 %v601
  %v2137 = vunpack.c.l.b16 %v602
  %v2138 = vunpack.c.l.b16 %v603
  %v2139 = vpack.c.b16 %v2124, %v2123
  %v2140 = vpack.c.b16 %v2126, %v2125
  %v2141 = vpack.c.b16 %v2128, %v2127
  %v2142 = vpack.c.b16 %v2130, %v2129
  %v2143 = vpack.c.b16 %v2132, %v2131
  %v2144 = vpack.c.b16 %v2134, %v2133
  %v2145 = vpack.c.b16 %v2136, %v2135
  %v2146 = vpack.c.b16 %v2138, %v2137
  %2155 = vmatprep.subr.bf16.mxu0 0
  %2156 = vmatpush1.bf16.msra.mxu0 %v2146
  %2157 = vmatprep.subr.bf16.mxu0 0
  %2158 = vmatpush1.bf16.msra.mxu0 %v2145
  %2159 = vmatprep.subr.bf16.mxu0 0
  %2160 = vmatpush1.bf16.msra.mxu0 %v2144
  %2161 = vmatprep.subr.bf16.mxu0 0
  %2162 = vmatpush1.bf16.msra.mxu0 %v2143
  %2163 = vmatprep.subr.bf16.mxu0 0
  %2164 = vmatpush1.bf16.msra.mxu0 %v2142
  %2165 = vmatprep.subr.bf16.mxu0 0
  %2166 = vmatpush1.bf16.msra.mxu0 %v2141
  %2167 = vmatprep.subr.bf16.mxu0 0
  %2168 = vmatpush1.bf16.msra.mxu0 %v2140
  %2169 = vmatprep.subr.bf16.mxu0 0
  %2170 = vmatpush1.bf16.msra.mxu0 %v2139
  %2171 = vmatprep.subr.bf16.mxu0 0
  %2172 = vmatpush2.bf16.msra.mxu0 0
  %2173 = vmatprep.subr.bf16.mxu0 0
  %2174 = vmatpush2.bf16.msra.mxu0 0
  %2175 = vmatprep.subr.bf16.mxu0 0
  %2176 = vmatpush2.bf16.msra.mxu0 0
  %2177 = vmatprep.subr.bf16.mxu0 0
  %2178 = vmatpush2.bf16.msra.mxu0 0
  %2179 = vmatprep.subr.bf16.mxu0 0
  %2180 = vmatpush2.bf16.msra.mxu0 0
  %2181 = vmatprep.subr.bf16.mxu0 0
  %2182 = vmatpush2.bf16.msra.mxu0 0
  %2183 = vmatprep.subr.bf16.mxu0 0
  %2184 = vmatpush2.bf16.msra.mxu0 0
  %2185 = vmatprep.subr.bf16.mxu0 0
  %2186 = vmatpush2.bf16.msra.mxu0 0
  %2187 = vmatprep.mubr.bf16.mxu0 0
  %2188 = vmatmul.mubr.bf16.gmra.mxu0 %v604
  %v2189 = vpop.f32.mrf.mxu0
  %v2190 = vadd.f32 %v2101, %v2189
  %v2191 = vpop.f32.mrf.mxu0
  %v2192 = vpop.f32.mrf.mxu0
  %v2193 = vadd.f32 %v2104, %v2192
  %v2194 = vpop.f32.mrf.mxu0
  %2195 = vdwg.mxu0
  %v2196 = vld [vmem:[%s24] sm:$0x1]
  %v2198 = vlaneseq
  %v2199 = vshrl.u32 %v2198, 7
  %v2200 = vsub.s32 0, %v2199
  %v2201 = vrot.slane %v2196, %v2200
  %v2203 = vadd.f32 %v2190, %v2201
  %v2204 = vadd.f32 %v2193, %v2201
  %vm2205 = vcmp.ge.f32.partialorder %v2203, 0.0
  %vm2206 = vcmp.ge.f32.partialorder %v2204, 0.0
  %v2207 = vmul.f32 %v2203, 0.01
  %v2208 = vmul.f32 %v2204, 0.01
  %v2209 = vsel %vm2205, %v2203, %v2207
  %v2210 = vsel %vm2206, %v2204, %v2208
  %2211 = vst [vmem:[%s25] sm:$0xff] %v2209
  %2212 = vst [vmem:[%s25 + $0x8] sm:$0xff] %v2210
  // Predicated region
  $region102: #{fwd.1} parent=0 // pred_check
    _
  $region103: #{fwd.1} parent=0 // pred_check_branch
    %2214 = sbr.rel (0) target = $region105
  $region104: #{fwd.1} parent=0 // pred_region
    _
  $region105: #{fwd.1} parent=0 // pred_fallthru
    _
  // Predicated region
  $region106: #{fwd.1} parent=0 // pred_check
    _
  $region107: #{fwd.1} parent=0 // pred_check_branch
    %2216 = sbr.rel (0) target = $region109
  $region108: #{fwd.1} parent=0 // pred_region
    _
  $region109: #{fwd.1} parent=0 // pred_fallthru
    _

// kernel: fwd.1
$region0: #{fwd.1}
  #allocation0 [shape = 'u32[]', space=smem, size = 0x4, offset = 0x4, fixed_abs, tag = 'smem constant byte address 0x4 - core index']
  #allocation1 [shape = 'u32[144,128]{1,0:T(1,128)}', space=vmem, size = 0x12000, scoped, tag = 'internal scratch']
  %s0 = inlined_call_operand.vmem [shape: bf16[32,128], index: 0, kind: input, shape index: {}]
  %s1 = inlined_call_operand.vmem [shape: bf16[3,16,32], index: 1, kind: input, shape index: {}]
  %s2 = inlined_call_operand.vmem [shape: bf16[3,128,64], index: 2, kind: input, shape index: {}]
  %s3 = inlined_call_operand.vmem [shape: f32[1,64], index: 3, kind: input, shape index: {}]
  %s4 = inlined_call_operand.vmem [shape: f32[1,64], index: 4, kind: input, shape index: {}]
  %s5 = inlined_call_operand.vmem [shape: bf16[64,64], index: 5, kind: input, shape index: {}]
  %s6 = inlined_call_operand.vmem [shape: bf16[16,32], index: 6, kind: input, shape index: {}, may-alias: {6,17}]
  %s7 = inlined_call_operand.vmem [shape: bf16[128,64], index: 7, kind: input, shape index: {}]
  %s8 = inlined_call_operand.vmem [shape: f32[1,384], index: 8, kind: input, shape index: {}]
  %s9 = inlined_call_operand.vmem [shape: bf16[128,384], index: 9, kind: input, shape index: {}]
  %s10 = inlined_call_operand.vmem [shape: bf16[3,16,16], index: 10, kind: input, shape index: {}]
  %s11 = inlined_call_operand.vmem [shape: bf16[3,64,64], index: 11, kind: input, shape index: {}]
  %s12 = inlined_call_operand.vmem [shape: f32[1,64], index: 12, kind: input, shape index: {}]
  %s13 = inlined_call_operand.vmem [shape: bf16[64,64], index: 13, kind: input, shape index: {}]
  %s14 = inlined_call_operand.vmem [shape: f32[1,64], index: 14, kind: input, shape index: {}]
  %s15 = inlined_call_operand.vmem [shape: f32[1,64], index: 15, kind: input, shape index: {}]
  %s16 = inlined_call_operand.vmem [shape: bf16[64,64], index: 16, kind: input, shape index: {}]
  %s17 = inlined_call_operand.vmem [shape: bf16[16,32], index: 17, kind: input, shape index: {}, may-alias: {6,17}]
  %s18 = inlined_call_operand.vmem [shape: bf16[128,128], index: 18, kind: input, shape index: {}]
  %s19 = inlined_call_operand.vmem [shape: f32[1,128], index: 19, kind: input, shape index: {}]
  %s20 = inlined_call_operand.vmem [shape: bf16[128,128], index: 20, kind: input, shape index: {}]
  %s21 = inlined_call_operand.vmem [shape: f32[1,64], index: 21, kind: input, shape index: {}]
  %s22 = inlined_call_operand.vmem [shape: bf16[64,64], index: 22, kind: input, shape index: {}]
  %s23 = inlined_call_operand.vmem [shape: bf16[64,128], index: 23, kind: input, shape index: {}]
  %s24 = inlined_call_operand.vmem [shape: f32[1,128], index: 24, kind: input, shape index: {}]
  %s25 = inlined_call_operand.vmem [shape: f32[16,128], index: 25, kind: output, shape index: {}]
  %s26 = sld [smem:[#allocation0]]
  $region110: #{fwd.1} parent=0
    _
  %s28 = ssub.s32 1, %s26
  %s29 = scalar_select 0, %s28, %s26
  // Predicated region
  $region2: #{fwd.1} parent=0 // pred_check
    _
  $region3: #{fwd.1} parent=0 // pred_check_branch
    %31 = sbr.rel (0) target = $region5
  $region4: #{fwd.1} parent=0 // pred_region
    _
  $region5: #{fwd.1} parent=0 // pred_fallthru
    _
  // Predicated region
  $region6: #{fwd.1} parent=0 // pred_check
    _
  $region7: #{fwd.1} parent=0 // pred_check_branch
    %33 = sbr.rel (0) target = $region9
  $region8: #{fwd.1} parent=0 // pred_region
    _
  $region9: #{fwd.1} parent=0 // pred_fallthru
    _
  // Predicated region
  $region10: #{fwd.1} parent=0 // pred_check
    _
  $region11: #{fwd.1} parent=0 // pred_check_branch
    %35 = sbr.rel (0) target = $region13
  $region12: #{fwd.1} parent=0 // pred_region
    _
  $region13: #{fwd.1} parent=0 // pred_fallthru
    _
  // Predicated region
  $region14: #{fwd.1} parent=0 // pred_check
    _
  $region15: #{fwd.1} parent=0 // pred_check_branch
    %37 = sbr.rel (0) target = $region17
  $region16: #{fwd.1} parent=0 // pred_region
    _
  $region17: #{fwd.1} parent=0 // pred_fallthru
    _
  // Predicated region
  $region18: #{fwd.1} parent=0 // pred_check
    _
  $region19: #{fwd.1} parent=0 // pred_check_branch
    %39 = sbr.rel (0) target = $region21
  $region20: #{fwd.1} parent=0 // pred_region
    _
  $region21: #{fwd.1} parent=0 // pred_fallthru
    _
  // Predicated region
  $region22: #{fwd.1} parent=0 // pred_check
    _
  $region23: #{fwd.1} parent=0 // pred_check_branch
    %41 = sbr.rel (0) target = $region25
  $region24: #{fwd.1} parent=0 // pred_region
    _
  $region25: #{fwd.1} parent=0 // pred_fallthru
    _
  // Predicated region
  $region26: #{fwd.1} parent=0 // pred_check
    _
  $region27: #{fwd.1} parent=0 // pred_check_branch
    %43 = sbr.rel (0) target = $region29
  $region28: #{fwd.1} parent=0 // pred_region
    _
  $region29: #{fwd.1} parent=0 // pred_fallthru
    _
  // Predicated region
  $region30: #{fwd.1} parent=0 // pred_check
    _
  $region31: #{fwd.1} parent=0 // pred_check_branch
    %45 = sbr.rel (0) target = $region33
  $region32: #{fwd.1} parent=0 // pred_region
    _
  $region33: #{fwd.1} parent=0 // pred_fallthru
    _
  // Predicated region
  $region34: #{fwd.1} parent=0 // pred_check
    _
  $region35: #{fwd.1} parent=0 // pred_check_branch
    %47 = sbr.rel (0) target = $region37
  $region36: #{fwd.1} parent=0 // pred_region
    _
  $region37: #{fwd.1} parent=0 // pred_fallthru
    _
  // Predicated region
  $region38: #{fwd.1} parent=0 // pred_check
    _
  $region39: #{fwd.1} parent=0 // pred_check_branch
    %49 = sbr.rel (0) target = $region41
  $region40: #{fwd.1} parent=0 // pred_region
    _
  $region41: #{fwd.1} parent=0 // pred_fallthru
    _
  // Predicated region
  $region42: #{fwd.1} parent=0 // pred_check
    _
  $region43: #{fwd.1} parent=0 // pred_check_branch
    %51 = sbr.rel (0) target = $region45
  $region44: #{fwd.1} parent=0 // pred_region
    _
  $region45: #{fwd.1} parent=0 // pred_fallthru
    _
  // Predicated region
  $region46: #{fwd.1} parent=0 // pred_check
    _
  $region47: #{fwd.1} parent=0 // pred_check_branch
    %53 = sbr.rel (0) target = $region49
  $region48: #{fwd.1} parent=0 // pred_region
    _
  $region49: #{fwd.1} parent=0 // pred_fallthru
    _
  // Predicated region
  $region50: #{fwd.1} parent=0 // pred_check
    _
  $region51: #{fwd.1} parent=0 // pred_check_branch
    %55 = sbr.rel (0) target = $region53
  $region52: #{fwd.1} parent=0 // pred_region
    _
  $region53: #{fwd.1} parent=0 // pred_fallthru
    _
  // Predicated region
  $region54: #{fwd.1} parent=0 // pred_check
    _
  $region55: #{fwd.1} parent=0 // pred_check_branch
    %57 = sbr.rel (0) target = $region57
  $region56: #{fwd.1} parent=0 // pred_region
    _
  $region57: #{fwd.1} parent=0 // pred_fallthru
    _
  // Predicated region
  $region58: #{fwd.1} parent=0 // pred_check
    _
  $region59: #{fwd.1} parent=0 // pred_check_branch
    %59 = sbr.rel (0) target = $region61
  $region60: #{fwd.1} parent=0 // pred_region
    _
  $region61: #{fwd.1} parent=0 // pred_fallthru
    _
  // Predicated region
  $region62: #{fwd.1} parent=0 // pred_check
    _
  $region63: #{fwd.1} parent=0 // pred_check_branch
    %61 = sbr.rel (0) target = $region65
  $region64: #{fwd.1} parent=0 // pred_region
    _
  $region65: #{fwd.1} parent=0 // pred_fallthru
    _
  // Predicated region
  $region66: #{fwd.1} parent=0 // pred_check
    _
  $region67: #{fwd.1} parent=0 // pred_check_branch
    %63 = sbr.rel (0) target = $region69
  $region68: #{fwd.1} parent=0 // pred_region
    _
  $region69: #{fwd.1} parent=0 // pred_fallthru
    _
  // Predicated region
  $region70: #{fwd.1} parent=0 // pred_check
    _
  $region71: #{fwd.1} parent=0 // pred_check_branch
    %65 = sbr.rel (0) target = $region73
  $region72: #{fwd.1} parent=0 // pred_region
    _
  $region73: #{fwd.1} parent=0 // pred_fallthru
    _
  // Predicated region
  $region74: #{fwd.1} parent=0 // pred_check
    _
  $region75: #{fwd.1} parent=0 // pred_check_branch
    %67 = sbr.rel (0) target = $region77
  $region76: #{fwd.1} parent=0 // pred_region
    _
  $region77: #{fwd.1} parent=0 // pred_fallthru
    _
  // Predicated region
  $region78: #{fwd.1} parent=0 // pred_check
    _
  $region79: #{fwd.1} parent=0 // pred_check_branch
    %69 = sbr.rel (0) target = $region81
  $region80: #{fwd.1} parent=0 // pred_region
    _
  $region81: #{fwd.1} parent=0 // pred_fallthru
    _
  // Predicated region
  $region82: #{fwd.1} parent=0 // pred_check
    _
  $region83: #{fwd.1} parent=0 // pred_check_branch
    %71 = sbr.rel (0) target = $region85
  $region84: #{fwd.1} parent=0 // pred_region
    _
  $region85: #{fwd.1} parent=0 // pred_fallthru
    _
  // Predicated region
  $region86: #{fwd.1} parent=0 // pred_check
    _
  $region87: #{fwd.1} parent=0 // pred_check_branch
    %73 = sbr.rel (0) target = $region89
  $region88: #{fwd.1} parent=0 // pred_region
    _
  $region89: #{fwd.1} parent=0 // pred_fallthru
    _
  // Predicated region
  $region90: #{fwd.1} parent=0 // pred_check
    _
  $region91: #{fwd.1} parent=0 // pred_check_branch
    %75 = sbr.rel (0) target = $region93
  $region92: #{fwd.1} parent=0 // pred_region
    _
  $region93: #{fwd.1} parent=0 // pred_fallthru
    _
  // Predicated region
  $region94: #{fwd.1} parent=0 // pred_check
    _
  $region95: #{fwd.1} parent=0 // pred_check_branch
    %77 = sbr.rel (0) target = $region97
  $region96: #{fwd.1} parent=0 // pred_region
    _
  $region97: #{fwd.1} parent=0 // pred_fallthru
    _
  // Predicated region
  $region98: #{fwd.1} parent=0 // pred_check
    _
  $region99: #{fwd.1} parent=0 // pred_check_branch
    %79 = sbr.rel (0) target = $region101
  $region100: #{fwd.1} parent=0 // pred_region
    _
  $region101: #{fwd.1} parent=0 // pred_fallthru
    _
  %v81 = vld [vmem:[%s0] sm:$0xf]
  %v82 = vld [vmem:[%s0 + $0x4] sm:$0xf]
  %v83 = vld [vmem:[%s0 + $0x8] sm:$0xf]
  %v84 = vld [vmem:[%s0 + $0xc] sm:$0xf]
  %v85 = vld [vmem:[%s20] sm:$0xf]
  %v86 = vld [vmem:[%s20 + $0x4] sm:$0xf]
  %v87 = vld [vmem:[%s20 + $0x8] sm:$0xf]
  %v88 = vld [vmem:[%s20 + $0xc] sm:$0xf]
  %v89 = vld [vmem:[%s20 + $0x10] sm:$0xf]
  %v90 = vld [vmem:[%s20 + $0x14] sm:$0xf]
  %v91 = vld [vmem:[%s20 + $0x18] sm:$0xf]
  %v92 = vld [vmem:[%s20 + $0x1c] sm:$0xf]
  %v93 = vld [vmem:[%s20 + $0x20] sm:$0xf]
  %v94 = vld [vmem:[%s20 + $0x24] sm:$0xf]
  %v95 = vld [vmem:[%s20 + $0x28] sm:$0xf]
  %v96 = vld [vmem:[%s20 + $0x2c] sm:$0xf]
  %v97 = vld [vmem:[%s20 + $0x30] sm:$0xf]
  %v98 = vld [vmem:[%s20 + $0x34] sm:$0xf]
  %v99 = vld [vmem:[%s20 + $0x38] sm:$0xf]
  %v100 = vld [vmem:[%s20 + $0x3c] sm:$0xf]
  %v101 = vld [vmem:[%s19] sm:$0x1]
  %v103 = vlaneseq
  %v104 = vshrl.u32 %v103, 7
  %v105 = vsub.s32 0, %v104
  %v106 = vrot.slane %v101, %v105
  %v112 = vunpack.c.l.b16 %v81
  %v113 = vunpack.c.l.b16 %v82
  %v114 = vunpack.c.l.b16 %v83
  %v115 = vunpack.c.l.b16 %v84
  %v116 = vpack.c.b16 %v113, %v112
  %v117 = vpack.c.b16 %v115, %v114
  %v136 = vunpack.c.l.b16 %v85
  %v137 = vunpack.c.l.b16 %v86
  %v138 = vunpack.c.l.b16 %v87
  %v139 = vunpack.c.l.b16 %v88
  %v140 = vunpack.c.l.b16 %v89
  %v141 = vunpack.c.l.b16 %v90
  %v142 = vunpack.c.l.b16 %v91
  %v143 = vunpack.c.l.b16 %v92
  %v144 = vunpack.c.l.b16 %v93
  %v145 = vunpack.c.l.b16 %v94
  %v146 = vunpack.c.l.b16 %v95
  %v147 = vunpack.c.l.b16 %v96
  %v148 = vunpack.c.l.b16 %v97
  %v149 = vunpack.c.l.b16 %v98
  %v150 = vunpack.c.l.b16 %v99
  %v151 = vunpack.c.l.b16 %v100
  %v152 = vpack.c.b16 %v137, %v136
  %v153 = vpack.c.b16 %v139, %v138
  %v154 = vpack.c.b16 %v141, %v140
  %v155 = vpack.c.b16 %v143, %v142
  %v156 = vpack.c.b16 %v145, %v144
  %v157 = vpack.c.b16 %v147, %v146
  %v158 = vpack.c.b16 %v149, %v148
  %v159 = vpack.c.b16 %v151, %v150
  %168 = vmatprep.subr.bf16.mxu0 0
  %169 = vmatpush1.bf16.msra.mxu0 %v159
  %170 = vmatprep.subr.bf16.mxu0 0
  %171 = vmatpush1.bf16.msra.mxu0 %v158
  %172 = vmatprep.subr.bf16.mxu0 0
  %173 = vmatpush1.bf16.msra.mxu0 %v157
  %174 = vmatprep.subr.bf16.mxu0 0
  %175 = vmatpush1.bf16.msra.mxu0 %v156
  %176 = vmatprep.subr.bf16.mxu0 0
  %177 = vmatpush1.bf16.msra.mxu0 %v155
  %178 = vmatprep.subr.bf16.mxu0 0
  %179 = vmatpush1.bf16.msra.mxu0 %v154
  %180 = vmatprep.subr.bf16.mxu0 0
  %181 = vmatpush1.bf16.msra.mxu0 %v153
  %182 = vmatprep.subr.bf16.mxu0 0
  %183 = vmatpush1.bf16.msra.mxu0 %v152
  %184 = vmatprep.subr.bf16.mxu0 0
  %185 = vmatpush2.bf16.msra.mxu0 0
  %186 = vmatprep.subr.bf16.mxu0 0
  %187 = vmatpush2.bf16.msra.mxu0 0
  %188 = vmatprep.subr.bf16.mxu0 0
  %189 = vmatpush2.bf16.msra.mxu0 0
  %190 = vmatprep.subr.bf16.mxu0 0
  %191 = vmatpush2.bf16.msra.mxu0 0
  %192 = vmatprep.subr.bf16.mxu0 0
  %193 = vmatpush2.bf16.msra.mxu0 0
  %194 = vmatprep.subr.bf16.mxu0 0
  %195 = vmatpush2.bf16.msra.mxu0 0
  %196 = vmatprep.subr.bf16.mxu0 0
  %197 = vmatpush2.bf16.msra.mxu0 0
  %198 = vmatprep.subr.bf16.mxu0 0
  %199 = vmatpush2.bf16.msra.mxu0 0
  %200 = vmatprep.mubr.bf16.mxu0 0
  %201 = vmatmul.mubr.bf16.gmra.mxu0 %v116
  %v202 = vpop.f32.mrf.mxu0
  %v203 = vadd.f32 %v106, %v202
  %v204 = vpop.f32.mrf.mxu0
  %v205 = vpop.f32.mrf.mxu0
  %v206 = vadd.f32 %v106, %v205
  %v207 = vpop.f32.mrf.mxu0
  %208 = vmatprep.mubr.bf16.mxu0 0
  %209 = vmatmul.mubr.bf16.gmra.mxu0 %v117
  %v210 = vpop.f32.mrf.mxu0
  %v211 = vadd.f32 %v106, %v210
  %v212 = vpop.f32.mrf.mxu0
  %v213 = vpop.f32.mrf.mxu0
  %v214 = vadd.f32 %v106, %v213
  %v215 = vpop.f32.mrf.mxu0
  %216 = vdwg.mxu0
  %vm217 = vcmp.ge.f32.partialorder %v203, 0.0
  %vm218 = vcmp.ge.f32.partialorder %v206, 0.0
  %vm219 = vcmp.ge.f32.partialorder %v211, 0.0
  %vm220 = vcmp.ge.f32.partialorder %v214, 0.0
  %v221 = vmul.f32 %v203, 0.01
  %v222 = vmul.f32 %v206, 0.01
  %v223 = vmul.f32 %v211, 0.01
  %v224 = vmul.f32 %v214, 0.01
  %v225 = vsel %vm217, %v203, %v221
  %v226 = vsel %vm218, %v206, %v222
  %v227 = vsel %vm219, %v211, %v223
  %v228 = vsel %vm220, %v214, %v224
  %v229 = vld [vmem:[%s9] sm:$0xff]
  %v230 = vld [vmem:[%s9 + $0x8] sm:$0xf]
  %v231 = vld [vmem:[%s9 + $0xc] sm:$0xff]
  %v232 = vld [vmem:[%s9 + $0x14] sm:$0xf]
  %v233 = vld [vmem:[%s9 + $0x18] sm:$0xff]
  %v234 = vld [vmem:[%s9 + $0x20] sm:$0xf]
  %v235 = vld [vmem:[%s9 + $0x24] sm:$0xff]
  %v236 = vld [vmem:[%s9 + $0x2c] sm:$0xf]
  %v237 = vld [vmem:[%s9 + $0x30] sm:$0xff]
  %v238 = vld [vmem:[%s9 + $0x38] sm:$0xf]
  %v239 = vld [vmem:[%s9 + $0x3c] sm:$0xff]
  %v240 = vld [vmem:[%s9 + $0x44] sm:$0xf]
  %v241 = vld [vmem:[%s9 + $0x48] sm:$0xff]
  %v242 = vld [vmem:[%s9 + $0x50] sm:$0xf]
  %v243 = vld [vmem:[%s9 + $0x54] sm:$0xff]
  %v244 = vld [vmem:[%s9 + $0x5c] sm:$0xf]
  %v245 = vld [vmem:[%s9 + $0x60] sm:$0xff]
  %v246 = vld [vmem:[%s9 + $0x68] sm:$0xf]
  %v247 = vld [vmem:[%s9 + $0x6c] sm:$0xff]
  %v248 = vld [vmem:[%s9 + $0x74] sm:$0xf]
  %v249 = vld [vmem:[%s9 + $0x78] sm:$0xff]
  %v250 = vld [vmem:[%s9 + $0x80] sm:$0xf]
  %v251 = vld [vmem:[%s9 + $0x84] sm:$0xff]
  %v252 = vld [vmem:[%s9 + $0x8c] sm:$0xf]
  %v253 = vld [vmem:[%s9 + $0x90] sm:$0xff]
  %v254 = vld [vmem:[%s9 + $0x98] sm:$0xf]
  %v255 = vld [vmem:[%s9 + $0x9c] sm:$0xff]
  %v256 = vld [vmem:[%s9 + $0xa4] sm:$0xf]
  %v257 = vld [vmem:[%s9 + $0xa8] sm:$0xff]
  %v258 = vld [vmem:[%s9 + $0xb0] sm:$0xf]
  %v259 = vld [vmem:[%s9 + $0xb4] sm:$0xff]
  %v260 = vld [vmem:[%s9 + $0xbc] sm:$0xf]
  %v261 = vpack.c.bf16 %v226, %v225
  %v262 = vpack.c.bf16 %v228, %v227
  %v263 = vld [vmem:[%s8] sm:$0x7]
  %v265 = vlaneseq
  %v266 = vshrl.u32 %v265, 7
  %v267 = vsub.s32 0, %v266
  %v268 = vrot.slane %v263, %v267
  %v269 = vlaneseq
  %v270 = vshrl.u32 %v269, 7
  %v271 = vsub.s32 1, %v270
  %v272 = vrot.slane %v263, %v271
  %v273 = vlaneseq
  %v274 = vshrl.u32 %v273, 7
  %v275 = vsub.s32 2, %v274
  %v276 = vrot.slane %v263, %v275
  %v312 = vunpack.c.l.b16 %v229
  %v313 = vunpack.c.h.b16 %v229
  %v314 = vunpack.c.l.b16 %v230
  %v315 = vunpack.c.l.b16 %v231
  %v316 = vunpack.c.h.b16 %v231
  %v317 = vunpack.c.l.b16 %v232
  %v318 = vunpack.c.l.b16 %v233
  %v319 = vunpack.c.h.b16 %v233
  %v320 = vunpack.c.l.b16 %v234
  %v321 = vunpack.c.l.b16 %v235
  %v322 = vunpack.c.h.b16 %v235
  %v323 = vunpack.c.l.b16 %v236
  %v324 = vunpack.c.l.b16 %v237
  %v325 = vunpack.c.h.b16 %v237
  %v326 = vunpack.c.l.b16 %v238
  %v327 = vunpack.c.l.b16 %v239
  %v328 = vunpack.c.h.b16 %v239
  %v329 = vunpack.c.l.b16 %v240
  %v330 = vunpack.c.l.b16 %v241
  %v331 = vunpack.c.h.b16 %v241
  %v332 = vunpack.c.l.b16 %v242
  %v333 = vunpack.c.l.b16 %v243
  %v334 = vunpack.c.h.b16 %v243
  %v335 = vunpack.c.l.b16 %v244
  %v336 = vunpack.c.l.b16 %v245
  %v337 = vunpack.c.h.b16 %v245
  %v338 = vunpack.c.l.b16 %v246
  %v339 = vunpack.c.l.b16 %v247
  %v340 = vunpack.c.h.b16 %v247
  %v341 = vunpack.c.l.b16 %v248
  %v342 = vunpack.c.l.b16 %v249
  %v343 = vunpack.c.h.b16 %v249
  %v344 = vunpack.c.l.b16 %v250
  %v345 = vunpack.c.l.b16 %v251
  %v346 = vunpack.c.h.b16 %v251
  %v347 = vunpack.c.l.b16 %v252
  %v348 = vunpack.c.l.b16 %v253
  %v349 = vunpack.c.h.b16 %v253
  %v350 = vunpack.c.l.b16 %v254
  %v351 = vunpack.c.l.b16 %v255
  %v352 = vunpack.c.h.b16 %v255
  %v353 = vunpack.c.l.b16 %v256
  %v354 = vunpack.c.l.b16 %v257
  %v355 = vunpack.c.h.b16 %v257
  %v356 = vunpack.c.l.b16 %v258
  %v357 = vunpack.c.l.b16 %v259
  %v358 = vunpack.c.h.b16 %v259
  %v359 = vunpack.c.l.b16 %v260
  %v360 = vpack.c.b16 %v315, %v312
  %v361 = vpack.c.b16 %v316, %v313
  %v362 = vpack.c.b16 %v317, %v314
  %v363 = vpack.c.b16 %v321, %v318
  %v364 = vpack.c.b16 %v322, %v319
  %v365 = vpack.c.b16 %v323, %v320
  %v366 = vpack.c.b16 %v327, %v324
  %v367 = vpack.c.b16 %v328, %v325
  %v368 = vpack.c.b16 %v329, %v326
  %v369 = vpack.c.b16 %v333, %v330
  %v370 = vpack.c.b16 %v334, %v331
  %v371 = vpack.c.b16 %v335, %v332
  %v372 = vpack.c.b16 %v339, %v336
  %v373 = vpack.c.b16 %v340, %v337
  %v374 = vpack.c.b16 %v341, %v338
  %v375 = vpack.c.b16 %v345, %v342
  %v376 = vpack.c.b16 %v346, %v343
  %v377 = vpack.c.b16 %v347, %v344
  %v378 = vpack.c.b16 %v351, %v348
  %v379 = vpack.c.b16 %v352, %v349
  %v380 = vpack.c.b16 %v353, %v350
  %v381 = vpack.c.b16 %v357, %v354
  %v382 = vpack.c.b16 %v358, %v355
  %v383 = vpack.c.b16 %v359, %v356
  %408 = vmatprep.subr.bf16.mxu0 %v382
  %409 = vmatpush1.bf16.msra.mxu0 %v381
  %410 = vmatprep.subr.bf16.mxu0 %v379
  %411 = vmatpush1.bf16.msra.mxu0 %v378
  %412 = vmatprep.subr.bf16.mxu0 %v376
  %413 = vmatpush1.bf16.msra.mxu0 %v375
  %414 = vmatprep.subr.bf16.mxu0 %v373
  %415 = vmatpush1.bf16.msra.mxu0 %v372
  %416 = vmatprep.subr.bf16.mxu0 %v370
  %417 = vmatpush1.bf16.msra.mxu0 %v369
  %418 = vmatprep.subr.bf16.mxu0 %v367
  %419 = vmatpush1.bf16.msra.mxu0 %v366
  %420 = vmatprep.subr.bf16.mxu0 %v364
  %421 = vmatpush1.bf16.msra.mxu0 %v363
  %422 = vmatprep.subr.bf16.mxu0 %v361
  %423 = vmatpush1.bf16.msra.mxu0 %v360
  %424 = vmatprep.subr.bf16.mxu0 0
  %425 = vmatpush2.bf16.msra.mxu0 0
  %426 = vmatprep.subr.bf16.mxu0 0
  %427 = vmatpush2.bf16.msra.mxu0 0
  %428 = vmatprep.subr.bf16.mxu0 0
  %429 = vmatpush2.bf16.msra.mxu0 0
  %430 = vmatprep.subr.bf16.mxu0 0
  %431 = vmatpush2.bf16.msra.mxu0 0
  %432 = vmatprep.subr.bf16.mxu0 0
  %433 = vmatpush2.bf16.msra.mxu0 0
  %434 = vmatprep.subr.bf16.mxu0 0
  %435 = vmatpush2.bf16.msra.mxu0 0
  %436 = vmatprep.subr.bf16.mxu0 0
  %437 = vmatpush2.bf16.msra.mxu0 0
  %438 = vmatprep.subr.bf16.mxu0 0
  %439 = vmatpush2.bf16.msra.mxu0 0
  %440 = vmatprep.mubr.bf16.mxu0 0
  %441 = vmatmul.mubr.bf16.gmra.mxu0 %v261
  %v442 = vpop.f32.mrf.mxu0
  %v443 = vadd.f32 %v268, %v442
  %v444 = vpop.f32.mrf.mxu0
  %v445 = vadd.f32 %v272, %v444
  %v446 = vpop.f32.mrf.mxu0
  %v447 = vadd.f32 %v268, %v446
  %v448 = vpop.f32.mrf.mxu0
  %v449 = vadd.f32 %v272, %v448
  %450 = vmatprep.mubr.bf16.mxu0 0
  %451 = vmatmul.mubr.bf16.gmra.mxu0 %v262
  %v452 = vpop.f32.mrf.mxu0
  %v453 = vadd.f32 %v268, %v452
  %v454 = vpop.f32.mrf.mxu0
  %v455 = vadd.f32 %v272, %v454
  %v456 = vpop.f32.mrf.mxu0
  %v457 = vadd.f32 %v268, %v456
  %v458 = vpop.f32.mrf.mxu0
  %v459 = vadd.f32 %v272, %v458
  %460 = vdwg.mxu0
  %461 = vmatprep.subr.bf16.mxu0 0
  %462 = vmatpush1.bf16.msra.mxu0 %v383
  %463 = vmatprep.subr.bf16.mxu0 0
  %464 = vmatpush1.bf16.msra.mxu0 %v380
  %465 = vmatprep.subr.bf16.mxu0 0
  %466 = vmatpush1.bf16.msra.mxu0 %v377
  %467 = vmatprep.subr.bf16.mxu0 0
  %468 = vmatpush1.bf16.msra.mxu0 %v374
  %469 = vmatprep.subr.bf16.mxu0 0
  %470 = vmatpush1.bf16.msra.mxu0 %v371
  %471 = vmatprep.subr.bf16.mxu0 0
  %472 = vmatpush1.bf16.msra.mxu0 %v368
  %473 = vmatprep.subr.bf16.mxu0 0
  %474 = vmatpush1.bf16.msra.mxu0 %v365
  %475 = vmatprep.subr.bf16.mxu0 0
  %476 = vmatpush1.bf16.msra.mxu0 %v362
  %477 = vmatprep.subr.bf16.mxu0 0
  %478 = vmatpush2.bf16.msra.mxu0 0
  %479 = vmatprep.subr.bf16.mxu0 0
  %480 = vmatpush2.bf16.msra.mxu0 0
  %481 = vmatprep.subr.bf16.mxu0 0
  %482 = vmatpush2.bf16.msra.mxu0 0
  %483 = vmatprep.subr.bf16.mxu0 0
  %484 = vmatpush2.bf16.msra.mxu0 0
  %485 = vmatprep.subr.bf16.mxu0 0
  %486 = vmatpush2.bf16.msra.mxu0 0
  %487 = vmatprep.subr.bf16.mxu0 0
  %488 = vmatpush2.bf16.msra.mxu0 0
  %489 = vmatprep.subr.bf16.mxu0 0
  %490 = vmatpush2.bf16.msra.mxu0 0
  %491 = vmatprep.subr.bf16.mxu0 0
  %492 = vmatpush2.bf16.msra.mxu0 0
  %493 = vmatprep.mubr.bf16.mxu0 0
  %494 = vmatmul.mubr.bf16.gmra.mxu0 %v261
  %v495 = vpop.f32.mrf.mxu0
  %v496 = vadd.f32 %v276, %v495
  %v497 = vpop.f32.mrf.mxu0
  %v498 = vpop.f32.mrf.mxu0
  %v499 = vadd.f32 %v276, %v498
  %v500 = vpop.f32.mrf.mxu0
  %501 = vmatprep.mubr.bf16.mxu0 0
  %502 = vmatmul.mubr.bf16.gmra.mxu0 %v262
  %v503 = vpop.f32.mrf.mxu0
  %v504 = vadd.f32 %v276, %v503
  %v505 = vpop.f32.mrf.mxu0
  %v506 = vpop.f32.mrf.mxu0
  %v507 = vadd.f32 %v276, %v506
  %v508 = vpop.f32.mrf.mxu0
  %509 = vdwg.mxu0
  %vm510 = vcmp.ge.f32.partialorder %v443, 0.0
  %vm511 = vcmp.ge.f32.partialorder %v447, 0.0
  %vm512 = vcmp.ge.f32.partialorder %v453, 0.0
  %vm513 = vcmp.ge.f32.partialorder %v457, 0.0
  %v514 = vmul.f32 %v443, 0.01
  %v515 = vmul.f32 %v447, 0.01
  %v516 = vmul.f32 %v453, 0.01
  %v517 = vmul.f32 %v457, 0.01
  %v518 = vsel %vm510, %v443, %v514
  %v519 = vsel %vm511, %v447, %v515
  %v520 = vsel %vm512, %v453, %v516
  %v521 = vsel %vm513, %v457, %v517
  %vm522 = vcmp.ge.f32.partialorder %v445, 0.0
  %vm523 = vcmp.ge.f32.partialorder %v449, 0.0
  %vm524 = vcmp.ge.f32.partialorder %v455, 0.0
  %vm525 = vcmp.ge.f32.partialorder %v459, 0.0
  %v526 = vmul.f32 %v445, 0.01
  %v527 = vmul.f32 %v449, 0.01
  %v528 = vmul.f32 %v455, 0.01
  %v529 = vmul.f32 %v459, 0.01
  %v530 = vsel %vm522, %v445, %v526
  %v531 = vsel %vm523, %v449, %v527
  %v532 = vsel %vm524, %v455, %v528
  %v533 = vsel %vm525, %v459, %v529
  %v534 = vld [vmem:[%s17] sm:$0xf]
  %v535 = vld [vmem:[%s17 + $0x4] sm:$0xf]
  %v536 = vpack.c.bf16 %v519, %v518
  %v537 = vpack.c.bf16 %v521, %v520
  %v540 = vunpack.c.l.b16 %v534
  %v541 = vunpack.c.l.b16 %v535
  %v542 = vpack.c.b16 %v541, %v540
  %vm543 = vcmask 261120
  %v545 = vsel %vm543, %v542, 0
  %547 = vmatprep.subr.bf16.mxu0 0
  %548 = vmatpush1.bf16.msra.mxu0 0
  %549 = vmatprep.subr.bf16.mxu0 0
  %550 = vmatpush1.bf16.msra.mxu0 0
  %551 = vmatprep.subr.bf16.mxu0 0
  %552 = vmatpush1.bf16.msra.mxu0 0
  %553 = vmatprep.subr.bf16.mxu0 0
  %554 = vmatpush1.bf16.msra.mxu0 0
  %555 = vmatprep.subr.bf16.mxu0 0
  %556 = vmatpush1.bf16.msra.mxu0 0
  %557 = vmatprep.subr.bf16.mxu0 0
  %558 = vmatpush1.bf16.msra.mxu0 0
  %559 = vmatprep.subr.bf16.mxu0 0
  %560 = vmatpush1.bf16.msra.mxu0 %v537
  %561 = vmatprep.subr.bf16.mxu0 0
  %562 = vmatpush1.bf16.msra.mxu0 %v536
  %563 = vmatprep.subr.bf16.mxu0 0
  %564 = vmatpush2.bf16.msra.mxu0 0
  %565 = vmatprep.subr.bf16.mxu0 0
  %566 = vmatpush2.bf16.msra.mxu0 0
  %567 = vmatprep.subr.bf16.mxu0 0
  %568 = vmatpush2.bf16.msra.mxu0 0
  %569 = vmatprep.subr.bf16.mxu0 0
  %570 = vmatpush2.bf16.msra.mxu0 0
  %571 = vmatprep.subr.bf16.mxu0 0
  %572 = vmatpush2.bf16.msra.mxu0 0
  %573 = vmatprep.subr.bf16.mxu0 0
  %574 = vmatpush2.bf16.msra.mxu0 0
  %575 = vmatprep.subr.bf16.mxu0 0
  %576 = vmatpush2.bf16.msra.mxu0 0
  %577 = vmatprep.subr.bf16.mxu0 0
  %578 = vmatpush2.bf16.msra.mxu0 0
  %579 = vmatprep.mubr.bf16.mxu0 0
  %580 = vmatmul.mubr.bf16.gmra.mxu0 %v545
  %v581 = vpop.f32.mrf.mxu0
  %v582 = vadd.f32 0.0, %v581
  %v583 = vpop.f32.mrf.mxu0
  %v584 = vpop.f32.mrf.mxu0
  %v585 = vadd.f32 0.0, %v584
  %v586 = vpop.f32.mrf.mxu0
  %587 = vdwg.mxu0
  %v588 = vld [vmem:[%s18] sm:$0xf]
  %v589 = vld [vmem:[%s18 + $0x4] sm:$0xf]
  %v590 = vld [vmem:[%s18 + $0x8] sm:$0xf]
  %v591 = vld [vmem:[%s18 + $0xc] sm:$0xf]
  %v592 = vld [vmem:[%s18 + $0x10] sm:$0xf]
  %v593 = vld [vmem:[%s18 + $0x14] sm:$0xf]
  %v594 = vld [vmem:[%s18 + $0x18] sm:$0xf]
  %v595 = vld [vmem:[%s18 + $0x1c] sm:$0xf]
  %v596 = vld [vmem:[%s18 + $0x20] sm:$0xf]
  %v597 = vld [vmem:[%s18 + $0x24] sm:$0xf]
  %v598 = vld [vmem:[%s18 + $0x28] sm:$0xf]
  %v599 = vld [vmem:[%s18 + $0x2c] sm:$0xf]
  %v600 = vld [vmem:[%s18 + $0x30] sm:$0xf]
  %v601 = vld [vmem:[%s18 + $0x34] sm:$0xf]
  %v602 = vld [vmem:[%s18 + $0x38] sm:$0xf]
  %v603 = vld [vmem:[%s18 + $0x3c] sm:$0xf]
  %v604 = vpack.c.bf16 %v585, %v582
  %v605 = vld [vmem:[%s1] sm:$0xf]
  %v606 = vld [vmem:[%s1 + $0x4] sm:$0xf]
  %v607 = vpack.c.bf16 %v531, %v530
  %v608 = vpack.c.bf16 %v533, %v532
  %v611 = vunpack.c.l.b16 %v605
  %v612 = vunpack.c.l.b16 %v606
  %v613 = vpack.c.b16 %v612, %v611
  %v615 = vsel %vm543, %v613, 0
  %617 = vmatprep.subr.bf16.mxu0 0
  %618 = vmatpush1.bf16.msra.mxu0 0
  %619 = vmatprep.subr.bf16.mxu0 0
  %620 = vmatpush1.bf16.msra.mxu0 0
  %621 = vmatprep.subr.bf16.mxu0 0
  %622 = vmatpush1.bf16.msra.mxu0 0
  %623 = vmatprep.subr.bf16.mxu0 0
  %624 = vmatpush1.bf16.msra.mxu0 0
  %625 = vmatprep.subr.bf16.mxu0 0
  %626 = vmatpush1.bf16.msra.mxu0 0
  %627 = vmatprep.subr.bf16.mxu0 0
  %628 = vmatpush1.bf16.msra.mxu0 0
  %629 = vmatprep.subr.bf16.mxu0 0
  %630 = vmatpush1.bf16.msra.mxu0 %v608
  %631 = vmatprep.subr.bf16.mxu0 0
  %632 = vmatpush1.bf16.msra.mxu0 %v607
  %633 = vmatprep.subr.bf16.mxu0 0
  %634 = vmatpush2.bf16.msra.mxu0 0
  %635 = vmatprep.subr.bf16.mxu0 0
  %636 = vmatpush2.bf16.msra.mxu0 0
  %637 = vmatprep.subr.bf16.mxu0 0
  %638 = vmatpush2.bf16.msra.mxu0 0
  %639 = vmatprep.subr.bf16.mxu0 0
  %640 = vmatpush2.bf16.msra.mxu0 0
  %641 = vmatprep.subr.bf16.mxu0 0
  %642 = vmatpush2.bf16.msra.mxu0 0
  %643 = vmatprep.subr.bf16.mxu0 0
  %644 = vmatpush2.bf16.msra.mxu0 0
  %645 = vmatprep.subr.bf16.mxu0 0
  %646 = vmatpush2.bf16.msra.mxu0 0
  %647 = vmatprep.subr.bf16.mxu0 0
  %648 = vmatpush2.bf16.msra.mxu0 0
  %649 = vmatprep.mubr.bf16.mxu0 0
  %650 = vmatmul.mubr.bf16.gmra.mxu0 %v615
  %v651 = vpop.f32.mrf.mxu0
  %v652 = vadd.f32 0.0, %v651
  %v653 = vpop.f32.mrf.mxu0
  %v654 = vpop.f32.mrf.mxu0
  %v655 = vadd.f32 0.0, %v654
  %v656 = vpop.f32.mrf.mxu0
  %657 = vdwg.mxu0
  %v658 = vld [vmem:[%s2] sm:$0xf]
  %v659 = vld [vmem:[%s2 + $0x4] sm:$0xf]
  %v660 = vld [vmem:[%s2 + $0x8] sm:$0xf]
  %v661 = vld [vmem:[%s2 + $0xc] sm:$0xf]
  %v662 = vld [vmem:[%s2 + $0x10] sm:$0xf]
  %v663 = vld [vmem:[%s2 + $0x14] sm:$0xf]
  %v664 = vld [vmem:[%s2 + $0x18] sm:$0xf]
  %v665 = vld [vmem:[%s2 + $0x1c] sm:$0xf]
  %v666 = vld [vmem:[%s2 + $0x20] sm:$0xf]
  %v667 = vld [vmem:[%s2 + $0x24] sm:$0xf]
  %v668 = vld [vmem:[%s2 + $0x28] sm:$0xf]
  %v669 = vld [vmem:[%s2 + $0x2c] sm:$0xf]
  %v670 = vld [vmem:[%s2 + $0x30] sm:$0xf]
  %v671 = vld [vmem:[%s2 + $0x34] sm:$0xf]
  %v672 = vld [vmem:[%s2 + $0x38] sm:$0xf]
  %v673 = vld [vmem:[%s2 + $0x3c] sm:$0xf]
  %v674 = vpack.c.bf16 %v655, %v652
  %v675 = vld [vmem:[%s3] sm:$0x1]
  %v677 = vlaneseq
  %v678 = vshrl.u32 %v677, 7
  %v679 = vsub.s32 0, %v678
  %v680 = vrot.slane %v675, %v679
  %v698 = vunpack.c.l.b16 %v658
  %v699 = vunpack.c.l.b16 %v659
  %v700 = vunpack.c.l.b16 %v660
  %v701 = vunpack.c.l.b16 %v661
  %v702 = vunpack.c.l.b16 %v662
  %v703 = vunpack.c.l.b16 %v663
  %v704 = vunpack.c.l.b16 %v664
  %v705 = vunpack.c.l.b16 %v665
  %v706 = vunpack.c.l.b16 %v666
  %v707 = vunpack.c.l.b16 %v667
  %v708 = vunpack.c.l.b16 %v668
  %v709 = vunpack.c.l.b16 %v669
  %v710 = vunpack.c.l.b16 %v670
  %v711 = vunpack.c.l.b16 %v671
  %v712 = vunpack.c.l.b16 %v672
  %v713 = vunpack.c.l.b16 %v673
  %v714 = vpack.c.b16 %v699, %v698
  %v715 = vpack.c.b16 %v701, %v700
  %v716 = vpack.c.b16 %v703, %v702
  %v717 = vpack.c.b16 %v705, %v704
  %v718 = vpack.c.b16 %v707, %v706
  %v719 = vpack.c.b16 %v709, %v708
  %v720 = vpack.c.b16 %v711, %v710
  %v721 = vpack.c.b16 %v713, %v712
  %730 = vmatprep.subr.bf16.mxu0 0
  %731 = vmatpush1.bf16.msra.mxu0 %v721
  %732 = vmatprep.subr.bf16.mxu0 0
  %733 = vmatpush1.bf16.msra.mxu0 %v720
  %734 = vmatprep.subr.bf16.mxu0 0
  %735 = vmatpush1.bf16.msra.mxu0 %v719
  %736 = vmatprep.subr.bf16.mxu0 0
  %737 = vmatpush1.bf16.msra.mxu0 %v718
  %738 = vmatprep.subr.bf16.mxu0 0
  %739 = vmatpush1.bf16.msra.mxu0 %v717
  %740 = vmatprep.subr.bf16.mxu0 0
  %741 = vmatpush1.bf16.msra.mxu0 %v716
  %742 = vmatprep.subr.bf16.mxu0 0
  %743 = vmatpush1.bf16.msra.mxu0 %v715
  %744 = vmatprep.subr.bf16.mxu0 0
  %745 = vmatpush1.bf16.msra.mxu0 %v714
  %746 = vmatprep.subr.bf16.mxu0 0
  %747 = vmatpush2.bf16.msra.mxu0 0
  %748 = vmatprep.subr.bf16.mxu0 0
  %749 = vmatpush2.bf16.msra.mxu0 0
  %750 = vmatprep.subr.bf16.mxu0 0
  %751 = vmatpush2.bf16.msra.mxu0 0
  %752 = vmatprep.subr.bf16.mxu0 0
  %753 = vmatpush2.bf16.msra.mxu0 0
  %754 = vmatprep.subr.bf16.mxu0 0
  %755 = vmatpush2.bf16.msra.mxu0 0
  %756 = vmatprep.subr.bf16.mxu0 0
  %757 = vmatpush2.bf16.msra.mxu0 0
  %758 = vmatprep.subr.bf16.mxu0 0
  %759 = vmatpush2.bf16.msra.mxu0 0
  %760 = vmatprep.subr.bf16.mxu0 0
  %761 = vmatpush2.bf16.msra.mxu0 0
  %762 = vmatprep.mubr.bf16.mxu0 0
  %763 = vmatmul.mubr.bf16.gmra.mxu0 %v674
  %v764 = vpop.f32.mrf.mxu0
  %v765 = vadd.f32 %v680, %v764
  %v766 = vpop.f32.mrf.mxu0
  %v767 = vpop.f32.mrf.mxu0
  %v768 = vadd.f32 %v680, %v767
  %v769 = vpop.f32.mrf.mxu0
  %770 = vdwg.mxu0
  %s771 = scalar_lea.vmem %s1, 8
  %v772 = vld [vmem:[%s771] sm:$0xf]
  %v773 = vld [vmem:[%s771 + $0x4] sm:$0xf]
  %v776 = vunpack.c.l.b16 %v772
  %v777 = vunpack.c.l.b16 %v773
  %v778 = vpack.c.b16 %v777, %v776
  %v780 = vsel %vm543, %v778, 0
  %782 = vmatprep.subr.bf16.mxu0 0
  %783 = vmatpush1.bf16.msra.mxu0 0
  %784 = vmatprep.subr.bf16.mxu0 0
  %785 = vmatpush1.bf16.msra.mxu0 0
  %786 = vmatprep.subr.bf16.mxu0 0
  %787 = vmatpush1.bf16.msra.mxu0 0
  %788 = vmatprep.subr.bf16.mxu0 0
  %789 = vmatpush1.bf16.msra.mxu0 0
  %790 = vmatprep.subr.bf16.mxu0 0
  %791 = vmatpush1.bf16.msra.mxu0 0
  %792 = vmatprep.subr.bf16.mxu0 0
  %793 = vmatpush1.bf16.msra.mxu0 0
  %794 = vmatprep.subr.bf16.mxu0 0
  %795 = vmatpush1.bf16.msra.mxu0 %v608
  %796 = vmatprep.subr.bf16.mxu0 0
  %797 = vmatpush1.bf16.msra.mxu0 %v607
  %798 = vmatprep.subr.bf16.mxu0 0
  %799 = vmatpush2.bf16.msra.mxu0 0
  %800 = vmatprep.subr.bf16.mxu0 0
  %801 = vmatpush2.bf16.msra.mxu0 0
  %802 = vmatprep.subr.bf16.mxu0 0
  %803 = vmatpush2.bf16.msra.mxu0 0
  %804 = vmatprep.subr.bf16.mxu0 0
  %805 = vmatpush2.bf16.msra.mxu0 0
  %806 = vmatprep.subr.bf16.mxu0 0
  %807 = vmatpush2.bf16.msra.mxu0 0
  %808 = vmatprep.subr.bf16.mxu0 0
  %809 = vmatpush2.bf16.msra.mxu0 0
  %810 = vmatprep.subr.bf16.mxu0 0
  %811 = vmatpush2.bf16.msra.mxu0 0
  %812 = vmatprep.subr.bf16.mxu0 0
  %813 = vmatpush2.bf16.msra.mxu0 0
  %814 = vmatprep.mubr.bf16.mxu0 0
  %815 = vmatmul.mubr.bf16.gmra.mxu0 %v780
  %v816 = vpop.f32.mrf.mxu0
  %v817 = vadd.f32 0.0, %v816
  %v818 = vpop.f32.mrf.mxu0
  %v819 = vpop.f32.mrf.mxu0
  %v820 = vadd.f32 0.0, %v819
  %v821 = vpop.f32.mrf.mxu0
  %822 = vdwg.mxu0
  %s823 = scalar_lea.vmem %s2, 64
  %v824 = vld [vmem:[%s823] sm:$0xf]
  %v825 = vld [vmem:[%s823 + $0x4] sm:$0xf]
  %v826 = vld [vmem:[%s823 + $0x8] sm:$0xf]
  %v827 = vld [vmem:[%s823 + $0xc] sm:$0xf]
  %v828 = vld [vmem:[%s823 + $0x10] sm:$0xf]
  %v829 = vld [vmem:[%s823 + $0x14] sm:$0xf]
  %v830 = vld [vmem:[%s823 + $0x18] sm:$0xf]
  %v831 = vld [vmem:[%s823 + $0x1c] sm:$0xf]
  %v832 = vld [vmem:[%s823 + $0x20] sm:$0xf]
  %v833 = vld [vmem:[%s823 + $0x24] sm:$0xf]
  %v834 = vld [vmem:[%s823 + $0x28] sm:$0xf]
  %v835 = vld [vmem:[%s823 + $0x2c] sm:$0xf]
  %v836 = vld [vmem:[%s823 + $0x30] sm:$0xf]
  %v837 = vld [vmem:[%s823 + $0x34] sm:$0xf]
  %v838 = vld [vmem:[%s823 + $0x38] sm:$0xf]
  %v839 = vld [vmem:[%s823 + $0x3c] sm:$0xf]
  %v840 = vpack.c.bf16 %v820, %v817
  %v857 = vunpack.c.l.b16 %v824
  %v858 = vunpack.c.l.b16 %v825
  %v859 = vunpack.c.l.b16 %v826
  %v860 = vunpack.c.l.b16 %v827
  %v861 = vunpack.c.l.b16 %v828
  %v862 = vunpack.c.l.b16 %v829
  %v863 = vunpack.c.l.b16 %v830
  %v864 = vunpack.c.l.b16 %v831
  %v865 = vunpack.c.l.b16 %v832
  %v866 = vunpack.c.l.b16 %v833
  %v867 = vunpack.c.l.b16 %v834
  %v868 = vunpack.c.l.b16 %v835
  %v869 = vunpack.c.l.b16 %v836
  %v870 = vunpack.c.l.b16 %v837
  %v871 = vunpack.c.l.b16 %v838
  %v872 = vunpack.c.l.b16 %v839
  %v873 = vpack.c.b16 %v858, %v857
  %v874 = vpack.c.b16 %v860, %v859
  %v875 = vpack.c.b16 %v862, %v861
  %v876 = vpack.c.b16 %v864, %v863
  %v877 = vpack.c.b16 %v866, %v865
  %v878 = vpack.c.b16 %v868, %v867
  %v879 = vpack.c.b16 %v870, %v869
  %v880 = vpack.c.b16 %v872, %v871
  %889 = vmatprep.subr.bf16.mxu0 0
  %890 = vmatpush1.bf16.msra.mxu0 %v880
  %891 = vmatprep.subr.bf16.mxu0 0
  %892 = vmatpush1.bf16.msra.mxu0 %v879
  %893 = vmatprep.subr.bf16.mxu0 0
  %894 = vmatpush1.bf16.msra.mxu0 %v878
  %895 = vmatprep.subr.bf16.mxu0 0
  %896 = vmatpush1.bf16.msra.mxu0 %v877
  %897 = vmatprep.subr.bf16.mxu0 0
  %898 = vmatpush1.bf16.msra.mxu0 %v876
  %899 = vmatprep.subr.bf16.mxu0 0
  %900 = vmatpush1.bf16.msra.mxu0 %v875
  %901 = vmatprep.subr.bf16.mxu0 0
  %902 = vmatpush1.bf16.msra.mxu0 %v874
  %903 = vmatprep.subr.bf16.mxu0 0
  %904 = vmatpush1.bf16.msra.mxu0 %v873
  %905 = vmatprep.subr.bf16.mxu0 0
  %906 = vmatpush2.bf16.msra.mxu0 0
  %907 = vmatprep.subr.bf16.mxu0 0
  %908 = vmatpush2.bf16.msra.mxu0 0
  %909 = vmatprep.subr.bf16.mxu0 0
  %910 = vmatpush2.bf16.msra.mxu0 0
  %911 = vmatprep.subr.bf16.mxu0 0
  %912 = vmatpush2.bf16.msra.mxu0 0
  %913 = vmatprep.subr.bf16.mxu0 0
  %914 = vmatpush2.bf16.msra.mxu0 0
  %915 = vmatprep.subr.bf16.mxu0 0
  %916 = vmatpush2.bf16.msra.mxu0 0
  %917 = vmatprep.subr.bf16.mxu0 0
  %918 = vmatpush2.bf16.msra.mxu0 0
  %919 = vmatprep.subr.bf16.mxu0 0
  %920 = vmatpush2.bf16.msra.mxu0 0
  %921 = vmatprep.mubr.bf16.mxu0 0
  %922 = vmatmul.mubr.bf16.gmra.mxu0 %v840
  %v923 = vpop.f32.mrf.mxu0
  %v924 = vadd.f32 0.0, %v923
  %v925 = vpop.f32.mrf.mxu0
  %v926 = vpop.f32.mrf.mxu0
  %v927 = vadd.f32 0.0, %v926
  %v928 = vpop.f32.mrf.mxu0
  %929 = vdwg.mxu0
  %v930 = vadd.f32 %v765, %v924
  %v931 = vadd.f32 %v768, %v927
  %s932 = scalar_lea.vmem %s1, 16
  %v933 = vld [vmem:[%s932] sm:$0xf]
  %v934 = vld [vmem:[%s932 + $0x4] sm:$0xf]
  %v937 = vunpack.c.l.b16 %v933
  %v938 = vunpack.c.l.b16 %v934
  %v939 = vpack.c.b16 %v938, %v937
  %v941 = vsel %vm543, %v939, 0
  %943 = vmatprep.subr.bf16.mxu0 0
  %944 = vmatpush1.bf16.msra.mxu0 0
  %945 = vmatprep.subr.bf16.mxu0 0
  %946 = vmatpush1.bf16.msra.mxu0 0
  %947 = vmatprep.subr.bf16.mxu0 0
  %948 = vmatpush1.bf16.msra.mxu0 0
  %949 = vmatprep.subr.bf16.mxu0 0
  %950 = vmatpush1.bf16.msra.mxu0 0
  %951 = vmatprep.subr.bf16.mxu0 0
  %952 = vmatpush1.bf16.msra.mxu0 0
  %953 = vmatprep.subr.bf16.mxu0 0
  %954 = vmatpush1.bf16.msra.mxu0 0
  %955 = vmatprep.subr.bf16.mxu0 0
  %956 = vmatpush1.bf16.msra.mxu0 %v608
  %957 = vmatprep.subr.bf16.mxu0 0
  %958 = vmatpush1.bf16.msra.mxu0 %v607
  %959 = vmatprep.subr.bf16.mxu0 0
  %960 = vmatpush2.bf16.msra.mxu0 0
  %961 = vmatprep.subr.bf16.mxu0 0
  %962 = vmatpush2.bf16.msra.mxu0 0
  %963 = vmatprep.subr.bf16.mxu0 0
  %964 = vmatpush2.bf16.msra.mxu0 0
  %965 = vmatprep.subr.bf16.mxu0 0
  %966 = vmatpush2.bf16.msra.mxu0 0
  %967 = vmatprep.subr.bf16.mxu0 0
  %968 = vmatpush2.bf16.msra.mxu0 0
  %969 = vmatprep.subr.bf16.mxu0 0
  %970 = vmatpush2.bf16.msra.mxu0 0
  %971 = vmatprep.subr.bf16.mxu0 0
  %972 = vmatpush2.bf16.msra.mxu0 0
  %973 = vmatprep.subr.bf16.mxu0 0
  %974 = vmatpush2.bf16.msra.mxu0 0
  %975 = vmatprep.mubr.bf16.mxu0 0
  %976 = vmatmul.mubr.bf16.gmra.mxu0 %v941
  %v977 = vpop.f32.mrf.mxu0
  %v978 = vadd.f32 0.0, %v977
  %v979 = vpop.f32.mrf.mxu0
  %v980 = vpop.f32.mrf.mxu0
  %v981 = vadd.f32 0.0, %v980
  %v982 = vpop.f32.mrf.mxu0
  %983 = vdwg.mxu0
  %s984 = scalar_lea.vmem %s2, 128
  %v985 = vld [vmem:[%s984] sm:$0xf]
  %v986 = vld [vmem:[%s984 + $0x4] sm:$0xf]
  %v987 = vld [vmem:[%s984 + $0x8] sm:$0xf]
  %v988 = vld [vmem:[%s984 + $0xc] sm:$0xf]
  %v989 = vld [vmem:[%s984 + $0x10] sm:$0xf]
  %v990 = vld [vmem:[%s984 + $0x14] sm:$0xf]
  %v991 = vld [vmem:[%s984 + $0x18] sm:$0xf]
  %v992 = vld [vmem:[%s984 + $0x1c] sm:$0xf]
  %v993 = vld [vmem:[%s984 + $0x20] sm:$0xf]
  %v994 = vld [vmem:[%s984 + $0x24] sm:$0xf]
  %v995 = vld [vmem:[%s984 + $0x28] sm:$0xf]
  %v996 = vld [vmem:[%s984 + $0x2c] sm:$0xf]
  %v997 = vld [vmem:[%s984 + $0x30] sm:$0xf]
  %v998 = vld [vmem:[%s984 + $0x34] sm:$0xf]
  %v999 = vld [vmem:[%s984 + $0x38] sm:$0xf]
  %v1000 = vld [vmem:[%s984 + $0x3c] sm:$0xf]
  %v1001 = vpack.c.bf16 %v981, %v978
  %v1018 = vunpack.c.l.b16 %v985
  %v1019 = vunpack.c.l.b16 %v986
  %v1020 = vunpack.c.l.b16 %v987
  %v1021 = vunpack.c.l.b16 %v988
  %v1022 = vunpack.c.l.b16 %v989
  %v1023 = vunpack.c.l.b16 %v990
  %v1024 = vunpack.c.l.b16 %v991
  %v1025 = vunpack.c.l.b16 %v992
  %v1026 = vunpack.c.l.b16 %v993
  %v1027 = vunpack.c.l.b16 %v994
  %v1028 = vunpack.c.l.b16 %v995
  %v1029 = vunpack.c.l.b16 %v996
  %v1030 = vunpack.c.l.b16 %v997
  %v1031 = vunpack.c.l.b16 %v998
  %v1032 = vunpack.c.l.b16 %v999
  %v1033 = vunpack.c.l.b16 %v1000
  %v1034 = vpack.c.b16 %v1019, %v1018
  %v1035 = vpack.c.b16 %v1021, %v1020
  %v1036 = vpack.c.b16 %v1023, %v1022
  %v1037 = vpack.c.b16 %v1025, %v1024
  %v1038 = vpack.c.b16 %v1027, %v1026
  %v1039 = vpack.c.b16 %v1029, %v1028
  %v1040 = vpack.c.b16 %v1031, %v1030
  %v1041 = vpack.c.b16 %v1033, %v1032
  %1050 = vmatprep.subr.bf16.mxu0 0
  %1051 = vmatpush1.bf16.msra.mxu0 %v1041
  %1052 = vmatprep.subr.bf16.mxu0 0
  %1053 = vmatpush1.bf16.msra.mxu0 %v1040
  %1054 = vmatprep.subr.bf16.mxu0 0
  %1055 = vmatpush1.bf16.msra.mxu0 %v1039
  %1056 = vmatprep.subr.bf16.mxu0 0
  %1057 = vmatpush1.bf16.msra.mxu0 %v1038
  %1058 = vmatprep.subr.bf16.mxu0 0
  %1059 = vmatpush1.bf16.msra.mxu0 %v1037
  %1060 = vmatprep.subr.bf16.mxu0 0
  %1061 = vmatpush1.bf16.msra.mxu0 %v1036
  %1062 = vmatprep.subr.bf16.mxu0 0
  %1063 = vmatpush1.bf16.msra.mxu0 %v1035
  %1064 = vmatprep.subr.bf16.mxu0 0
  %1065 = vmatpush1.bf16.msra.mxu0 %v1034
  %1066 = vmatprep.subr.bf16.mxu0 0
  %1067 = vmatpush2.bf16.msra.mxu0 0
  %1068 = vmatprep.subr.bf16.mxu0 0
  %1069 = vmatpush2.bf16.msra.mxu0 0
  %1070 = vmatprep.subr.bf16.mxu0 0
  %1071 = vmatpush2.bf16.msra.mxu0 0
  %1072 = vmatprep.subr.bf16.mxu0 0
  %1073 = vmatpush2.bf16.msra.mxu0 0
  %1074 = vmatprep.subr.bf16.mxu0 0
  %1075 = vmatpush2.bf16.msra.mxu0 0
  %1076 = vmatprep.subr.bf16.mxu0 0
  %1077 = vmatpush2.bf16.msra.mxu0 0
  %1078 = vmatprep.subr.bf16.mxu0 0
  %1079 = vmatpush2.bf16.msra.mxu0 0
  %1080 = vmatprep.subr.bf16.mxu0 0
  %1081 = vmatpush2.bf16.msra.mxu0 0
  %1082 = vmatprep.mubr.bf16.mxu0 0
  %1083 = vmatmul.mubr.bf16.gmra.mxu0 %v1001
  %v1084 = vpop.f32.mrf.mxu0
  %v1085 = vadd.f32 0.0, %v1084
  %v1086 = vpop.f32.mrf.mxu0
  %v1087 = vpop.f32.mrf.mxu0
  %v1088 = vadd.f32 0.0, %v1087
  %v1089 = vpop.f32.mrf.mxu0
  %1090 = vdwg.mxu0
  %v1091 = vadd.f32 %v930, %v1085
  %v1092 = vadd.f32 %v931, %v1088
  %vm1093 = vcmp.ge.f32.partialorder %v1091, 0.0
  %vm1094 = vcmp.ge.f32.partialorder %v1092, 0.0
  %v1095 = vmul.f32 %v1091, 0.01
  %v1096 = vmul.f32 %v1092, 0.01
  %v1097 = vsel %vm1093, %v1091, %v1095
  %v1098 = vsel %vm1094, %v1092, %v1096
  %v1099 = vld [vmem:[%s5] sm:$0xf]
  %v1100 = vld [vmem:[%s5 + $0x4] sm:$0xf]
  %v1101 = vld [vmem:[%s5 + $0x8] sm:$0xf]
  %v1102 = vld [vmem:[%s5 + $0xc] sm:$0xf]
  %v1103 = vld [vmem:[%s5 + $0x10] sm:$0xf]
  %v1104 = vld [vmem:[%s5 + $0x14] sm:$0xf]
  %v1105 = vld [vmem:[%s5 + $0x18] sm:$0xf]
  %v1106 = vld [vmem:[%s5 + $0x1c] sm:$0xf]
  %v1107 = vpack.c.bf16 %v1098, %v1097
  %v1108 = vld [vmem:[%s4] sm:$0x1]
  %v1110 = vlaneseq
  %v1111 = vshrl.u32 %v1110, 7
  %v1112 = vsub.s32 0, %v1111
  %v1113 = vrot.slane %v1108, %v1112
  %v1123 = vunpack.c.l.b16 %v1099
  %v1124 = vunpack.c.l.b16 %v1100
  %v1125 = vunpack.c.l.b16 %v1101
  %v1126 = vunpack.c.l.b16 %v1102
  %v1127 = vunpack.c.l.b16 %v1103
  %v1128 = vunpack.c.l.b16 %v1104
  %v1129 = vunpack.c.l.b16 %v1105
  %v1130 = vunpack.c.l.b16 %v1106
  %v1131 = vpack.c.b16 %v1124, %v1123
  %v1132 = vpack.c.b16 %v1126, %v1125
  %v1133 = vpack.c.b16 %v1128, %v1127
  %v1134 = vpack.c.b16 %v1130, %v1129
  %vm1139 = vcmask 523264
  %v1141 = vsel %vm1139, %v1107, 0
  %1143 = vmatprep.subr.bf16.mxu0 0
  %1144 = vmatpush1.bf16.msra.mxu0 0
  %1145 = vmatprep.subr.bf16.mxu0 0
  %1146 = vmatpush1.bf16.msra.mxu0 0
  %1147 = vmatprep.subr.bf16.mxu0 0
  %1148 = vmatpush1.bf16.msra.mxu0 0
  %1149 = vmatprep.subr.bf16.mxu0 0
  %1150 = vmatpush1.bf16.msra.mxu0 0
  %1151 = vmatprep.subr.bf16.mxu0 0
  %1152 = vmatpush1.bf16.msra.mxu0 %v1134
  %1153 = vmatprep.subr.bf16.mxu0 0
  %1154 = vmatpush1.bf16.msra.mxu0 %v1133
  %1155 = vmatprep.subr.bf16.mxu0 0
  %1156 = vmatpush1.bf16.msra.mxu0 %v1132
  %1157 = vmatprep.subr.bf16.mxu0 0
  %1158 = vmatpush1.bf16.msra.mxu0 %v1131
  %1159 = vmatprep.subr.bf16.mxu0 0
  %1160 = vmatpush2.bf16.msra.mxu0 0
  %1161 = vmatprep.subr.bf16.mxu0 0
  %1162 = vmatpush2.bf16.msra.mxu0 0
  %1163 = vmatprep.subr.bf16.mxu0 0
  %1164 = vmatpush2.bf16.msra.mxu0 0
  %1165 = vmatprep.subr.bf16.mxu0 0
  %1166 = vmatpush2.bf16.msra.mxu0 0
  %1167 = vmatprep.subr.bf16.mxu0 0
  %1168 = vmatpush2.bf16.msra.mxu0 0
  %1169 = vmatprep.subr.bf16.mxu0 0
  %1170 = vmatpush2.bf16.msra.mxu0 0
  %1171 = vmatprep.subr.bf16.mxu0 0
  %1172 = vmatpush2.bf16.msra.mxu0 0
  %1173 = vmatprep.subr.bf16.mxu0 0
  %1174 = vmatpush2.bf16.msra.mxu0 0
  %1175 = vmatprep.mubr.bf16.mxu0 0
  %1176 = vmatmul.mubr.bf16.gmra.mxu0 %v1141
  %v1177 = vpop.f32.mrf.mxu0
  %v1178 = vadd.f32 %v1113, %v1177
  %v1179 = vpop.f32.mrf.mxu0
  %v1180 = vpop.f32.mrf.mxu0
  %v1181 = vadd.f32 %v1113, %v1180
  %v1182 = vpop.f32.mrf.mxu0
  %1183 = vdwg.mxu0
  %v1184 = vld [vmem:[%s6] sm:$0xf]
  %v1185 = vld [vmem:[%s6 + $0x4] sm:$0xf]
  %v1186 = vpack.c.bf16 %v499, %v496
  %v1187 = vpack.c.bf16 %v507, %v504
  %v1190 = vunpack.c.l.b16 %v1184
  %v1191 = vunpack.c.l.b16 %v1185
  %v1192 = vpack.c.b16 %v1191, %v1190
  %v1194 = vsel %vm543, %v1192, 0
  %1196 = vmatprep.subr.bf16.mxu0 0
  %1197 = vmatpush1.bf16.msra.mxu0 0
  %1198 = vmatprep.subr.bf16.mxu0 0
  %1199 = vmatpush1.bf16.msra.mxu0 0
  %1200 = vmatprep.subr.bf16.mxu0 0
  %1201 = vmatpush1.bf16.msra.mxu0 0
  %1202 = vmatprep.subr.bf16.mxu0 0
  %1203 = vmatpush1.bf16.msra.mxu0 0
  %1204 = vmatprep.subr.bf16.mxu0 0
  %1205 = vmatpush1.bf16.msra.mxu0 0
  %1206 = vmatprep.subr.bf16.mxu0 0
  %1207 = vmatpush1.bf16.msra.mxu0 0
  %1208 = vmatprep.subr.bf16.mxu0 0
  %1209 = vmatpush1.bf16.msra.mxu0 %v1187
  %1210 = vmatprep.subr.bf16.mxu0 0
  %1211 = vmatpush1.bf16.msra.mxu0 %v1186
  %1212 = vmatprep.subr.bf16.mxu0 0
  %1213 = vmatpush2.bf16.msra.mxu0 0
  %1214 = vmatprep.subr.bf16.mxu0 0
  %1215 = vmatpush2.bf16.msra.mxu0 0
  %1216 = vmatprep.subr.bf16.mxu0 0
  %1217 = vmatpush2.bf16.msra.mxu0 0
  %1218 = vmatprep.subr.bf16.mxu0 0
  %1219 = vmatpush2.bf16.msra.mxu0 0
  %1220 = vmatprep.subr.bf16.mxu0 0
  %1221 = vmatpush2.bf16.msra.mxu0 0
  %1222 = vmatprep.subr.bf16.mxu0 0
  %1223 = vmatpush2.bf16.msra.mxu0 0
  %1224 = vmatprep.subr.bf16.mxu0 0
  %1225 = vmatpush2.bf16.msra.mxu0 0
  %1226 = vmatprep.subr.bf16.mxu0 0
  %1227 = vmatpush2.bf16.msra.mxu0 0
  %1228 = vmatprep.mubr.bf16.mxu0 0
  %1229 = vmatmul.mubr.bf16.gmra.mxu0 %v1194
  %v1230 = vpop.f32.mrf.mxu0
  %v1231 = vadd.f32 0.0, %v1230
  %v1232 = vpop.f32.mrf.mxu0
  %v1233 = vpop.f32.mrf.mxu0
  %v1234 = vadd.f32 0.0, %v1233
  %v1235 = vpop.f32.mrf.mxu0
  %1236 = vdwg.mxu0
  %v1237 = vld [vmem:[%s7] sm:$0xf]
  %v1238 = vld [vmem:[%s7 + $0x4] sm:$0xf]
  %v1239 = vld [vmem:[%s7 + $0x8] sm:$0xf]
  %v1240 = vld [vmem:[%s7 + $0xc] sm:$0xf]
  %v1241 = vld [vmem:[%s7 + $0x10] sm:$0xf]
  %v1242 = vld [vmem:[%s7 + $0x14] sm:$0xf]
  %v1243 = vld [vmem:[%s7 + $0x18] sm:$0xf]
  %v1244 = vld [vmem:[%s7 + $0x1c] sm:$0xf]
  %v1245 = vld [vmem:[%s7 + $0x20] sm:$0xf]
  %v1246 = vld [vmem:[%s7 + $0x24] sm:$0xf]
  %v1247 = vld [vmem:[%s7 + $0x28] sm:$0xf]
  %v1248 = vld [vmem:[%s7 + $0x2c] sm:$0xf]
  %v1249 = vld [vmem:[%s7 + $0x30] sm:$0xf]
  %v1250 = vld [vmem:[%s7 + $0x34] sm:$0xf]
  %v1251 = vld [vmem:[%s7 + $0x38] sm:$0xf]
  %v1252 = vld [vmem:[%s7 + $0x3c] sm:$0xf]
  %v1253 = vpack.c.bf16 %v1234, %v1231
  %v1270 = vunpack.c.l.b16 %v1237
  %v1271 = vunpack.c.l.b16 %v1238
  %v1272 = vunpack.c.l.b16 %v1239
  %v1273 = vunpack.c.l.b16 %v1240
  %v1274 = vunpack.c.l.b16 %v1241
  %v1275 = vunpack.c.l.b16 %v1242
  %v1276 = vunpack.c.l.b16 %v1243
  %v1277 = vunpack.c.l.b16 %v1244
  %v1278 = vunpack.c.l.b16 %v1245
  %v1279 = vunpack.c.l.b16 %v1246
  %v1280 = vunpack.c.l.b16 %v1247
  %v1281 = vunpack.c.l.b16 %v1248
  %v1282 = vunpack.c.l.b16 %v1249
  %v1283 = vunpack.c.l.b16 %v1250
  %v1284 = vunpack.c.l.b16 %v1251
  %v1285 = vunpack.c.l.b16 %v1252
  %v1286 = vpack.c.b16 %v1271, %v1270
  %v1287 = vpack.c.b16 %v1273, %v1272
  %v1288 = vpack.c.b16 %v1275, %v1274
  %v1289 = vpack.c.b16 %v1277, %v1276
  %v1290 = vpack.c.b16 %v1279, %v1278
  %v1291 = vpack.c.b16 %v1281, %v1280
  %v1292 = vpack.c.b16 %v1283, %v1282
  %v1293 = vpack.c.b16 %v1285, %v1284
  %1302 = vmatprep.subr.bf16.mxu0 0
  %1303 = vmatpush1.bf16.msra.mxu0 %v1293
  %1304 = vmatprep.subr.bf16.mxu0 0
  %1305 = vmatpush1.bf16.msra.mxu0 %v1292
  %1306 = vmatprep.subr.bf16.mxu0 0
  %1307 = vmatpush1.bf16.msra.mxu0 %v1291
  %1308 = vmatprep.subr.bf16.mxu0 0
  %1309 = vmatpush1.bf16.msra.mxu0 %v1290
  %1310 = vmatprep.subr.bf16.mxu0 0
  %1311 = vmatpush1.bf16.msra.mxu0 %v1289
  %1312 = vmatprep.subr.bf16.mxu0 0
  %1313 = vmatpush1.bf16.msra.mxu0 %v1288
  %1314 = vmatprep.subr.bf16.mxu0 0
  %1315 = vmatpush1.bf16.msra.mxu0 %v1287
  %1316 = vmatprep.subr.bf16.mxu0 0
  %1317 = vmatpush1.bf16.msra.mxu0 %v1286
  %1318 = vmatprep.subr.bf16.mxu0 0
  %1319 = vmatpush2.bf16.msra.mxu0 0
  %1320 = vmatprep.subr.bf16.mxu0 0
  %1321 = vmatpush2.bf16.msra.mxu0 0
  %1322 = vmatprep.subr.bf16.mxu0 0
  %1323 = vmatpush2.bf16.msra.mxu0 0
  %1324 = vmatprep.subr.bf16.mxu0 0
  %1325 = vmatpush2.bf16.msra.mxu0 0
  %1326 = vmatprep.subr.bf16.mxu0 0
  %1327 = vmatpush2.bf16.msra.mxu0 0
  %1328 = vmatprep.subr.bf16.mxu0 0
  %1329 = vmatpush2.bf16.msra.mxu0 0
  %1330 = vmatprep.subr.bf16.mxu0 0
  %1331 = vmatpush2.bf16.msra.mxu0 0
  %1332 = vmatprep.subr.bf16.mxu0 0
  %1333 = vmatpush2.bf16.msra.mxu0 0
  %1334 = vmatprep.mubr.bf16.mxu0 0
  %1335 = vmatmul.mubr.bf16.gmra.mxu0 %v1253
  %v1336 = vpop.f32.mrf.mxu0
  %v1337 = vadd.f32 0.0, %v1336
  %v1338 = vpop.f32.mrf.mxu0
  %v1339 = vpop.f32.mrf.mxu0
  %v1340 = vadd.f32 0.0, %v1339
  %v1341 = vpop.f32.mrf.mxu0
  %1342 = vdwg.mxu0
  %v1343 = vadd.f32 %v1178, %v1337
  %v1344 = vadd.f32 %v1181, %v1340
  %vm1345 = vcmp.ge.f32.partialorder %v1343, 0.0
  %vm1346 = vcmp.ge.f32.partialorder %v1344, 0.0
  %v1347 = vmul.f32 %v1343, 0.01
  %v1348 = vmul.f32 %v1344, 0.01
  %v1349 = vsel %vm1345, %v1343, %v1347
  %v1350 = vsel %vm1346, %v1344, %v1348
  %v1351 = vld [vmem:[%s13] sm:$0xf]
  %v1352 = vld [vmem:[%s13 + $0x4] sm:$0xf]
  %v1353 = vld [vmem:[%s13 + $0x8] sm:$0xf]
  %v1354 = vld [vmem:[%s13 + $0xc] sm:$0xf]
  %v1355 = vld [vmem:[%s13 + $0x10] sm:$0xf]
  %v1356 = vld [vmem:[%s13 + $0x14] sm:$0xf]
  %v1357 = vld [vmem:[%s13 + $0x18] sm:$0xf]
  %v1358 = vld [vmem:[%s13 + $0x1c] sm:$0xf]
  %v1359 = vpack.c.bf16 %v1350, %v1349
  %v1360 = vld [vmem:[%s12] sm:$0x1]
  %v1362 = vlaneseq
  %v1363 = vshrl.u32 %v1362, 7
  %v1364 = vsub.s32 0, %v1363
  %v1365 = vrot.slane %v1360, %v1364
  %v1375 = vunpack.c.l.b16 %v1351
  %v1376 = vunpack.c.l.b16 %v1352
  %v1377 = vunpack.c.l.b16 %v1353
  %v1378 = vunpack.c.l.b16 %v1354
  %v1379 = vunpack.c.l.b16 %v1355
  %v1380 = vunpack.c.l.b16 %v1356
  %v1381 = vunpack.c.l.b16 %v1357
  %v1382 = vunpack.c.l.b16 %v1358
  %v1383 = vpack.c.b16 %v1376, %v1375
  %v1384 = vpack.c.b16 %v1378, %v1377
  %v1385 = vpack.c.b16 %v1380, %v1379
  %v1386 = vpack.c.b16 %v1382, %v1381
  %v1392 = vsel %vm1139, %v1359, 0
  %1394 = vmatprep.subr.bf16.mxu0 0
  %1395 = vmatpush1.bf16.msra.mxu0 0
  %1396 = vmatprep.subr.bf16.mxu0 0
  %1397 = vmatpush1.bf16.msra.mxu0 0
  %1398 = vmatprep.subr.bf16.mxu0 0
  %1399 = vmatpush1.bf16.msra.mxu0 0
  %1400 = vmatprep.subr.bf16.mxu0 0
  %1401 = vmatpush1.bf16.msra.mxu0 0
  %1402 = vmatprep.subr.bf16.mxu0 0
  %1403 = vmatpush1.bf16.msra.mxu0 %v1386
  %1404 = vmatprep.subr.bf16.mxu0 0
  %1405 = vmatpush1.bf16.msra.mxu0 %v1385
  %1406 = vmatprep.subr.bf16.mxu0 0
  %1407 = vmatpush1.bf16.msra.mxu0 %v1384
  %1408 = vmatprep.subr.bf16.mxu0 0
  %1409 = vmatpush1.bf16.msra.mxu0 %v1383
  %1410 = vmatprep.subr.bf16.mxu0 0
  %1411 = vmatpush2.bf16.msra.mxu0 0
  %1412 = vmatprep.subr.bf16.mxu0 0
  %1413 = vmatpush2.bf16.msra.mxu0 0
  %1414 = vmatprep.subr.bf16.mxu0 0
  %1415 = vmatpush2.bf16.msra.mxu0 0
  %1416 = vmatprep.subr.bf16.mxu0 0
  %1417 = vmatpush2.bf16.msra.mxu0 0
  %1418 = vmatprep.subr.bf16.mxu0 0
  %1419 = vmatpush2.bf16.msra.mxu0 0
  %1420 = vmatprep.subr.bf16.mxu0 0
  %1421 = vmatpush2.bf16.msra.mxu0 0
  %1422 = vmatprep.subr.bf16.mxu0 0
  %1423 = vmatpush2.bf16.msra.mxu0 0
  %1424 = vmatprep.subr.bf16.mxu0 0
  %1425 = vmatpush2.bf16.msra.mxu0 0
  %1426 = vmatprep.mubr.bf16.mxu0 0
  %1427 = vmatmul.mubr.bf16.gmra.mxu0 %v1392
  %v1428 = vpop.f32.mrf.mxu0
  %v1429 = vadd.f32 %v1365, %v1428
  %v1430 = vpop.f32.mrf.mxu0
  %v1431 = vpop.f32.mrf.mxu0
  %v1432 = vadd.f32 %v1365, %v1431
  %v1433 = vpop.f32.mrf.mxu0
  %1434 = vdwg.mxu0
  %vm1435 = vcmp.ge.f32.partialorder %v1429, 0.0
  %vm1436 = vcmp.ge.f32.partialorder %v1432, 0.0
  %v1437 = vmul.f32 %v1429, 0.01
  %v1438 = vmul.f32 %v1432, 0.01
  %v1439 = vsel %vm1435, %v1429, %v1437
  %v1440 = vsel %vm1436, %v1432, %v1438
  %v1441 = vld [vmem:[%s10] sm:$0xf]
  %v1442 = vld [vmem:[%s10 + $0x4] sm:$0xf]
  %v1443 = vpack.c.bf16 %v1440, %v1439
  %v1446 = vunpack.c.l.b16 %v1441
  %v1447 = vunpack.c.l.b16 %v1442
  %v1448 = vpack.c.b16 %v1447, %v1446
  %vm1449 = vcmask 130048
  %v1451 = vsel %vm1449, %v1448, 0
  %1453 = vmatprep.subr.bf16.mxu0 0
  %1454 = vmatpush1.bf16.msra.mxu0 0
  %1455 = vmatprep.subr.bf16.mxu0 0
  %1456 = vmatpush1.bf16.msra.mxu0 0
  %1457 = vmatprep.subr.bf16.mxu0 0
  %1458 = vmatpush1.bf16.msra.mxu0 0
  %1459 = vmatprep.subr.bf16.mxu0 0
  %1460 = vmatpush1.bf16.msra.mxu0 0
  %1461 = vmatprep.subr.bf16.mxu0 0
  %1462 = vmatpush1.bf16.msra.mxu0 0
  %1463 = vmatprep.subr.bf16.mxu0 0
  %1464 = vmatpush1.bf16.msra.mxu0 0
  %1465 = vmatprep.subr.bf16.mxu0 0
  %1466 = vmatpush1.bf16.msra.mxu0 0
  %1467 = vmatprep.subr.bf16.mxu0 0
  %1468 = vmatpush1.bf16.msra.mxu0 %v1443
  %1469 = vmatprep.subr.bf16.mxu0 0
  %1470 = vmatpush2.bf16.msra.mxu0 0
  %1471 = vmatprep.subr.bf16.mxu0 0
  %1472 = vmatpush2.bf16.msra.mxu0 0
  %1473 = vmatprep.subr.bf16.mxu0 0
  %1474 = vmatpush2.bf16.msra.mxu0 0
  %1475 = vmatprep.subr.bf16.mxu0 0
  %1476 = vmatpush2.bf16.msra.mxu0 0
  %1477 = vmatprep.subr.bf16.mxu0 0
  %1478 = vmatpush2.bf16.msra.mxu0 0
  %1479 = vmatprep.subr.bf16.mxu0 0
  %1480 = vmatpush2.bf16.msra.mxu0 0
  %1481 = vmatprep.subr.bf16.mxu0 0
  %1482 = vmatpush2.bf16.msra.mxu0 0
  %1483 = vmatprep.subr.bf16.mxu0 0
  %1484 = vmatpush2.bf16.msra.mxu0 0
  %1485 = vmatprep.mubr.bf16.mxu0 0
  %1486 = vmatmul.mubr.bf16.gmra.mxu0 %v1451
  %v1487 = vpop.f32.mrf.mxu0
  %v1488 = vadd.f32 0.0, %v1487
  %v1489 = vpop.f32.mrf.mxu0
  %v1490 = vpop.f32.mrf.mxu0
  %v1491 = vadd.f32 0.0, %v1490
  %v1492 = vpop.f32.mrf.mxu0
  %1493 = vdwg.mxu0
  %v1494 = vld [vmem:[%s11] sm:$0xf]
  %v1495 = vld [vmem:[%s11 + $0x4] sm:$0xf]
  %v1496 = vld [vmem:[%s11 + $0x8] sm:$0xf]
  %v1497 = vld [vmem:[%s11 + $0xc] sm:$0xf]
  %v1498 = vld [vmem:[%s11 + $0x10] sm:$0xf]
  %v1499 = vld [vmem:[%s11 + $0x14] sm:$0xf]
  %v1500 = vld [vmem:[%s11 + $0x18] sm:$0xf]
  %v1501 = vld [vmem:[%s11 + $0x1c] sm:$0xf]
  %v1502 = vpack.c.bf16 %v1491, %v1488
  %v1503 = vld [vmem:[%s14] sm:$0x1]
  %v1505 = vlaneseq
  %v1506 = vshrl.u32 %v1505, 7
  %v1507 = vsub.s32 0, %v1506
  %v1508 = vrot.slane %v1503, %v1507
  %v1518 = vunpack.c.l.b16 %v1494
  %v1519 = vunpack.c.l.b16 %v1495
  %v1520 = vunpack.c.l.b16 %v1496
  %v1521 = vunpack.c.l.b16 %v1497
  %v1522 = vunpack.c.l.b16 %v1498
  %v1523 = vunpack.c.l.b16 %v1499
  %v1524 = vunpack.c.l.b16 %v1500
  %v1525 = vunpack.c.l.b16 %v1501
  %v1526 = vpack.c.b16 %v1519, %v1518
  %v1527 = vpack.c.b16 %v1521, %v1520
  %v1528 = vpack.c.b16 %v1523, %v1522
  %v1529 = vpack.c.b16 %v1525, %v1524
  %v1535 = vsel %vm1139, %v1502, 0
  %1537 = vmatprep.subr.bf16.mxu0 0
  %1538 = vmatpush1.bf16.msra.mxu0 0
  %1539 = vmatprep.subr.bf16.mxu0 0
  %1540 = vmatpush1.bf16.msra.mxu0 0
  %1541 = vmatprep.subr.bf16.mxu0 0
  %1542 = vmatpush1.bf16.msra.mxu0 0
  %1543 = vmatprep.subr.bf16.mxu0 0
  %1544 = vmatpush1.bf16.msra.mxu0 0
  %1545 = vmatprep.subr.bf16.mxu0 0
  %1546 = vmatpush1.bf16.msra.mxu0 %v1529
  %1547 = vmatprep.subr.bf16.mxu0 0
  %1548 = vmatpush1.bf16.msra.mxu0 %v1528
  %1549 = vmatprep.subr.bf16.mxu0 0
  %1550 = vmatpush1.bf16.msra.mxu0 %v1527
  %1551 = vmatprep.subr.bf16.mxu0 0
  %1552 = vmatpush1.bf16.msra.mxu0 %v1526
  %1553 = vmatprep.subr.bf16.mxu0 0
  %1554 = vmatpush2.bf16.msra.mxu0 0
  %1555 = vmatprep.subr.bf16.mxu0 0
  %1556 = vmatpush2.bf16.msra.mxu0 0
  %1557 = vmatprep.subr.bf16.mxu0 0
  %1558 = vmatpush2.bf16.msra.mxu0 0
  %1559 = vmatprep.subr.bf16.mxu0 0
  %1560 = vmatpush2.bf16.msra.mxu0 0
  %1561 = vmatprep.subr.bf16.mxu0 0
  %1562 = vmatpush2.bf16.msra.mxu0 0
  %1563 = vmatprep.subr.bf16.mxu0 0
  %1564 = vmatpush2.bf16.msra.mxu0 0
  %1565 = vmatprep.subr.bf16.mxu0 0
  %1566 = vmatpush2.bf16.msra.mxu0 0
  %1567 = vmatprep.subr.bf16.mxu0 0
  %1568 = vmatpush2.bf16.msra.mxu0 0
  %1569 = vmatprep.mubr.bf16.mxu0 0
  %1570 = vmatmul.mubr.bf16.gmra.mxu0 %v1535
  %v1571 = vpop.f32.mrf.mxu0
  %v1572 = vadd.f32 %v1508, %v1571
  %v1573 = vpop.f32.mrf.mxu0
  %v1574 = vpop.f32.mrf.mxu0
  %v1575 = vadd.f32 %v1508, %v1574
  %v1576 = vpop.f32.mrf.mxu0
  %1577 = vdwg.mxu0
  %s1578 = scalar_lea.vmem %s10, 8
  %v1579 = vld [vmem:[%s1578] sm:$0xf]
  %v1580 = vld [vmem:[%s1578 + $0x4] sm:$0xf]
  %v1583 = vunpack.c.l.b16 %v1579
  %v1584 = vunpack.c.l.b16 %v1580
  %v1585 = vpack.c.b16 %v1584, %v1583
  %v1587 = vsel %vm1449, %v1585, 0
  %1589 = vmatprep.subr.bf16.mxu0 0
  %1590 = vmatpush1.bf16.msra.mxu0 0
  %1591 = vmatprep.subr.bf16.mxu0 0
  %1592 = vmatpush1.bf16.msra.mxu0 0
  %1593 = vmatprep.subr.bf16.mxu0 0
  %1594 = vmatpush1.bf16.msra.mxu0 0
  %1595 = vmatprep.subr.bf16.mxu0 0
  %1596 = vmatpush1.bf16.msra.mxu0 0
  %1597 = vmatprep.subr.bf16.mxu0 0
  %1598 = vmatpush1.bf16.msra.mxu0 0
  %1599 = vmatprep.subr.bf16.mxu0 0
  %1600 = vmatpush1.bf16.msra.mxu0 0
  %1601 = vmatprep.subr.bf16.mxu0 0
  %1602 = vmatpush1.bf16.msra.mxu0 0
  %1603 = vmatprep.subr.bf16.mxu0 0
  %1604 = vmatpush1.bf16.msra.mxu0 %v1443
  %1605 = vmatprep.subr.bf16.mxu0 0
  %1606 = vmatpush2.bf16.msra.mxu0 0
  %1607 = vmatprep.subr.bf16.mxu0 0
  %1608 = vmatpush2.bf16.msra.mxu0 0
  %1609 = vmatprep.subr.bf16.mxu0 0
  %1610 = vmatpush2.bf16.msra.mxu0 0
  %1611 = vmatprep.subr.bf16.mxu0 0
  %1612 = vmatpush2.bf16.msra.mxu0 0
  %1613 = vmatprep.subr.bf16.mxu0 0
  %1614 = vmatpush2.bf16.msra.mxu0 0
  %1615 = vmatprep.subr.bf16.mxu0 0
  %1616 = vmatpush2.bf16.msra.mxu0 0
  %1617 = vmatprep.subr.bf16.mxu0 0
  %1618 = vmatpush2.bf16.msra.mxu0 0
  %1619 = vmatprep.subr.bf16.mxu0 0
  %1620 = vmatpush2.bf16.msra.mxu0 0
  %1621 = vmatprep.mubr.bf16.mxu0 0
  %1622 = vmatmul.mubr.bf16.gmra.mxu0 %v1587
  %v1623 = vpop.f32.mrf.mxu0
  %v1624 = vadd.f32 0.0, %v1623
  %v1625 = vpop.f32.mrf.mxu0
  %v1626 = vpop.f32.mrf.mxu0
  %v1627 = vadd.f32 0.0, %v1626
  %v1628 = vpop.f32.mrf.mxu0
  %1629 = vdwg.mxu0
  %s1630 = scalar_lea.vmem %s11, 32
  %v1631 = vld [vmem:[%s1630] sm:$0xf]
  %v1632 = vld [vmem:[%s1630 + $0x4] sm:$0xf]
  %v1633 = vld [vmem:[%s1630 + $0x8] sm:$0xf]
  %v1634 = vld [vmem:[%s1630 + $0xc] sm:$0xf]
  %v1635 = vld [vmem:[%s1630 + $0x10] sm:$0xf]
  %v1636 = vld [vmem:[%s1630 + $0x14] sm:$0xf]
  %v1637 = vld [vmem:[%s1630 + $0x18] sm:$0xf]
  %v1638 = vld [vmem:[%s1630 + $0x1c] sm:$0xf]
  %v1639 = vpack.c.bf16 %v1627, %v1624
  %v1648 = vunpack.c.l.b16 %v1631
  %v1649 = vunpack.c.l.b16 %v1632
  %v1650 = vunpack.c.l.b16 %v1633
  %v1651 = vunpack.c.l.b16 %v1634
  %v1652 = vunpack.c.l.b16 %v1635
  %v1653 = vunpack.c.l.b16 %v1636
  %v1654 = vunpack.c.l.b16 %v1637
  %v1655 = vunpack.c.l.b16 %v1638
  %v1656 = vpack.c.b16 %v1649, %v1648
  %v1657 = vpack.c.b16 %v1651, %v1650
  %v1658 = vpack.c.b16 %v1653, %v1652
  %v1659 = vpack.c.b16 %v1655, %v1654
  %v1665 = vsel %vm1139, %v1639, 0
  %1667 = vmatprep.subr.bf16.mxu0 0
  %1668 = vmatpush1.bf16.msra.mxu0 0
  %1669 = vmatprep.subr.bf16.mxu0 0
  %1670 = vmatpush1.bf16.msra.mxu0 0
  %1671 = vmatprep.subr.bf16.mxu0 0
  %1672 = vmatpush1.bf16.msra.mxu0 0
  %1673 = vmatprep.subr.bf16.mxu0 0
  %1674 = vmatpush1.bf16.msra.mxu0 0
  %1675 = vmatprep.subr.bf16.mxu0 0
  %1676 = vmatpush1.bf16.msra.mxu0 %v1659
  %1677 = vmatprep.subr.bf16.mxu0 0
  %1678 = vmatpush1.bf16.msra.mxu0 %v1658
  %1679 = vmatprep.subr.bf16.mxu0 0
  %1680 = vmatpush1.bf16.msra.mxu0 %v1657
  %1681 = vmatprep.subr.bf16.mxu0 0
  %1682 = vmatpush1.bf16.msra.mxu0 %v1656
  %1683 = vmatprep.subr.bf16.mxu0 0
  %1684 = vmatpush2.bf16.msra.mxu0 0
  %1685 = vmatprep.subr.bf16.mxu0 0
  %1686 = vmatpush2.bf16.msra.mxu0 0
  %1687 = vmatprep.subr.bf16.mxu0 0
  %1688 = vmatpush2.bf16.msra.mxu0 0
  %1689 = vmatprep.subr.bf16.mxu0 0
  %1690 = vmatpush2.bf16.msra.mxu0 0
  %1691 = vmatprep.subr.bf16.mxu0 0
  %1692 = vmatpush2.bf16.msra.mxu0 0
  %1693 = vmatprep.subr.bf16.mxu0 0
  %1694 = vmatpush2.bf16.msra.mxu0 0
  %1695 = vmatprep.subr.bf16.mxu0 0
  %1696 = vmatpush2.bf16.msra.mxu0 0
  %1697 = vmatprep.subr.bf16.mxu0 0
  %1698 = vmatpush2.bf16.msra.mxu0 0
  %1699 = vmatprep.mubr.bf16.mxu0 0
  %1700 = vmatmul.mubr.bf16.gmra.mxu0 %v1665
  %v1701 = vpop.f32.mrf.mxu0
  %v1702 = vadd.f32 0.0, %v1701
  %v1703 = vpop.f32.mrf.mxu0
  %v1704 = vpop.f32.mrf.mxu0
  %v1705 = vadd.f32 0.0, %v1704
  %v1706 = vpop.f32.mrf.mxu0
  %1707 = vdwg.mxu0
  %v1708 = vadd.f32 %v1572, %v1702
  %v1709 = vadd.f32 %v1575, %v1705
  %s1710 = scalar_lea.vmem %s10, 16
  %v1711 = vld [vmem:[%s1710] sm:$0xf]
  %v1712 = vld [vmem:[%s1710 + $0x4] sm:$0xf]
  %v1715 = vunpack.c.l.b16 %v1711
  %v1716 = vunpack.c.l.b16 %v1712
  %v1717 = vpack.c.b16 %v1716, %v1715
  %v1719 = vsel %vm1449, %v1717, 0
  %1721 = vmatprep.subr.bf16.mxu0 0
  %1722 = vmatpush1.bf16.msra.mxu0 0
  %1723 = vmatprep.subr.bf16.mxu0 0
  %1724 = vmatpush1.bf16.msra.mxu0 0
  %1725 = vmatprep.subr.bf16.mxu0 0
  %1726 = vmatpush1.bf16.msra.mxu0 0
  %1727 = vmatprep.subr.bf16.mxu0 0
  %1728 = vmatpush1.bf16.msra.mxu0 0
  %1729 = vmatprep.subr.bf16.mxu0 0
  %1730 = vmatpush1.bf16.msra.mxu0 0
  %1731 = vmatprep.subr.bf16.mxu0 0
  %1732 = vmatpush1.bf16.msra.mxu0 0
  %1733 = vmatprep.subr.bf16.mxu0 0
  %1734 = vmatpush1.bf16.msra.mxu0 0
  %1735 = vmatprep.subr.bf16.mxu0 0
  %1736 = vmatpush1.bf16.msra.mxu0 %v1443
  %1737 = vmatprep.subr.bf16.mxu0 0
  %1738 = vmatpush2.bf16.msra.mxu0 0
  %1739 = vmatprep.subr.bf16.mxu0 0
  %1740 = vmatpush2.bf16.msra.mxu0 0
  %1741 = vmatprep.subr.bf16.mxu0 0
  %1742 = vmatpush2.bf16.msra.mxu0 0
  %1743 = vmatprep.subr.bf16.mxu0 0
  %1744 = vmatpush2.bf16.msra.mxu0 0
  %1745 = vmatprep.subr.bf16.mxu0 0
  %1746 = vmatpush2.bf16.msra.mxu0 0
  %1747 = vmatprep.subr.bf16.mxu0 0
  %1748 = vmatpush2.bf16.msra.mxu0 0
  %1749 = vmatprep.subr.bf16.mxu0 0
  %1750 = vmatpush2.bf16.msra.mxu0 0
  %1751 = vmatprep.subr.bf16.mxu0 0
  %1752 = vmatpush2.bf16.msra.mxu0 0
  %1753 = vmatprep.mubr.bf16.mxu0 0
  %1754 = vmatmul.mubr.bf16.gmra.mxu0 %v1719
  %v1755 = vpop.f32.mrf.mxu0
  %v1756 = vadd.f32 0.0, %v1755
  %v1757 = vpop.f32.mrf.mxu0
  %v1758 = vpop.f32.mrf.mxu0
  %v1759 = vadd.f32 0.0, %v1758
  %v1760 = vpop.f32.mrf.mxu0
  %1761 = vdwg.mxu0
  %s1762 = scalar_lea.vmem %s11, 64
  %v1763 = vld [vmem:[%s1762] sm:$0xf]
  %v1764 = vld [vmem:[%s1762 + $0x4] sm:$0xf]
  %v1765 = vld [vmem:[%s1762 + $0x8] sm:$0xf]
  %v1766 = vld [vmem:[%s1762 + $0xc] sm:$0xf]
  %v1767 = vld [vmem:[%s1762 + $0x10] sm:$0xf]
  %v1768 = vld [vmem:[%s1762 + $0x14] sm:$0xf]
  %v1769 = vld [vmem:[%s1762 + $0x18] sm:$0xf]
  %v1770 = vld [vmem:[%s1762 + $0x1c] sm:$0xf]
  %v1771 = vpack.c.bf16 %v1759, %v1756
  %v1780 = vunpack.c.l.b16 %v1763
  %v1781 = vunpack.c.l.b16 %v1764
  %v1782 = vunpack.c.l.b16 %v1765
  %v1783 = vunpack.c.l.b16 %v1766
  %v1784 = vunpack.c.l.b16 %v1767
  %v1785 = vunpack.c.l.b16 %v1768
  %v1786 = vunpack.c.l.b16 %v1769
  %v1787 = vunpack.c.l.b16 %v1770
  %v1788 = vpack.c.b16 %v1781, %v1780
  %v1789 = vpack.c.b16 %v1783, %v1782
  %v1790 = vpack.c.b16 %v1785, %v1784
  %v1791 = vpack.c.b16 %v1787, %v1786
  %v1797 = vsel %vm1139, %v1771, 0
  %1799 = vmatprep.subr.bf16.mxu0 0
  %1800 = vmatpush1.bf16.msra.mxu0 0
  %1801 = vmatprep.subr.bf16.mxu0 0
  %1802 = vmatpush1.bf16.msra.mxu0 0
  %1803 = vmatprep.subr.bf16.mxu0 0
  %1804 = vmatpush1.bf16.msra.mxu0 0
  %1805 = vmatprep.subr.bf16.mxu0 0
  %1806 = vmatpush1.bf16.msra.mxu0 0
  %1807 = vmatprep.subr.bf16.mxu0 0
  %1808 = vmatpush1.bf16.msra.mxu0 %v1791
  %1809 = vmatprep.subr.bf16.mxu0 0
  %1810 = vmatpush1.bf16.msra.mxu0 %v1790
  %1811 = vmatprep.subr.bf16.mxu0 0
  %1812 = vmatpush1.bf16.msra.mxu0 %v1789
  %1813 = vmatprep.subr.bf16.mxu0 0
  %1814 = vmatpush1.bf16.msra.mxu0 %v1788
  %1815 = vmatprep.subr.bf16.mxu0 0
  %1816 = vmatpush2.bf16.msra.mxu0 0
  %1817 = vmatprep.subr.bf16.mxu0 0
  %1818 = vmatpush2.bf16.msra.mxu0 0
  %1819 = vmatprep.subr.bf16.mxu0 0
  %1820 = vmatpush2.bf16.msra.mxu0 0
  %1821 = vmatprep.subr.bf16.mxu0 0
  %1822 = vmatpush2.bf16.msra.mxu0 0
  %1823 = vmatprep.subr.bf16.mxu0 0
  %1824 = vmatpush2.bf16.msra.mxu0 0
  %1825 = vmatprep.subr.bf16.mxu0 0
  %1826 = vmatpush2.bf16.msra.mxu0 0
  %1827 = vmatprep.subr.bf16.mxu0 0
  %1828 = vmatpush2.bf16.msra.mxu0 0
  %1829 = vmatprep.subr.bf16.mxu0 0
  %1830 = vmatpush2.bf16.msra.mxu0 0
  %1831 = vmatprep.mubr.bf16.mxu0 0
  %1832 = vmatmul.mubr.bf16.gmra.mxu0 %v1797
  %v1833 = vpop.f32.mrf.mxu0
  %v1834 = vadd.f32 0.0, %v1833
  %v1835 = vpop.f32.mrf.mxu0
  %v1836 = vpop.f32.mrf.mxu0
  %v1837 = vadd.f32 0.0, %v1836
  %v1838 = vpop.f32.mrf.mxu0
  %1839 = vdwg.mxu0
  %v1840 = vadd.f32 %v1708, %v1834
  %v1841 = vadd.f32 %v1709, %v1837
  %vm1842 = vcmp.ge.f32.partialorder %v1840, 0.0
  %vm1843 = vcmp.ge.f32.partialorder %v1841, 0.0
  %v1844 = vmul.f32 %v1840, 0.01
  %v1845 = vmul.f32 %v1841, 0.01
  %v1846 = vsel %vm1842, %v1840, %v1844
  %v1847 = vsel %vm1843, %v1841, %v1845
  %v1848 = vld [vmem:[%s16] sm:$0xf]
  %v1849 = vld [vmem:[%s16 + $0x4] sm:$0xf]
  %v1850 = vld [vmem:[%s16 + $0x8] sm:$0xf]
  %v1851 = vld [vmem:[%s16 + $0xc] sm:$0xf]
  %v1852 = vld [vmem:[%s16 + $0x10] sm:$0xf]
  %v1853 = vld [vmem:[%s16 + $0x14] sm:$0xf]
  %v1854 = vld [vmem:[%s16 + $0x18] sm:$0xf]
  %v1855 = vld [vmem:[%s16 + $0x1c] sm:$0xf]
  %v1856 = vpack.c.bf16 %v1847, %v1846
  %v1857 = vld [vmem:[%s15] sm:$0x1]
  %v1859 = vlaneseq
  %v1860 = vshrl.u32 %v1859, 7
  %v1861 = vsub.s32 0, %v1860
  %v1862 = vrot.slane %v1857, %v1861
  %v1872 = vunpack.c.l.b16 %v1848
  %v1873 = vunpack.c.l.b16 %v1849
  %v1874 = vunpack.c.l.b16 %v1850
  %v1875 = vunpack.c.l.b16 %v1851
  %v1876 = vunpack.c.l.b16 %v1852
  %v1877 = vunpack.c.l.b16 %v1853
  %v1878 = vunpack.c.l.b16 %v1854
  %v1879 = vunpack.c.l.b16 %v1855
  %v1880 = vpack.c.b16 %v1873, %v1872
  %v1881 = vpack.c.b16 %v1875, %v1874
  %v1882 = vpack.c.b16 %v1877, %v1876
  %v1883 = vpack.c.b16 %v1879, %v1878
  %v1889 = vsel %vm1139, %v1856, 0
  %1891 = vmatprep.subr.bf16.mxu0 0
  %1892 = vmatpush1.bf16.msra.mxu0 0
  %1893 = vmatprep.subr.bf16.mxu0 0
  %1894 = vmatpush1.bf16.msra.mxu0 0
  %1895 = vmatprep.subr.bf16.mxu0 0
  %1896 = vmatpush1.bf16.msra.mxu0 0
  %1897 = vmatprep.subr.bf16.mxu0 0
  %1898 = vmatpush1.bf16.msra.mxu0 0
  %1899 = vmatprep.subr.bf16.mxu0 0
  %1900 = vmatpush1.bf16.msra.mxu0 %v1883
  %1901 = vmatprep.subr.bf16.mxu0 0
  %1902 = vmatpush1.bf16.msra.mxu0 %v1882
  %1903 = vmatprep.subr.bf16.mxu0 0
  %1904 = vmatpush1.bf16.msra.mxu0 %v1881
  %1905 = vmatprep.subr.bf16.mxu0 0
  %1906 = vmatpush1.bf16.msra.mxu0 %v1880
  %1907 = vmatprep.subr.bf16.mxu0 0
  %1908 = vmatpush2.bf16.msra.mxu0 0
  %1909 = vmatprep.subr.bf16.mxu0 0
  %1910 = vmatpush2.bf16.msra.mxu0 0
  %1911 = vmatprep.subr.bf16.mxu0 0
  %1912 = vmatpush2.bf16.msra.mxu0 0
  %1913 = vmatprep.subr.bf16.mxu0 0
  %1914 = vmatpush2.bf16.msra.mxu0 0
  %1915 = vmatprep.subr.bf16.mxu0 0
  %1916 = vmatpush2.bf16.msra.mxu0 0
  %1917 = vmatprep.subr.bf16.mxu0 0
  %1918 = vmatpush2.bf16.msra.mxu0 0
  %1919 = vmatprep.subr.bf16.mxu0 0
  %1920 = vmatpush2.bf16.msra.mxu0 0
  %1921 = vmatprep.subr.bf16.mxu0 0
  %1922 = vmatpush2.bf16.msra.mxu0 0
  %1923 = vmatprep.mubr.bf16.mxu0 0
  %1924 = vmatmul.mubr.bf16.gmra.mxu0 %v1889
  %v1925 = vpop.f32.mrf.mxu0
  %v1926 = vadd.f32 %v1862, %v1925
  %v1927 = vpop.f32.mrf.mxu0
  %v1928 = vpop.f32.mrf.mxu0
  %v1929 = vadd.f32 %v1862, %v1928
  %v1930 = vpop.f32.mrf.mxu0
  %1931 = vdwg.mxu0
  %v1932 = vadd.f32 %v1926, %v1349
  %v1933 = vadd.f32 %v1929, %v1350
  %vm1934 = vcmp.ge.f32.partialorder %v1932, 0.0
  %vm1935 = vcmp.ge.f32.partialorder %v1933, 0.0
  %v1936 = vmul.f32 %v1932, 0.01
  %v1937 = vmul.f32 %v1933, 0.01
  %v1938 = vsel %vm1934, %v1932, %v1936
  %v1939 = vsel %vm1935, %v1933, %v1937
  %v1940 = vld [vmem:[%s22] sm:$0xf]
  %v1941 = vld [vmem:[%s22 + $0x4] sm:$0xf]
  %v1942 = vld [vmem:[%s22 + $0x8] sm:$0xf]
  %v1943 = vld [vmem:[%s22 + $0xc] sm:$0xf]
  %v1944 = vld [vmem:[%s22 + $0x10] sm:$0xf]
  %v1945 = vld [vmem:[%s22 + $0x14] sm:$0xf]
  %v1946 = vld [vmem:[%s22 + $0x18] sm:$0xf]
  %v1947 = vld [vmem:[%s22 + $0x1c] sm:$0xf]
  %v1948 = vpack.c.bf16 %v1939, %v1938
  %v1949 = vld [vmem:[%s21] sm:$0x1]
  %v1951 = vlaneseq
  %v1952 = vshrl.u32 %v1951, 7
  %v1953 = vsub.s32 0, %v1952
  %v1954 = vrot.slane %v1949, %v1953
  %v1964 = vunpack.c.l.b16 %v1940
  %v1965 = vunpack.c.l.b16 %v1941
  %v1966 = vunpack.c.l.b16 %v1942
  %v1967 = vunpack.c.l.b16 %v1943
  %v1968 = vunpack.c.l.b16 %v1944
  %v1969 = vunpack.c.l.b16 %v1945
  %v1970 = vunpack.c.l.b16 %v1946
  %v1971 = vunpack.c.l.b16 %v1947
  %v1972 = vpack.c.b16 %v1965, %v1964
  %v1973 = vpack.c.b16 %v1967, %v1966
  %v1974 = vpack.c.b16 %v1969, %v1968
  %v1975 = vpack.c.b16 %v1971, %v1970
  %v1981 = vsel %vm1139, %v1948, 0
  %1983 = vmatprep.subr.bf16.mxu0 0
  %1984 = vmatpush1.bf16.msra.mxu0 0
  %1985 = vmatprep.subr.bf16.mxu0 0
  %1986 = vmatpush1.bf16.msra.mxu0 0
  %1987 = vmatprep.subr.bf16.mxu0 0
  %1988 = vmatpush1.bf16.msra.mxu0 0
  %1989 = vmatprep.subr.bf16.mxu0 0
  %1990 = vmatpush1.bf16.msra.mxu0 0
  %1991 = vmatprep.subr.bf16.mxu0 0
  %1992 = vmatpush1.bf16.msra.mxu0 %v1975
  %1993 = vmatprep.subr.bf16.mxu0 0
  %1994 = vmatpush1.bf16.msra.mxu0 %v1974
  %1995 = vmatprep.subr.bf16.mxu0 0
  %1996 = vmatpush1.bf16.msra.mxu0 %v1973
  %1997 = vmatprep.subr.bf16.mxu0 0
  %1998 = vmatpush1.bf16.msra.mxu0 %v1972
  %1999 = vmatprep.subr.bf16.mxu0 0
  %2000 = vmatpush2.bf16.msra.mxu0 0
  %2001 = vmatprep.subr.bf16.mxu0 0
  %2002 = vmatpush2.bf16.msra.mxu0 0
  %2003 = vmatprep.subr.bf16.mxu0 0
  %2004 = vmatpush2.bf16.msra.mxu0 0
  %2005 = vmatprep.subr.bf16.mxu0 0
  %2006 = vmatpush2.bf16.msra.mxu0 0
  %2007 = vmatprep.subr.bf16.mxu0 0
  %2008 = vmatpush2.bf16.msra.mxu0 0
  %2009 = vmatprep.subr.bf16.mxu0 0
  %2010 = vmatpush2.bf16.msra.mxu0 0
  %2011 = vmatprep.subr.bf16.mxu0 0
  %2012 = vmatpush2.bf16.msra.mxu0 0
  %2013 = vmatprep.subr.bf16.mxu0 0
  %2014 = vmatpush2.bf16.msra.mxu0 0
  %2015 = vmatprep.mubr.bf16.mxu0 0
  %2016 = vmatmul.mubr.bf16.gmra.mxu0 %v1981
  %v2017 = vpop.f32.mrf.mxu0
  %v2018 = vadd.f32 %v1954, %v2017
  %v2019 = vpop.f32.mrf.mxu0
  %v2020 = vpop.f32.mrf.mxu0
  %v2021 = vadd.f32 %v1954, %v2020
  %v2022 = vpop.f32.mrf.mxu0
  %2023 = vdwg.mxu0
  %vm2024 = vcmp.ge.f32.partialorder %v2018, 0.0
  %vm2025 = vcmp.ge.f32.partialorder %v2021, 0.0
  %v2026 = vmul.f32 %v2018, 0.01
  %v2027 = vmul.f32 %v2021, 0.01
  %v2028 = vsel %vm2024, %v2018, %v2026
  %v2029 = vsel %vm2025, %v2021, %v2027
  %v2030 = vld [vmem:[%s23] sm:$0xf]
  %v2031 = vld [vmem:[%s23 + $0x4] sm:$0xf]
  %v2032 = vld [vmem:[%s23 + $0x8] sm:$0xf]
  %v2033 = vld [vmem:[%s23 + $0xc] sm:$0xf]
  %v2034 = vld [vmem:[%s23 + $0x10] sm:$0xf]
  %v2035 = vld [vmem:[%s23 + $0x14] sm:$0xf]
  %v2036 = vld [vmem:[%s23 + $0x18] sm:$0xf]
  %v2037 = vld [vmem:[%s23 + $0x1c] sm:$0xf]
  %v2038 = vpack.c.bf16 %v2029, %v2028
  %v2047 = vunpack.c.l.b16 %v2030
  %v2048 = vunpack.c.l.b16 %v2031
  %v2049 = vunpack.c.l.b16 %v2032
  %v2050 = vunpack.c.l.b16 %v2033
  %v2051 = vunpack.c.l.b16 %v2034
  %v2052 = vunpack.c.l.b16 %v2035
  %v2053 = vunpack.c.l.b16 %v2036
  %v2054 = vunpack.c.l.b16 %v2037
  %v2055 = vpack.c.b16 %v2048, %v2047
  %v2056 = vpack.c.b16 %v2050, %v2049
  %v2057 = vpack.c.b16 %v2052, %v2051
  %v2058 = vpack.c.b16 %v2054, %v2053
  %v2064 = vsel %vm1139, %v2038, 0
  %2066 = vmatprep.subr.bf16.mxu0 0
  %2067 = vmatpush1.bf16.msra.mxu0 0
  %2068 = vmatprep.subr.bf16.mxu0 0
  %2069 = vmatpush1.bf16.msra.mxu0 0
  %2070 = vmatprep.subr.bf16.mxu0 0
  %2071 = vmatpush1.bf16.msra.mxu0 0
  %2072 = vmatprep.subr.bf16.mxu0 0
  %2073 = vmatpush1.bf16.msra.mxu0 0
  %2074 = vmatprep.subr.bf16.mxu0 0
  %2075 = vmatpush1.bf16.msra.mxu0 %v2058
  %2076 = vmatprep.subr.bf16.mxu0 0
  %2077 = vmatpush1.bf16.msra.mxu0 %v2057
  %2078 = vmatprep.subr.bf16.mxu0 0
  %2079 = vmatpush1.bf16.msra.mxu0 %v2056
  %2080 = vmatprep.subr.bf16.mxu0 0
  %2081 = vmatpush1.bf16.msra.mxu0 %v2055
  %2082 = vmatprep.subr.bf16.mxu0 0
  %2083 = vmatpush2.bf16.msra.mxu0 0
  %2084 = vmatprep.subr.bf16.mxu0 0
  %2085 = vmatpush2.bf16.msra.mxu0 0
  %2086 = vmatprep.subr.bf16.mxu0 0
  %2087 = vmatpush2.bf16.msra.mxu0 0
  %2088 = vmatprep.subr.bf16.mxu0 0
  %2089 = vmatpush2.bf16.msra.mxu0 0
  %2090 = vmatprep.subr.bf16.mxu0 0
  %2091 = vmatpush2.bf16.msra.mxu0 0
  %2092 = vmatprep.subr.bf16.mxu0 0
  %2093 = vmatpush2.bf16.msra.mxu0 0
  %2094 = vmatprep.subr.bf16.mxu0 0
  %2095 = vmatpush2.bf16.msra.mxu0 0
  %2096 = vmatprep.subr.bf16.mxu0 0
  %2097 = vmatpush2.bf16.msra.mxu0 0
  %2098 = vmatprep.mubr.bf16.mxu0 0
  %2099 = vmatmul.mubr.bf16.gmra.mxu0 %v2064
  %v2100 = vpop.f32.mrf.mxu0
  %v2101 = vadd.f32 0.0, %v2100
  %v2102 = vpop.f32.mrf.mxu0
  %v2103 = vpop.f32.mrf.mxu0
  %v2104 = vadd.f32 0.0, %v2103
  %v2105 = vpop.f32.mrf.mxu0
  %2106 = vdwg.mxu0
  %v2123 = vunpack.c.l.b16 %v588
  %v2124 = vunpack.c.l.b16 %v589
  %v2125 = vunpack.c.l.b16 %v590
  %v2126 = vunpack.c.l.b16 %v591
  %v2127 = vunpack.c.l.b16 %v592
  %v2128 = vunpack.c.l.b16 %v593
  %v2129 = vunpack.c.l.b16 %v594
  %v2130 = vunpack.c.l.b16 %v595
  %v2131 = vunpack.c.l.b16 %v596
  %v2132 = vunpack.c.l.b16 %v597
  %v2133 = vunpack.c.l.b16 %v598
  %v2134 = vunpack.c.l.b16 %v599
  %v2135 = vunpack.c.l.b16 %v600
  %v2136 = vunpack.c.l.b16 %v601
  %v2137 = vunpack.c.l.b16 %v602
  %v2138 = vunpack.c.l.b16 %v603
  %v2139 = vpack.c.b16 %v2124, %v2123
  %v2140 = vpack.c.b16 %v2126, %v2125
  %v2141 = vpack.c.b16 %v2128, %v2127
  %v2142 = vpack.c.b16 %v2130, %v2129
  %v2143 = vpack.c.b16 %v2132, %v2131
  %v2144 = vpack.c.b16 %v2134, %v2133
  %v2145 = vpack.c.b16 %v2136, %v2135
  %v2146 = vpack.c.b16 %v2138, %v2137
  %2155 = vmatprep.subr.bf16.mxu0 0
  %2156 = vmatpush1.bf16.msra.mxu0 %v2146
  %2157 = vmatprep.subr.bf16.mxu0 0
  %2158 = vmatpush1.bf16.msra.mxu0 %v2145
  %2159 = vmatprep.subr.bf16.mxu0 0
  %2160 = vmatpush1.bf16.msra.mxu0 %v2144
  %2161 = vmatprep.subr.bf16.mxu0 0
  %2162 = vmatpush1.bf16.msra.mxu0 %v2143
  %2163 = vmatprep.subr.bf16.mxu0 0
  %2164 = vmatpush1.bf16.msra.mxu0 %v2142
  %2165 = vmatprep.subr.bf16.mxu0 0
  %2166 = vmatpush1.bf16.msra.mxu0 %v2141
  %2167 = vmatprep.subr.bf16.mxu0 0
  %2168 = vmatpush1.bf16.msra.mxu0 %v2140
  %2169 = vmatprep.subr.bf16.mxu0 0
  %2170 = vmatpush1.bf16.msra.mxu0 %v2139
  %2171 = vmatprep.subr.bf16.mxu0 0
  %2172 = vmatpush2.bf16.msra.mxu0 0
  %2173 = vmatprep.subr.bf16.mxu0 0
  %2174 = vmatpush2.bf16.msra.mxu0 0
  %2175 = vmatprep.subr.bf16.mxu0 0
  %2176 = vmatpush2.bf16.msra.mxu0 0
  %2177 = vmatprep.subr.bf16.mxu0 0
  %2178 = vmatpush2.bf16.msra.mxu0 0
  %2179 = vmatprep.subr.bf16.mxu0 0
  %2180 = vmatpush2.bf16.msra.mxu0 0
  %2181 = vmatprep.subr.bf16.mxu0 0
  %2182 = vmatpush2.bf16.msra.mxu0 0
  %2183 = vmatprep.subr.bf16.mxu0 0
  %2184 = vmatpush2.bf16.msra.mxu0 0
  %2185 = vmatprep.subr.bf16.mxu0 0
  %2186 = vmatpush2.bf16.msra.mxu0 0
  %2187 = vmatprep.mubr.bf16.mxu0 0
  %2188 = vmatmul.mubr.bf16.gmra.mxu0 %v604
  %v2189 = vpop.f32.mrf.mxu0
  %v2190 = vadd.f32 %v2101, %v2189
  %v2191 = vpop.f32.mrf.mxu0
  %v2192 = vpop.f32.mrf.mxu0
  %v2193 = vadd.f32 %v2104, %v2192
  %v2194 = vpop.f32.mrf.mxu0
  %2195 = vdwg.mxu0
  %v2196 = vld [vmem:[%s24] sm:$0x1]
  %v2198 = vlaneseq
  %v2199 = vshrl.u32 %v2198, 7
  %v2200 = vsub.s32 0, %v2199
  %v2201 = vrot.slane %v2196, %v2200
  %v2203 = vadd.f32 %v2190, %v2201
  %v2204 = vadd.f32 %v2193, %v2201
  %vm2205 = vcmp.ge.f32.partialorder %v2203, 0.0
  %vm2206 = vcmp.ge.f32.partialorder %v2204, 0.0
  %v2207 = vmul.f32 %v2203, 0.01
  %v2208 = vmul.f32 %v2204, 0.01
  %v2209 = vsel %vm2205, %v2203, %v2207
  %v2210 = vsel %vm2206, %v2204, %v2208
  %2211 = vst [vmem:[%s25] sm:$0xff] %v2209
  %2212 = vst [vmem:[%s25 + $0x8] sm:$0xff] %v2210
  // Predicated region
  $region102: #{fwd.1} parent=0 // pred_check
    _
  $region103: #{fwd.1} parent=0 // pred_check_branch
    %2214 = sbr.rel (0) target = $region105
  $region104: #{fwd.1} parent=0 // pred_region
    _
  $region105: #{fwd.1} parent=0 // pred_fallthru
    _
  // Predicated region
  $region106: #{fwd.1} parent=0 // pred_check
    _
  $region107: #{fwd.1} parent=0 // pred_check_branch
    %2216 = sbr.rel (0) target = $region109
  $region108: #{fwd.1} parent=0 // pred_region
    _
  $region109: #{fwd.1} parent=0 // pred_fallthru
    _

</llo_original>
